<compile_context>
chip_gen: v7x
topology: tpu7x:2x2x1
jax: 0.10.0
libtpu: 0.0.40
codegen_flags: <defaults>
</compile_context>

<pallas_src>
import functools
import math

import jax
import jax.numpy as jnp
from jax import lax
from jax.experimental import pallas as pl
from jax.experimental.pallas import tpu as pltpu


# ----------------------------------------------------------------------------
# Small planning helpers.
# ----------------------------------------------------------------------------
def _round_up(x, m):
    return ((x + m - 1) // m) * m


def _lcm(a, b):
    return a * b // math.gcd(a, b)


def _plan_rows(total_rows, unit, row_bytes, *, block_target_bytes=2 << 20,
               chunk_target=64):
    """Pick (block_rows, chunk_rows, padded_rows).

    block_rows is a multiple of lcm(unit, 8) (so in-kernel `row % unit` masks and
    pl.ds starts stay aligned), capped by a byte budget, and sized so the grid
    has >= 2 steps (v7x megacore) whenever the input allows it.
    """
    align = _lcm(max(unit, 1), 8)
    cap = max(align, (block_target_bytes // max(row_bytes, 1)) // align * align)
    rt = min(cap, _round_up(-(-total_rows // 2), align))   # aim for >= 2 grid steps
    rt = max(align, _round_up(rt, align))
    rc = align * max(1, chunk_target // align)              # inner vreg chunk (~64 rows)
    padded = _round_up(total_rows, rt)
    return rt, rc, padded


def _vmem_limit(*nbytes):
    """Explicit scoped-VMEM limit: 2x (double-buffered) blocks + headroom,
    clamped to [32 MiB, 64 MiB] so it is valid on v5e/v6e/v7x."""
    need = 2 * int(sum(nbytes)) + (8 << 20)
    return int(min(64 << 20, max(32 << 20, need)))


# ----------------------------------------------------------------------------
# Host-side weight folding (block-Toeplitz).
# ----------------------------------------------------------------------------
def _toeplitz_w_weight(w, W):
    """Fold dx + Cin into the contraction and stack the 3 dy taps along K.

    w: (3, 3, Ci, Co) HWIO.  Returns T: (3*W*Ci, W*Co) with
    T[dy*W*Ci + xi*Ci + ci, xo*Co + co] = w[dy, xi-xo+1, ci, co] (0 outside the band),
    which also implements SAME zero padding along W.
    """
    _, _, Ci, Co = w.shape
    xi = jnp.arange(W)[:, None]
    xo = jnp.arange(W)[None, :]
    dx = xi - xo + 1
    valid = (dx >= 0) & (dx < 3)
    blk = w[:, jnp.clip(dx, 0, 2)]                      # (3, W, W, Ci, Co): [dy, xi, xo, ci, co]
    blk = jnp.where(valid[None, :, :, None, None], blk, 0.0)
    return jnp.transpose(blk, (0, 1, 3, 2, 4)).reshape(3 * W * Ci, W * Co)


def _toeplitz_full_weight(w, A, S):
    """Fully fold both conv axes (A, S) and Cin into one dense weight.

    Used when the 3-tap kernel spans the whole short axis (angular / EPI convs).
    Returns (A*S*Ci, A*S*Co) with zero blocks outside the 3x3 band (SAME pad).
    """
    _, _, Ci, Co = w.shape
    ai = jnp.arange(A)
    si = jnp.arange(S)
    da = ai[:, None] - ai[None, :] + 1                  # (A_in, A_out)
    ds_ = si[:, None] - si[None, :] + 1                 # (S_in, S_out)
    va = (da >= 0) & (da < 3)
    vs = (ds_ >= 0) & (ds_ < 3)
    blk = w[jnp.clip(da, 0, 2)]                         # (A, A, 3, Ci, Co)
    blk = blk[:, :, jnp.clip(ds_, 0, 2)]                # (A, A, S, S, Ci, Co): [ai, ao, si, so, ci, co]
    valid = (va[:, :, None, None, None, None] & vs[None, None, :, :, None, None])
    blk = jnp.where(valid, blk, 0.0)
    return jnp.transpose(blk, (0, 2, 4, 1, 3, 5)).reshape(A * S * Ci, A * S * Co)


# ----------------------------------------------------------------------------
# Pallas kernels.
# ----------------------------------------------------------------------------
def _rows_conv_kernel(x_ref, t_ref, b_ref, o_ref, *, H, Rc, slope):
    """3x3 SAME conv + LeakyReLU on flattened image rows.

    x_ref : (Rt, W*C)    bf16, rows = (batch, y) flattened; Rt % lcm(H,8) == 0
    t_ref : (3*W*C, W*C) bf16 dy-stacked W-Toeplitz weight (VMEM resident)
    b_ref : (1, W*C)     f32 bias tiled over W
    o_ref : (Rt, W*C)    output rows
    """
    Rt, _ = x_ref.shape

    def do_chunk(r0, rows):
        xc = x_ref[pl.ds(r0, rows), :].astype(jnp.float32)        # (rows, WC)
        y = lax.broadcasted_iota(jnp.int32, (rows, 1), 0) % H
        # +-1-row shifts via XLU rolls; wrapped rows are exactly the SAME-pad
        # rows (y==0 / y==H-1) because chunk starts are multiples of H.
        up = pltpu.roll(xc, shift=1, axis=0)                      # row r <- row r-1
        up = jnp.where(y == 0, 0.0, up)
        dn = pltpu.roll(xc, shift=rows - 1, axis=0)               # row r <- row r+1
        dn = jnp.where(y == H - 1, 0.0, dn)
        lhs = jnp.concatenate([up, xc, dn], axis=-1).astype(jnp.bfloat16)
        acc = jnp.dot(lhs, t_ref[...],                            # one K=3*WC MXU pass
                      preferred_element_type=jnp.float32)
        acc = acc + b_ref[...]
        acc = jnp.where(acc > 0, acc, slope * acc)                # f32 LeakyReLU
        o_ref[pl.ds(r0, rows), :] = acc.astype(o_ref.dtype)

    n_full = Rt // Rc
    if n_full > 0:
        def body(j, carry):
            do_chunk(pl.multiple_of(j * Rc, Rc), Rc)
            return carry
        lax.fori_loop(0, n_full, body, 0)
    tail = Rt - n_full * Rc
    if tail:
        do_chunk(n_full * Rc, tail)


def _mm_bias_lrelu_kernel(x_ref, t_ref, b_ref, o_ref, *, Rc, slope):
    """y = LeakyReLU(x @ T + b) on row chunks (fully folded convs)."""
    Rt = x_ref.shape[0]

    def do_chunk(r0, rows):
        acc = jnp.dot(x_ref[pl.ds(r0, rows), :], t_ref[...],
                      preferred_element_type=jnp.float32)
        acc = acc + b_ref[...]
        acc = jnp.where(acc > 0, acc, slope * acc)
        o_ref[pl.ds(r0, rows), :] = acc.astype(o_ref.dtype)

    n_full = Rt // Rc
    if n_full > 0:
        def body(j, carry):
            do_chunk(pl.multiple_of(j * Rc, Rc), Rc)
            return carry
        lax.fori_loop(0, n_full, body, 0)
    tail = Rt - n_full * Rc
    if tail:
        do_chunk(n_full * Rc, tail)


# ----------------------------------------------------------------------------
# Conv wrappers (pallas_call plumbing).
# ----------------------------------------------------------------------------
def _conv_rows_pallas(x, w, b, *, slope, out_dtype):
    """3x3 SAME conv + LeakyReLU, x: (B, H, W, C); rows-kernel path."""
    B, H, W, C = x.shape
    WC = W * C
    out_dtype = out_dtype or x.dtype

    t = _toeplitz_w_weight(w, W).astype(jnp.bfloat16)            # (3*WC, WC)
    bias = jnp.tile(b.astype(jnp.float32), W).reshape(1, WC)
    xr = x.astype(jnp.bfloat16).reshape(B * H, WC)               # lane-dense (w, c)

    total = B * H
    rt, rc, padded = _plan_rows(total, H, WC * 2)
    if padded != total:
        xr = jnp.concatenate([xr, jnp.zeros((padded - total, WC), xr.dtype)], axis=0)
    grid = padded // rt
    out_bytes = rt * WC * jnp.dtype(out_dtype).itemsize

    out = pl.pallas_call(
        functools.partial(_rows_conv_kernel, H=H, Rc=rc, slope=slope),
        out_shape=jax.ShapeDtypeStruct((padded, WC), out_dtype),
        grid=(grid,),
        in_specs=[
            pl.BlockSpec((rt, WC), lambda i: (i, 0)),
            pl.BlockSpec((3 * WC, WC), lambda i: (0, 0)),        # constant -> VMEM resident
            pl.BlockSpec((1, WC), lambda i: (0, 0)),             # constant -> VMEM resident
        ],
        out_specs=pl.BlockSpec((rt, WC), lambda i: (i, 0)),
        compiler_params=pltpu.CompilerParams(
            dimension_semantics=("parallel",),
            vmem_limit_bytes=_vmem_limit(rt * WC * 2, out_bytes, 3 * WC * WC * 2)),
    )(xr, t, bias)

    if padded != total:
        out = out[:total]
    return out.reshape(B, H, W, C)


def _conv_fullfold_pallas(x, w, b, *, slope, out_dtype):
    """3x3 SAME conv + LeakyReLU with both conv axes folded, x: (B, A, S, C)."""
    B, A, S, C = x.shape
    F = A * S * C
    out_dtype = out_dtype or x.dtype

    t = _toeplitz_full_weight(w, A, S).astype(jnp.bfloat16)      # (F, F)
    bias = jnp.tile(b.astype(jnp.float32), A * S).reshape(1, F)
    xr = x.astype(jnp.bfloat16).reshape(B, F)

    rt, rc, padded = _plan_rows(B, 1, F * 2)
    if padded != B:
        xr = jnp.concatenate([xr, jnp.zeros((padded - B, F), xr.dtype)], axis=0)
    grid = padded // rt
    out_bytes = rt * F * jnp.dtype(out_dtype).itemsize

    out = pl.pallas_call(
        functools.partial(_mm_bias_lrelu_kernel, Rc=rc, slope=slope),
        out_shape=jax.ShapeDtypeStruct((padded, F), out_dtype),
        grid=(grid,),
        in_specs=[
            pl.BlockSpec((rt, F), lambda i: (i, 0)),
            pl.BlockSpec((F, F), lambda i: (0, 0)),              # constant -> VMEM resident
            pl.BlockSpec((1, F), lambda i: (0, 0)),              # constant -> VMEM resident
        ],
        out_specs=pl.BlockSpec((rt, F), lambda i: (i, 0)),
        compiler_params=pltpu.CompilerParams(
            dimension_semantics=("parallel",),
            vmem_limit_bytes=_vmem_limit(rt * F * 2, out_bytes, F * F * 2)),
    )(xr, t, bias)

    if padded != B:
        out = out[:B]
    return out.reshape(B, A, S, C)


def conv3x3_lrelu(x, w, b, *, slope=0.2, out_dtype=None):
    """3x3 SAME conv + LeakyReLU over the two middle dims of (B, A, S, C)."""
    B, A, S, C = x.shape
    # When the 3-tap kernel spans the whole short axis (angular / EPI convs),
    # fold it completely -> one lane-dense matmul, no sublane-sparse slabs.
    if A <= 4 and A * S * C <= 4096:
        return _conv_fullfold_pallas(x, w, b, slope=slope, out_dtype=out_dtype)
    return _conv_rows_pallas(x, w, b, slope=slope, out_dtype=out_dtype)


# Pure-JAX reference conv with the same bf16 data path (for the self-check).
def conv3x3_lrelu_ref(x, w, b, *, slope=0.2, out_dtype=None):
    out_dtype = out_dtype or x.dtype
    y = lax.conv_general_dilated(
        x.astype(jnp.bfloat16), w.astype(jnp.bfloat16),
        window_strides=(1, 1), padding="SAME",
        dimension_numbers=("NHWC", "HWIO", "NHWC"),
        preferred_element_type=jnp.float32)
    y = y + b.astype(jnp.float32)
    y = jnp.where(y > 0, y, slope * y)
    return y.astype(out_dtype)


# ----------------------------------------------------------------------------
# SAS / SAC / SAV_concat forward (glue permutes + Pallas conv kernel calls).
# ----------------------------------------------------------------------------
def sas_conv(x6, p, conv_fn):
    N, c, U, V, h, w = x6.shape
    # spatial conv over (h, w); batch = (N, U, V)
    t = jnp.transpose(x6, (0, 2, 3, 4, 5, 1)).reshape(N * U * V, h, w, c)
    t = conv_fn(t, p["spa_w"], p["spa_b"], out_dtype=jnp.bfloat16)
    # angular conv over (U, V); batch = (N, h, w)
    t = t.reshape(N, U, V, h, w, c)
    t = jnp.transpose(t, (0, 3, 4, 1, 2, 5)).reshape(N * h * w, U, V, c)
    t = conv_fn(t, p["ang_w"], p["ang_b"], out_dtype=jnp.bfloat16)
    t = t.reshape(N, h, w, U, V, c)
    return jnp.transpose(t, (0, 5, 3, 4, 1, 2))                  # (N, c, U, V, h, w)


def sac_conv(x6, p, conv_fn, out_dtype):
    N, c, U, V, h, w = x6.shape
    # vertical EPI conv over (U, h); batch = (N, V, w)
    t = jnp.transpose(x6, (0, 3, 5, 2, 4, 1)).reshape(N * V * w, U, h, c)
    t = conv_fn(t, p["ver_w"], p["ver_b"], out_dtype=jnp.bfloat16)
    # horizontal EPI conv over (V, w); batch = (N, U, h)
    t = t.reshape(N, V, w, U, h, c)
    t = jnp.transpose(t, (0, 3, 4, 1, 2, 5)).reshape(N * U * h, V, w, c)
    t = conv_fn(t, p["hor_w"], p["hor_b"], out_dtype=out_dtype)
    t = t.reshape(N, U, h, V, w, c)
    return jnp.transpose(t, (0, 5, 1, 3, 2, 4))                  # (N, c, U, V, h, w)


def sav_concat(lf_input, params, residual_connection=True, conv_fn=conv3x3_lrelu):
    feat = sas_conv(lf_input, params["sas"], conv_fn)
    res = sac_conv(feat, params["sac"], conv_fn, out_dtype=lf_input.dtype)
    if residual_connection:
        # The add fuses with the final XLA transpose (single HBM pass).
        res = res + lf_input
    return res


# ----------------------------------------------------------------------------
# Deterministic parameter init (kaiming_normal fan_in, leaky_relu a=0.2; bias 0)
# ----------------------------------------------------------------------------
def _kaiming_normal(key, shape, fan_in, a):
    gain = math.sqrt(2.0 / (1.0 + a * a))
    std = gain / math.sqrt(fan_in)
    return std * jax.random.normal(key, shape, jnp.float32)


def init_params(key, fn):
    a = 0.2                      # SAS_para.act = SAC_para.act = 'lrelu'
    fan_in = fn * 3 * 3
    ks = jax.random.split(key, 4)
    mk = lambda k: _kaiming_normal(k, (3, 3, fn, fn), fan_in, a)
    zb = jnp.zeros((fn,), jnp.float32)
    return {
        "sas": {"spa_w": mk(ks[0]), "spa_b": zb,
                "ang_w": mk(ks[1]), "ang_b": zb},
        "sac": {"ver_w": mk(ks[2]), "ver_b": zb,
                "hor_w": mk(ks[3]), "hor_b": zb},
    }


if __name__ == "__main__":
    key = jax.random.PRNGKey(0)
    kx, kp = jax.random.split(key)

    # small light field: N=2, fn=c=16 channels (module default is 64; 16 keeps the
    # example small while making the packed lane dim w*c = 128), 3x3 angular
    # views, 8x8 spatial.
    N, c, U, V, h, w = 2, 16, 3, 3, 8, 8
    lf_input = jax.random.normal(kx, (N, c, U, V, h, w), jnp.float32)
    params = init_params(kp, c)

    out = jax.jit(sav_concat)(lf_input, params)
    out = jax.block_until_ready(out)
    assert out.shape == lf_input.shape and out.dtype == lf_input.dtype

    # Check against an XLA reference of the same forward pass with the same
    # bf16-matmul / f32-epilogue data path.
    ref_fn = jax.jit(functools.partial(sav_concat, conv_fn=conv3x3_lrelu_ref))
    ref = jax.block_until_ready(ref_fn(lf_input, params))
    max_err = float(jnp.max(jnp.abs(out - ref)))
    assert max_err < 2e-2, f"max abs err vs reference: {max_err}"

    print("KERNEL_OK")
</pallas_src>

<mosaic_0001>
module attributes {stable_mosaic.version = 11 : i64} {
  func.func @_rows_conv_kernel(%arg0: i32, %arg1: memref<72x128xbf16, #tpu.memory_space<vmem>>, %arg2: memref<384x128xbf16, #tpu.memory_space<vmem>>, %arg3: memref<1x128xf32, #tpu.memory_space<vmem>>, %arg4: memref<72x128xbf16, #tpu.memory_space<vmem>>) attributes {dimension_semantics = [#tpu.dimension_semantics<parallel>], iteration_bounds = array<i64: 2>, scalar_prefetch = 0 : i64, scratch_operands = 0 : i64, tpu.core_type = #tpu.core_type<tc>, window_params = [{transform_indices = @transform_0, window_bounds = array<i64: 72, 128>}, {pipeline_mode = #tpu.pipeline_mode<synchronous>, transform_indices = @transform_1, window_bounds = array<i64: 384, 128>}, {pipeline_mode = #tpu.pipeline_mode<synchronous>, transform_indices = @transform_2, window_bounds = array<i64: 1, 128>}, {transform_indices = @transform_3, window_bounds = array<i64: 72, 128>}]} {
    %c0_i32 = arith.constant 0 : i32
    %c64_i32 = arith.constant 64 : i32
    %0 = arith.muli %c0_i32, %c64_i32 : i32
    %1 = tpu.assume_multiple %0, 64 : i32
    %2 = arith.index_cast %1 : i32 to index
    %c0 = arith.constant 0 : index
    %3 = vector.load %arg1[%2, %c0] : memref<72x128xbf16, #tpu.memory_space<vmem>>, vector<64x128xbf16>
    %4 = arith.extf %3 : vector<64x128xbf16> to vector<64x128xf32>
    %5 = tpu.iota {dimensions = array<i32: 0>} : vector<64x1xi32>
    %c8_i32 = arith.constant 8 : i32
    %c0_i32_0 = arith.constant 0 : i32
    %6 = arith.cmpi eq, %c8_i32, %c0_i32_0 : i32
    %c1_i32 = arith.constant 1 : i32
    %7 = arith.select %6, %c1_i32, %c8_i32 : i32
    %8 = vector.broadcast %7 : i32 to vector<64x1xi32>
    %9 = arith.remsi %5, %8 : vector<64x1xi32>
    %c0_i32_1 = arith.constant 0 : i32
    %10 = vector.broadcast %c0_i32_1 : i32 to vector<64x1xi32>
    %11 = arith.cmpi ne, %9, %10 : vector<64x1xi32>
    %c0_i32_2 = arith.constant 0 : i32
    %12 = vector.broadcast %c0_i32_2 : i32 to vector<64x1xi32>
    %13 = arith.cmpi slt, %9, %12 : vector<64x1xi32>
    %c0_i32_3 = arith.constant 0 : i32
    %14 = arith.cmpi slt, %7, %c0_i32_3 : i32
    %15 = vector.broadcast %14 : i1 to vector<64x1xi1>
    %16 = vector.broadcast %15 : vector<64x1xi1> to vector<64x1xi1>
    %17 = arith.xori %13, %16 : vector<64x1xi1>
    %18 = arith.andi %17, %11 : vector<64x1xi1>
    %19 = vector.broadcast %7 : i32 to vector<64x1xi32>
    %20 = arith.addi %9, %19 : vector<64x1xi32>
    %21 = arith.select %18, %20, %9 : vector<64x1xi1>, vector<64x1xi32>
    %c1_i32_4 = arith.constant 1 : i32
    %22 = tpu.dynamic_rotate %4 by %c1_i32_4 dim 0 : vector<64x128xf32>, i32 -> vector<64x128xf32>
    %c0_i32_5 = arith.constant 0 : i32
    %23 = vector.broadcast %c0_i32_5 : i32 to vector<64x1xi32>
    %24 = arith.cmpi eq, %21, %23 : vector<64x1xi32>
    %cst = arith.constant 0.000000e+00 : f32
    %25 = vector.shape_cast %24 : vector<64x1xi1> to vector<64x1xi1>
    %26 = vector.broadcast %25 : vector<64x1xi1> to vector<64x128xi1>
    %27 = vector.broadcast %cst : f32 to vector<64x128xf32>
    %28 = arith.select %26, %27, %22 : vector<64x128xi1>, vector<64x128xf32>
    %c63_i32 = arith.constant 63 : i32
    %29 = tpu.dynamic_rotate %4 by %c63_i32 dim 0 : vector<64x128xf32>, i32 -> vector<64x128xf32>
    %c7_i32 = arith.constant 7 : i32
    %30 = vector.broadcast %c7_i32 : i32 to vector<64x1xi32>
    %31 = arith.cmpi eq, %21, %30 : vector<64x1xi32>
    %cst_6 = arith.constant 0.000000e+00 : f32
    %32 = vector.shape_cast %31 : vector<64x1xi1> to vector<64x1xi1>
    %33 = vector.broadcast %32 : vector<64x1xi1> to vector<64x128xi1>
    %34 = vector.broadcast %cst_6 : f32 to vector<64x128xf32>
    %35 = arith.select %33, %34, %29 : vector<64x128xi1>, vector<64x128xf32>
    %36 = tpu.concatenate %28, %4, %35 in 1 : vector<64x128xf32>, vector<64x128xf32>, vector<64x128xf32> -> vector<64x384xf32>
    %37 = arith.truncf %36 : vector<64x384xf32> to vector<64x384xbf16>
    %c0_7 = arith.constant 0 : index
    %c0_8 = arith.constant 0 : index
    %38 = vector.load %arg2[%c0_7, %c0_8] : memref<384x128xbf16, #tpu.memory_space<vmem>>, vector<384x128xbf16>
    %cst_9 = arith.constant dense<0.000000e+00> : vector<64x128xf32>
    %39 = tpu.matmul %37, %38, %cst_9 {dimension_numbers = #tpu.dot_dimension_numbers<[1], [0], [0], [1], [0, 0, 1, 1], [], []>} : vector<64x384xbf16>, vector<384x128xbf16>, vector<64x128xf32> -> vector<64x128xf32>
    %c0_10 = arith.constant 0 : index
    %c0_11 = arith.constant 0 : index
    %40 = vector.load %arg3[%c0_10, %c0_11] : memref<1x128xf32, #tpu.memory_space<vmem>>, vector<1x128xf32>
    %41 = vector.broadcast %40 : vector<1x128xf32> to vector<64x128xf32>
    %42 = arith.addf %39, %41 : vector<64x128xf32>
    %cst_12 = arith.constant 0.000000e+00 : f32
    %43 = vector.broadcast %cst_12 : f32 to vector<64x128xf32>
    %44 = arith.cmpf ogt, %42, %43 : vector<64x128xf32>
    %cst_13 = arith.constant 2.000000e-01 : f32
    %45 = vector.broadcast %cst_13 : f32 to vector<64x128xf32>
    %46 = arith.mulf %45, %42 : vector<64x128xf32>
    %47 = arith.select %44, %42, %46 : vector<64x128xi1>, vector<64x128xf32>
    %48 = arith.truncf %47 : vector<64x128xf32> to vector<64x128xbf16>
    %49 = arith.index_cast %1 : i32 to index
    %c0_14 = arith.constant 0 : index
    %50 = vector.load %arg4[%49, %c0_14] : memref<72x128xbf16, #tpu.memory_space<vmem>>, vector<64x128xbf16>
    tpu.vector_store %arg4[%49, %c0_14], %48 {strides = array<i32>} : memref<72x128xbf16, #tpu.memory_space<vmem>>, vector<64x128xbf16>,
    %c1_i32_15 = arith.constant 1 : i32
    %c64 = arith.constant 64 : index
    %c0_16 = arith.constant 0 : index
    %51 = vector.load %arg1[%c64, %c0_16] : memref<72x128xbf16, #tpu.memory_space<vmem>>, vector<8x128xbf16>
    %52 = arith.extf %51 : vector<8x128xbf16> to vector<8x128xf32>
    %53 = tpu.iota {dimensions = array<i32: 0>} : vector<8x1xi32>
    %c8_i32_17 = arith.constant 8 : i32
    %c0_i32_18 = arith.constant 0 : i32
    %54 = arith.cmpi eq, %c8_i32_17, %c0_i32_18 : i32
    %c1_i32_19 = arith.constant 1 : i32
    %55 = arith.select %54, %c1_i32_19, %c8_i32_17 : i32
    %56 = vector.broadcast %55 : i32 to vector<8x1xi32>
    %57 = arith.remsi %53, %56 : vector<8x1xi32>
    %c0_i32_20 = arith.constant 0 : i32
    %58 = vector.broadcast %c0_i32_20 : i32 to vector<8x1xi32>
    %59 = arith.cmpi ne, %57, %58 : vector<8x1xi32>
    %c0_i32_21 = arith.constant 0 : i32
    %60 = vector.broadcast %c0_i32_21 : i32 to vector<8x1xi32>
    %61 = arith.cmpi slt, %57, %60 : vector<8x1xi32>
    %c0_i32_22 = arith.constant 0 : i32
    %62 = arith.cmpi slt, %55, %c0_i32_22 : i32
    %63 = vector.broadcast %62 : i1 to vector<8x1xi1>
    %64 = vector.broadcast %63 : vector<8x1xi1> to vector<8x1xi1>
    %65 = arith.xori %61, %64 : vector<8x1xi1>
    %66 = arith.andi %65, %59 : vector<8x1xi1>
    %67 = vector.broadcast %55 : i32 to vector<8x1xi32>
    %68 = arith.addi %57, %67 : vector<8x1xi32>
    %69 = arith.select %66, %68, %57 : vector<8x1xi1>, vector<8x1xi32>
    %c1_i32_23 = arith.constant 1 : i32
    %70 = tpu.dynamic_rotate %52 by %c1_i32_23 dim 0 : vector<8x128xf32>, i32 -> vector<8x128xf32>
    %c0_i32_24 = arith.constant 0 : i32
    %71 = vector.broadcast %c0_i32_24 : i32 to vector<8x1xi32>
    %72 = arith.cmpi eq, %69, %71 : vector<8x1xi32>
    %cst_25 = arith.constant 0.000000e+00 : f32
    %73 = vector.shape_cast %72 : vector<8x1xi1> to vector<8x1xi1>
    %74 = vector.broadcast %73 : vector<8x1xi1> to vector<8x128xi1>
    %75 = vector.broadcast %cst_25 : f32 to vector<8x128xf32>
    %76 = arith.select %74, %75, %70 : vector<8x128xi1>, vector<8x128xf32>
    %c7_i32_26 = arith.constant 7 : i32
    %77 = tpu.dynamic_rotate %52 by %c7_i32_26 dim 0 : vector<8x128xf32>, i32 -> vector<8x128xf32>
    %c7_i32_27 = arith.constant 7 : i32
    %78 = vector.broadcast %c7_i32_27 : i32 to vector<8x1xi32>
    %79 = arith.cmpi eq, %69, %78 : vector<8x1xi32>
    %cst_28 = arith.constant 0.000000e+00 : f32
    %80 = vector.shape_cast %79 : vector<8x1xi1> to vector<8x1xi1>
    %81 = vector.broadcast %80 : vector<8x1xi1> to vector<8x128xi1>
    %82 = vector.broadcast %cst_28 : f32 to vector<8x128xf32>
    %83 = arith.select %81, %82, %77 : vector<8x128xi1>, vector<8x128xf32>
    %84 = tpu.concatenate %76, %52, %83 in 1 : vector<8x128xf32>, vector<8x128xf32>, vector<8x128xf32> -> vector<8x384xf32>
    %85 = arith.truncf %84 : vector<8x384xf32> to vector<8x384xbf16>
    %c0_29 = arith.constant 0 : index
    %c0_30 = arith.constant 0 : index
    %86 = vector.load %arg2[%c0_29, %c0_30] : memref<384x128xbf16, #tpu.memory_space<vmem>>, vector<384x128xbf16>
    %cst_31 = arith.constant dense<0.000000e+00> : vector<8x128xf32>
    %87 = tpu.matmul %85, %86, %cst_31 {dimension_numbers = #tpu.dot_dimension_numbers<[1], [0], [0], [1], [0, 0, 1, 1], [], []>} : vector<8x384xbf16>, vector<384x128xbf16>, vector<8x128xf32> -> vector<8x128xf32>
    %c0_32 = arith.constant 0 : index
    %c0_33 = arith.constant 0 : index
    %88 = vector.load %arg3[%c0_32, %c0_33] : memref<1x128xf32, #tpu.memory_space<vmem>>, vector<1x128xf32>
    %89 = vector.broadcast %88 : vector<1x128xf32> to vector<8x128xf32>
    %90 = arith.addf %87, %89 : vector<8x128xf32>
    %cst_34 = arith.constant 0.000000e+00 : f32
    %91 = vector.broadcast %cst_34 : f32 to vector<8x128xf32>
    %92 = arith.cmpf ogt, %90, %91 : vector<8x128xf32>
    %cst_35 = arith.constant 2.000000e-01 : f32
    %93 = vector.broadcast %cst_35 : f32 to vector<8x128xf32>
    %94 = arith.mulf %93, %90 : vector<8x128xf32>
    %95 = arith.select %92, %90, %94 : vector<8x128xi1>, vector<8x128xf32>
    %96 = arith.truncf %95 : vector<8x128xf32> to vector<8x128xbf16>
    %c64_36 = arith.constant 64 : index
    %c0_37 = arith.constant 0 : index
    %97 = vector.load %arg4[%c64_36, %c0_37] : memref<72x128xbf16, #tpu.memory_space<vmem>>, vector<8x128xbf16>
    tpu.vector_store %arg4[%c64_36, %c0_37], %96 {strides = array<i32>} : memref<72x128xbf16, #tpu.memory_space<vmem>>, vector<8x128xbf16>,
    return
  }
  func.func @transform_0(%arg0: i32) -> (i32, i32) {
    %c0_i32 = arith.constant 0 : i32
    %c0_i32_0 = arith.constant 0 : i32
    return %arg0, %c0_i32 : i32, i32
  }
  func.func @transform_1(%arg0: i32) -> (i32, i32) {
    %c0_i32 = arith.constant 0 : i32
    %c0_i32_0 = arith.constant 0 : i32
    %c0_i32_1 = arith.constant 0 : i32
    return %c0_i32, %c0_i32_0 : i32, i32
  }
  func.func @transform_2(%arg0: i32) -> (i32, i32) {
    %c0_i32 = arith.constant 0 : i32
    %c0_i32_0 = arith.constant 0 : i32
    %c0_i32_1 = arith.constant 0 : i32
    return %c0_i32, %c0_i32_0 : i32, i32
  }
  func.func @transform_3(%arg0: i32) -> (i32, i32) {
    %c0_i32 = arith.constant 0 : i32
    %c0_i32_0 = arith.constant 0 : i32
    return %arg0, %c0_i32 : i32, i32
  }
}

module attributes {stable_mosaic.version = 11 : i64} {
  func.func @_mm_bias_lrelu_kernel(%arg0: i32, %arg1: memref<64x144xbf16, #tpu.memory_space<vmem>>, %arg2: memref<144x144xbf16, #tpu.memory_space<vmem>>, %arg3: memref<1x144xf32, #tpu.memory_space<vmem>>, %arg4: memref<64x144xbf16, #tpu.memory_space<vmem>>) attributes {dimension_semantics = [#tpu.dimension_semantics<parallel>], iteration_bounds = array<i64: 2>, scalar_prefetch = 0 : i64, scratch_operands = 0 : i64, tpu.core_type = #tpu.core_type<tc>, window_params = [{transform_indices = @transform_0, window_bounds = array<i64: 64, 144>}, {pipeline_mode = #tpu.pipeline_mode<synchronous>, transform_indices = @transform_1, window_bounds = array<i64: 144, 144>}, {pipeline_mode = #tpu.pipeline_mode<synchronous>, transform_indices = @transform_2, window_bounds = array<i64: 1, 144>}, {transform_indices = @transform_3, window_bounds = array<i64: 64, 144>}]} {
    %c0_i32 = arith.constant 0 : i32
    %c64_i32 = arith.constant 64 : i32
    %0 = arith.muli %c0_i32, %c64_i32 : i32
    %1 = tpu.assume_multiple %0, 64 : i32
    %2 = arith.index_cast %1 : i32 to index
    %c0 = arith.constant 0 : index
    %3 = vector.load %arg1[%2, %c0] : memref<64x144xbf16, #tpu.memory_space<vmem>>, vector<64x144xbf16>
    %c0_0 = arith.constant 0 : index
    %c0_1 = arith.constant 0 : index
    %4 = vector.load %arg2[%c0_0, %c0_1] : memref<144x144xbf16, #tpu.memory_space<vmem>>, vector<144x144xbf16>
    %cst = arith.constant dense<0.000000e+00> : vector<64x144xf32>
    %5 = tpu.matmul %3, %4, %cst {dimension_numbers = #tpu.dot_dimension_numbers<[1], [0], [0], [1], [0, 0, 1, 1], [], []>} : vector<64x144xbf16>, vector<144x144xbf16>, vector<64x144xf32> -> vector<64x144xf32>
    %c0_2 = arith.constant 0 : index
    %c0_3 = arith.constant 0 : index
    %6 = vector.load %arg3[%c0_2, %c0_3] : memref<1x144xf32, #tpu.memory_space<vmem>>, vector<1x144xf32>
    %7 = vector.broadcast %6 : vector<1x144xf32> to vector<64x144xf32>
    %8 = arith.addf %5, %7 : vector<64x144xf32>
    %cst_4 = arith.constant 0.000000e+00 : f32
    %9 = vector.broadcast %cst_4 : f32 to vector<64x144xf32>
    %10 = arith.cmpf ogt, %8, %9 : vector<64x144xf32>
    %cst_5 = arith.constant 2.000000e-01 : f32
    %11 = vector.broadcast %cst_5 : f32 to vector<64x144xf32>
    %12 = arith.mulf %11, %8 : vector<64x144xf32>
    %13 = arith.select %10, %8, %12 : vector<64x144xi1>, vector<64x144xf32>
    %14 = arith.truncf %13 : vector<64x144xf32> to vector<64x144xbf16>
    %15 = arith.index_cast %1 : i32 to index
    %c0_6 = arith.constant 0 : index
    %16 = vector.load %arg4[%15, %c0_6] : memref<64x144xbf16, #tpu.memory_space<vmem>>, vector<64x144xbf16>
    tpu.vector_store %arg4[%15, %c0_6], %14 {strides = array<i32>} : memref<64x144xbf16, #tpu.memory_space<vmem>>, vector<64x144xbf16>,
    %c1_i32 = arith.constant 1 : i32
    return
  }
  func.func @transform_0(%arg0: i32) -> (i32, i32) {
    %c0_i32 = arith.constant 0 : i32
    %c0_i32_0 = arith.constant 0 : i32
    return %arg0, %c0_i32 : i32, i32
  }
  func.func @transform_1(%arg0: i32) -> (i32, i32) {
    %c0_i32 = arith.constant 0 : i32
    %c0_i32_0 = arith.constant 0 : i32
    %c0_i32_1 = arith.constant 0 : i32
    return %c0_i32, %c0_i32_0 : i32, i32
  }
  func.func @transform_2(%arg0: i32) -> (i32, i32) {
    %c0_i32 = arith.constant 0 : i32
    %c0_i32_0 = arith.constant 0 : i32
    %c0_i32_1 = arith.constant 0 : i32
    return %c0_i32, %c0_i32_0 : i32, i32
  }
  func.func @transform_3(%arg0: i32) -> (i32, i32) {
    %c0_i32 = arith.constant 0 : i32
    %c0_i32_0 = arith.constant 0 : i32
    return %arg0, %c0_i32 : i32, i32
  }
}

module attributes {stable_mosaic.version = 11 : i64} {
  func.func @_mm_bias_lrelu_kernel(%arg0: i32, %arg1: memref<24x384xbf16, #tpu.memory_space<vmem>>, %arg2: memref<384x384xbf16, #tpu.memory_space<vmem>>, %arg3: memref<1x384xf32, #tpu.memory_space<vmem>>, %arg4: memref<24x384xbf16, #tpu.memory_space<vmem>>) attributes {dimension_semantics = [#tpu.dimension_semantics<parallel>], iteration_bounds = array<i64: 2>, scalar_prefetch = 0 : i64, scratch_operands = 0 : i64, tpu.core_type = #tpu.core_type<tc>, window_params = [{transform_indices = @transform_0, window_bounds = array<i64: 24, 384>}, {pipeline_mode = #tpu.pipeline_mode<synchronous>, transform_indices = @transform_1, window_bounds = array<i64: 384, 384>}, {pipeline_mode = #tpu.pipeline_mode<synchronous>, transform_indices = @transform_2, window_bounds = array<i64: 1, 384>}, {transform_indices = @transform_3, window_bounds = array<i64: 24, 384>}]} {
    %c0 = arith.constant 0 : index
    %c0_0 = arith.constant 0 : index
    %0 = vector.load %arg1[%c0, %c0_0] : memref<24x384xbf16, #tpu.memory_space<vmem>>, vector<24x384xbf16>
    %c0_1 = arith.constant 0 : index
    %c0_2 = arith.constant 0 : index
    %1 = vector.load %arg2[%c0_1, %c0_2] : memref<384x384xbf16, #tpu.memory_space<vmem>>, vector<384x384xbf16>
    %cst = arith.constant dense<0.000000e+00> : vector<24x384xf32>
    %2 = tpu.matmul %0, %1, %cst {dimension_numbers = #tpu.dot_dimension_numbers<[1], [0], [0], [1], [0, 0, 1, 1], [], []>} : vector<24x384xbf16>, vector<384x384xbf16>, vector<24x384xf32> -> vector<24x384xf32>
    %c0_3 = arith.constant 0 : index
    %c0_4 = arith.constant 0 : index
    %3 = vector.load %arg3[%c0_3, %c0_4] : memref<1x384xf32, #tpu.memory_space<vmem>>, vector<1x384xf32>
    %4 = vector.broadcast %3 : vector<1x384xf32> to vector<24x384xf32>
    %5 = arith.addf %2, %4 : vector<24x384xf32>
    %cst_5 = arith.constant 0.000000e+00 : f32
    %6 = vector.broadcast %cst_5 : f32 to vector<24x384xf32>
    %7 = arith.cmpf ogt, %5, %6 : vector<24x384xf32>
    %cst_6 = arith.constant 2.000000e-01 : f32
    %8 = vector.broadcast %cst_6 : f32 to vector<24x384xf32>
    %9 = arith.mulf %8, %5 : vector<24x384xf32>
    %10 = arith.select %7, %5, %9 : vector<24x384xi1>, vector<24x384xf32>
    %11 = arith.truncf %10 : vector<24x384xf32> to vector<24x384xbf16>
    %c0_7 = arith.constant 0 : index
    %c0_8 = arith.constant 0 : index
    %12 = vector.load %arg4[%c0_7, %c0_8] : memref<24x384xbf16, #tpu.memory_space<vmem>>, vector<24x384xbf16>
    tpu.vector_store %arg4[%c0_7, %c0_8], %11 {strides = array<i32>} : memref<24x384xbf16, #tpu.memory_space<vmem>>, vector<24x384xbf16>,
    return
  }
  func.func @transform_0(%arg0: i32) -> (i32, i32) {
    %c0_i32 = arith.constant 0 : i32
    %c0_i32_0 = arith.constant 0 : i32
    return %arg0, %c0_i32 : i32, i32
  }
  func.func @transform_1(%arg0: i32) -> (i32, i32) {
    %c0_i32 = arith.constant 0 : i32
    %c0_i32_0 = arith.constant 0 : i32
    %c0_i32_1 = arith.constant 0 : i32
    return %c0_i32, %c0_i32_0 : i32, i32
  }
  func.func @transform_2(%arg0: i32) -> (i32, i32) {
    %c0_i32 = arith.constant 0 : i32
    %c0_i32_0 = arith.constant 0 : i32
    %c0_i32_1 = arith.constant 0 : i32
    return %c0_i32, %c0_i32_0 : i32, i32
  }
  func.func @transform_3(%arg0: i32) -> (i32, i32) {
    %c0_i32 = arith.constant 0 : i32
    %c0_i32_0 = arith.constant 0 : i32
    return %arg0, %c0_i32 : i32, i32
  }
}

module attributes {stable_mosaic.version = 11 : i64} {
  func.func @_mm_bias_lrelu_kernel(%arg0: i32, %arg1: memref<24x384xbf16, #tpu.memory_space<vmem>>, %arg2: memref<384x384xbf16, #tpu.memory_space<vmem>>, %arg3: memref<1x384xf32, #tpu.memory_space<vmem>>, %arg4: memref<24x384xf32, #tpu.memory_space<vmem>>) attributes {dimension_semantics = [#tpu.dimension_semantics<parallel>], iteration_bounds = array<i64: 2>, scalar_prefetch = 0 : i64, scratch_operands = 0 : i64, tpu.core_type = #tpu.core_type<tc>, window_params = [{transform_indices = @transform_0, window_bounds = array<i64: 24, 384>}, {pipeline_mode = #tpu.pipeline_mode<synchronous>, transform_indices = @transform_1, window_bounds = array<i64: 384, 384>}, {pipeline_mode = #tpu.pipeline_mode<synchronous>, transform_indices = @transform_2, window_bounds = array<i64: 1, 384>}, {transform_indices = @transform_3, window_bounds = array<i64: 24, 384>}]} {
    %c0 = arith.constant 0 : index
    %c0_0 = arith.constant 0 : index
    %0 = vector.load %arg1[%c0, %c0_0] : memref<24x384xbf16, #tpu.memory_space<vmem>>, vector<24x384xbf16>
    %c0_1 = arith.constant 0 : index
    %c0_2 = arith.constant 0 : index
    %1 = vector.load %arg2[%c0_1, %c0_2] : memref<384x384xbf16, #tpu.memory_space<vmem>>, vector<384x384xbf16>
    %cst = arith.constant dense<0.000000e+00> : vector<24x384xf32>
    %2 = tpu.matmul %0, %1, %cst {dimension_numbers = #tpu.dot_dimension_numbers<[1], [0], [0], [1], [0, 0, 1, 1], [], []>} : vector<24x384xbf16>, vector<384x384xbf16>, vector<24x384xf32> -> vector<24x384xf32>
    %c0_3 = arith.constant 0 : index
    %c0_4 = arith.constant 0 : index
    %3 = vector.load %arg3[%c0_3, %c0_4] : memref<1x384xf32, #tpu.memory_space<vmem>>, vector<1x384xf32>
    %4 = vector.broadcast %3 : vector<1x384xf32> to vector<24x384xf32>
    %5 = arith.addf %2, %4 : vector<24x384xf32>
    %cst_5 = arith.constant 0.000000e+00 : f32
    %6 = vector.broadcast %cst_5 : f32 to vector<24x384xf32>
    %7 = arith.cmpf ogt, %5, %6 : vector<24x384xf32>
    %cst_6 = arith.constant 2.000000e-01 : f32
    %8 = vector.broadcast %cst_6 : f32 to vector<24x384xf32>
    %9 = arith.mulf %8, %5 : vector<24x384xf32>
    %10 = arith.select %7, %5, %9 : vector<24x384xi1>, vector<24x384xf32>
    %c0_7 = arith.constant 0 : index
    %c0_8 = arith.constant 0 : index
    %11 = vector.load %arg4[%c0_7, %c0_8] : memref<24x384xf32, #tpu.memory_space<vmem>>, vector<24x384xf32>
    tpu.vector_store %arg4[%c0_7, %c0_8], %10 {strides = array<i32>} : memref<24x384xf32, #tpu.memory_space<vmem>>, vector<24x384xf32>,
    return
  }
  func.func @transform_0(%arg0: i32) -> (i32, i32) {
    %c0_i32 = arith.constant 0 : i32
    %c0_i32_0 = arith.constant 0 : i32
    return %arg0, %c0_i32 : i32, i32
  }
  func.func @transform_1(%arg0: i32) -> (i32, i32) {
    %c0_i32 = arith.constant 0 : i32
    %c0_i32_0 = arith.constant 0 : i32
    %c0_i32_1 = arith.constant 0 : i32
    return %c0_i32, %c0_i32_0 : i32, i32
  }
  func.func @transform_2(%arg0: i32) -> (i32, i32) {
    %c0_i32 = arith.constant 0 : i32
    %c0_i32_0 = arith.constant 0 : i32
    %c0_i32_1 = arith.constant 0 : i32
    return %c0_i32, %c0_i32_0 : i32, i32
  }
  func.func @transform_3(%arg0: i32) -> (i32, i32) {
    %c0_i32 = arith.constant 0 : i32
    %c0_i32_0 = arith.constant 0 : i32
    return %arg0, %c0_i32 : i32, i32
  }
}

</mosaic_0001>

<llo_original>
// kernel: tile.23
$region0: #{tile.23}
  #allocation0 [shape = 's32[1]{0}', space=sflag, size = 0x4, scoped, tag = 'scoped memory for tile.23']
  %s0 = inlined_call_operand.vmem [shape: f32[16], index: 0, kind: input, shape index: {}]
  %s1 = inlined_call_operand.vmem [shape: f32[8,16], index: 1, kind: output, shape index: {}]
  // Predicated region
  $region2: #{tile.23} parent=0 // pred_check
    _
  $region3: #{tile.23} parent=0 // pred_check_branch
    %3 = sbr.rel (0) target = $region5
  $region4: #{tile.23} parent=0 // pred_region
    _
  $region5: #{tile.23} parent=0 // pred_fallthru
    _
  %v4 = vld [vmem:[%s0] ss:$0 sm:$0xff]
  %5 = vst [vmem:[%s1] sm:$0xff] %v4

// kernel: tile.24
$region0: #{tile.24}
  %s0 = inlined_call_operand.vmem [shape: f32[8,16], index: 0, kind: input, shape index: {}]
  %s1 = inlined_call_operand.vmem [shape: f32[1,128], index: 1, kind: output, shape index: {}]
  $region1: #{tile.24} parent=0
    #allocation0 [shape = 'u8[4096]{0}', space=vmem, size = 0x1000, scoped, tag = 'scoped mem for output reshape']
    %v2 = vld [vmem:[%s0] sm:$0x1]
    %vm3 = vcmask 130048
    %4 = vst.msk [vmem:[#allocation0] sm:$0x1] %vm3, %v2
    %s5 = scalar_lea.vmem %s0, 7
    %v6 = vld [vmem:[%s5] sm:$0x1]
    %7 = vrot.lane.b32.xlu0 %v6, 112
    %v8 = vpop.permute.xlu0 %7
    %vm9 = vcmask 1048448
    %10 = vst.msk [vmem:[#allocation0] sm:$0x1] %vm9, %v8
    %s11 = scalar_lea.vmem %s0, 6
    %v12 = vld [vmem:[%s11] sm:$0x1]
    %13 = vrot.lane.b32.xlu0 %v12, 96
    %v14 = vpop.permute.xlu0 %13
    %vm15 = vcmask 917248
    %16 = vst.msk [vmem:[#allocation0] sm:$0x1] %vm15, %v14
    %s17 = scalar_lea.vmem %s0, 5
    %v18 = vld [vmem:[%s17] sm:$0x1]
    %19 = vrot.lane.b32.xlu0 %v18, 80
    %v20 = vpop.permute.xlu0 %19
    %vm21 = vcmask 786048
    %22 = vst.msk [vmem:[#allocation0] sm:$0x1] %vm21, %v20
    %s23 = scalar_lea.vmem %s0, 4
    %v24 = vld [vmem:[%s23] sm:$0x1]
    %25 = vrot.lane.b32.xlu0 %v24, 64
    %v26 = vpop.permute.xlu0 %25
    %vm27 = vcmask 654848
    %28 = vst.msk [vmem:[#allocation0] sm:$0x1] %vm27, %v26
    %s29 = scalar_lea.vmem %s0, 3
    %v30 = vld [vmem:[%s29] sm:$0x1]
    %31 = vrot.lane.b32.xlu0 %v30, 48
    %v32 = vpop.permute.xlu0 %31
    %vm33 = vcmask 523648
    %34 = vst.msk [vmem:[#allocation0] sm:$0x1] %vm33, %v32
    %s35 = scalar_lea.vmem %s0, 2
    %v36 = vld [vmem:[%s35] sm:$0x1]
    %37 = vrot.lane.b32.xlu0 %v36, 32
    %v38 = vpop.permute.xlu0 %37
    %vm39 = vcmask 392448
    %40 = vst.msk [vmem:[#allocation0] sm:$0x1] %vm39, %v38
    %s41 = scalar_lea.vmem %s0, 1
    %v42 = vld [vmem:[%s41] sm:$0x1]
    %43 = vrot.lane.b32.xlu0 %v42, 16
    %v44 = vpop.permute.xlu0 %43
    %vm45 = vcmask 261248
    %46 = vst.msk [vmem:[#allocation0] sm:$0x1] %vm45, %v44
    %s48 = sshllo.u32 0, 1
    %v50 = vld [vmem:[#allocation0] sm:%s48]
    %s51 = sshllo.u32 0, 1
    %52 = vst [vmem:[%s1] sm:%s51] %v50

// kernel: sav_concat.4
$region0: #{sav_concat.4}
  #allocation0 [shape = 'u32[]', space=smem, size = 0x4, offset = 0x4, fixed_abs, tag = 'smem constant byte address 0x4 - core index']
  #allocation1 [shape = 'u32[144,128]{1,0:T(1,128)}', space=vmem, size = 0x12000, scoped, tag = 'internal scratch']
  %s0 = inlined_call_operand.vmem [shape: bf16[144,128], index: 0, kind: input, shape index: {}]
  %s1 = inlined_call_operand.vmem [shape: bf16[384,128], index: 1, kind: input, shape index: {}]
  %s2 = inlined_call_operand.vmem [shape: f32[1,128], index: 2, kind: input, shape index: {}]
  %s3 = inlined_call_operand.vmem [shape: bf16[144,128], index: 3, kind: output, shape index: {}]
  %s4 = sld [smem:[#allocation0]]
  $region45: #{sav_concat.4} parent=0
    _
  %s6 = ssub.s32 1, %s4
  %s7 = scalar_select 0, %s6, %s4
  loop: start=0, step=1, limit=4
  $region2: #{sav_concat.4} parent=0 // loop_pre_header
    _
  $region3: #{sav_concat.4} parent=0 // loop_header
    %s9 = sphi 0, %s13
    %p10 = scmp.ge.s32.totalorder %s9, 4
    %s19 = sphi 0, %s21
    %s22 = sphi 0, %s19
    %s23 = sphi 0, %s22
    %s39 = sphi 0, %s23
    %s43 = sphi 0, %s43
    %s45 = sphi 0, %s43
    %s46 = sphi 0, %s45
    %s60 = sphi 0, %s46
    %s64 = sphi 0, %s64
    %s66 = sphi 0, %s64
    %s67 = sphi 0, %s66
    %s81 = sphi 0, %s67
    %s87 = sphi 0, %s89
    %s90 = sphi 0, %s87
    %s91 = sphi 0, %s90
    %s107 = sphi 0, %s91
  $region4: #{sav_concat.4} parent=0 // loop_header_branch
    %12 = sbr.rel (%p10) target = $region8
  $region5: #{sav_concat.4} parent=0 // loop_body
    %s14 = ssub.s32 %s9, 1
    %s15 = ssub.s32 %s9, 2
    %s16 = sadd.s32 %s9, 1
    %s17 = ssub.s32 %s9, %s16
    %p18 = scmp.eq.s32.totalorder %s17, 0
    %s20 = sadd.s32 %s19, 1
    %s21 = scalar_select %p18, %s19, %s20
    %p24 = pneg %p18
    %p25 = scmp.eq.s32.totalorder %s9, 1
    %p26 = por %p24, %p25
    %p27 = scmp.ne.s32.totalorder %s19, %s22
    %p28 = scmp.eq.s32.totalorder %s9, 0
    %p29 = por %p27, %p28
    %p30 = scmp.ne.s32.totalorder %s19, %s22
    %p31 = scmp.eq.s32.totalorder %s14, 1
    %p32 = por %p30, %p31
    %p33 = scmp.ne.s32.totalorder %s22, %s23
    %p34 = scmp.eq.s32.totalorder %s14, 0
    %p35 = por %p33, %p34
    %p36 = scmp.ne.s32.totalorder %s22, %s23
    %p37 = scmp.eq.s32.totalorder %s15, 1
    %p38 = por %p36, %p37
    %p40 = scmp.ne.s32.totalorder %s23, %s39
    %p41 = scmp.eq.s32.totalorder %s15, 0
    %p42 = por %p40, %p41
    %s44 = sadd.s32 %s43, 1
    %p47 = scmp.eq.s32.totalorder %s9, 1
    %p48 = scmp.ne.s32.totalorder %s43, %s45
    %p49 = scmp.eq.s32.totalorder %s9, 0
    %p50 = por %p48, %p49
    %p51 = scmp.ne.s32.totalorder %s43, %s45
    %p52 = scmp.eq.s32.totalorder %s14, 1
    %p53 = por %p51, %p52
    %p54 = scmp.ne.s32.totalorder %s45, %s46
    %p55 = scmp.eq.s32.totalorder %s14, 0
    %p56 = por %p54, %p55
    %p57 = scmp.ne.s32.totalorder %s45, %s46
    %p58 = scmp.eq.s32.totalorder %s15, 1
    %p59 = por %p57, %p58
    %p61 = scmp.ne.s32.totalorder %s46, %s60
    %p62 = scmp.eq.s32.totalorder %s15, 0
    %p63 = por %p61, %p62
    %s65 = sadd.s32 %s64, 1
    %p68 = scmp.eq.s32.totalorder %s9, 1
    %p69 = scmp.ne.s32.totalorder %s64, %s66
    %p70 = scmp.eq.s32.totalorder %s9, 0
    %p71 = por %p69, %p70
    %p72 = scmp.ne.s32.totalorder %s64, %s66
    %p73 = scmp.eq.s32.totalorder %s14, 1
    %p74 = por %p72, %p73
    %p75 = scmp.ne.s32.totalorder %s66, %s67
    %p76 = scmp.eq.s32.totalorder %s14, 0
    %p77 = por %p75, %p76
    %p78 = scmp.ne.s32.totalorder %s66, %s67
    %p79 = scmp.eq.s32.totalorder %s15, 1
    %p80 = por %p78, %p79
    %p82 = scmp.ne.s32.totalorder %s67, %s81
    %p83 = scmp.eq.s32.totalorder %s15, 0
    %p84 = por %p82, %p83
    %s85 = ssub.s32 %s9, %s16
    %p86 = scmp.eq.s32.totalorder %s85, 0
    %s88 = sadd.s32 %s87, 1
    %s89 = scalar_select %p86, %s87, %s88
    %p92 = pneg %p86
    %p93 = scmp.eq.s32.totalorder %s9, 1
    %p94 = por %p92, %p93
    %p95 = scmp.ne.s32.totalorder %s87, %s90
    %p96 = scmp.eq.s32.totalorder %s9, 0
    %p97 = por %p95, %p96
    %p98 = scmp.ne.s32.totalorder %s87, %s90
    %p99 = scmp.eq.s32.totalorder %s14, 1
    %p100 = por %p98, %p99
    %p101 = scmp.ne.s32.totalorder %s90, %s91
    %p102 = scmp.eq.s32.totalorder %s14, 0
    %p103 = por %p101, %p102
    %p104 = scmp.ne.s32.totalorder %s90, %s91
    %p105 = scmp.eq.s32.totalorder %s15, 1
    %p106 = por %p104, %p105
    %p108 = scmp.ne.s32.totalorder %s91, %s107
    %p109 = scmp.eq.s32.totalorder %s15, 0
    %p110 = por %p108, %p109
    %p111 = scmp.le.s32.totalorder 1, %s9
    %p112 = scmp.lt.s32.totalorder %s9, 3
    %p113 = pnand %p111, %p112
    %p114 = pneg %p113
    // Predicated region
    $region9: #{sav_concat.4} parent=5 // pred_check
      _
    $region10: #{sav_concat.4} parent=5 // pred_check_branch
      %116 = sbr.rel (%p113) target = $region12
    $region11: #{sav_concat.4} parent=5 // pred_region
      %s117 = ssub.s32 %s9, 1
      // Predicated region
      $region13: #{sav_concat.4} parent=11 // pred_check
        %p118 = pneg %p56
      $region14: #{sav_concat.4} parent=11 // pred_check_branch
        %120 = sbr.rel (%p118) target = $region16
      $region15: #{sav_concat.4} parent=11 // pred_region
        _
      $region16: #{sav_concat.4} parent=11 // pred_fallthru
        _
      // Predicated region
      $region17: #{sav_concat.4} parent=11 // pred_check
        %p121 = pneg %p77
      $region18: #{sav_concat.4} parent=11 // pred_check_branch
        %123 = sbr.rel (%p121) target = $region20
      $region19: #{sav_concat.4} parent=11 // pred_region
        _
      $region20: #{sav_concat.4} parent=11 // pred_fallthru
        _
    $region12: #{sav_concat.4} parent=5 // pred_fallthru
      _
    %p124 = scmp.lt.s32.totalorder %s9, 2
    // Predicated region
    $region21: #{sav_concat.4} parent=5 // pred_check
      %p125 = pneg %p124
    $region22: #{sav_concat.4} parent=5 // pred_check_branch
      %127 = sbr.rel (%p125) target = $region24
    $region23: #{sav_concat.4} parent=5 // pred_region
      // Predicated region
      $region25: #{sav_concat.4} parent=23 // pred_check
        %p128 = pneg %p29
      $region26: #{sav_concat.4} parent=23 // pred_check_branch
        %130 = sbr.rel (%p128) target = $region28
      $region27: #{sav_concat.4} parent=23 // pred_region
        %s131 = smul.u32 9, %s9
        %p132 = scmp.lt.s32.totalorder %s131, 17
        %s133 = scalar_select %p132, %s131, 17
        %s134 = smul.addr %s133, 4
        %s135 = scalar_lea.vmem %s0, %s134
        %s136 = smul.u32 9, %s9
      $region28: #{sav_concat.4} parent=23 // pred_fallthru
        _
    $region24: #{sav_concat.4} parent=5 // pred_fallthru
      _
    %p137 = scmp.le.s32.totalorder 1, %s9
    %p138 = scmp.lt.s32.totalorder %s9, 3
    %p139 = pnand %p137, %p138
    %p140 = pneg %p139
    // Predicated region
    $region29: #{sav_concat.4} parent=5 // pred_check
      _
    $region30: #{sav_concat.4} parent=5 // pred_check_branch
      %142 = sbr.rel (%p139) target = $region32
    $region31: #{sav_concat.4} parent=5 // pred_region
      %s143 = ssub.s32 %s9, 1
      %s144 = smul.u32 9, %s14
      %p145 = scmp.lt.s32.totalorder %s144, 17
      %s146 = scalar_select %p145, %s144, 17
      %s147 = smul.addr %s146, 4
      %s148 = scalar_lea.vmem %s0, %s147
      %p149 = pneg %p35
      %p150 = pneg %p32
      %p151 = pneg %p56
      %p152 = pneg %p53
      %p153 = pneg %p77
      %p154 = pneg %p74
      %p155 = pneg %p103
      %p156 = pneg %p100
      %s157 = smul.u32 9, %s14
      %p158 = scmp.lt.s32.totalorder %s157, 17
      %s159 = scalar_select %p158, %s157, 17
      %s160 = smul.addr %s159, 4
      %s161 = scalar_lea.vmem %s3, %s160
      %s162 = smul.u32 9, %s14
      %p163 = scmp.lt.s32.totalorder %s162, 17
      %s164 = scalar_select %p163, %s162, 17
      %s165 = smul.addr %s164, 4
      %s166 = scalar_lea.vmem %s0, %s165
      %s167 = smul.u32 9, %s14
      %s168 = smul.u32 9, %s14
      %p169 = scmp.lt.s32.totalorder %s168, 17
      %s170 = scalar_select %p169, %s168, 17
      %s171 = smul.addr %s170, 4
      %s172 = scalar_lea.vmem %s3, %s171
      %s173 = smul.u32 9, %s14
      %v175 = vld [vmem:[%s166] sm:$0xf]
      %v176 = vld [vmem:[%s166 + $0x4] sm:$0xf]
      %v177 = vld [vmem:[%s166 + $0x8] sm:$0xf]
      %v178 = vld [vmem:[%s166 + $0xc] sm:$0xf]
      %v179 = vld [vmem:[%s166 + $0x10] sm:$0xf]
      %v180 = vld [vmem:[%s166 + $0x14] sm:$0xf]
      %v181 = vld [vmem:[%s166 + $0x18] sm:$0xf]
      %v182 = vld [vmem:[%s166 + $0x1c] sm:$0xf]
      %v183 = vunpack.c.l.bf16 %v175
      %v184 = vunpack.c.l.bf16 %v176
      %v185 = vunpack.c.l.bf16 %v177
      %v186 = vunpack.c.l.bf16 %v178
      %v187 = vunpack.c.l.bf16 %v179
      %v188 = vunpack.c.l.bf16 %v180
      %v189 = vunpack.c.l.bf16 %v181
      %v190 = vunpack.c.l.bf16 %v182
      %v191 = vlaneseq
      %v192 = vshrl.u32 %v191, 7
      %v193 = vadd.s32 %v192, 8
      %v194 = vadd.s32 %v192, 16
      %v195 = vadd.s32 %v192, 24
      %v196 = vadd.s32 %v192, 32
      %v197 = vadd.s32 %v192, 40
      %v198 = vadd.s32 %v192, 48
      %v199 = vadd.s32 %v192, 56
      %vm200 = vcmp.lt.s32.totalorder %v192, 0
      %v201 = vsub.s32 0, %v192
      %v202 = vsel %vm200, %v201, %v192
      %v203 = vshrl.u32 %v202, 3
      %v204 = vand.u32 %v202, 7
      %v205 = vsub.s32 0, %v204
      %v206 = vsel %vm200, %v205, %v204
      %vm207 = vcmp.lt.s32.totalorder %v193, 0
      %v208 = vsub.s32 0, %v193
      %v209 = vsel %vm207, %v208, %v193
      %v210 = vshrl.u32 %v209, 3
      %v211 = vand.u32 %v209, 7
      %v212 = vsub.s32 0, %v211
      %v213 = vsel %vm207, %v212, %v211
      %vm214 = vcmp.lt.s32.totalorder %v194, 0
      %v215 = vsub.s32 0, %v194
      %v216 = vsel %vm214, %v215, %v194
      %v217 = vshrl.u32 %v216, 3
      %v218 = vand.u32 %v216, 7
      %v219 = vsub.s32 0, %v218
      %v220 = vsel %vm214, %v219, %v218
      %vm221 = vcmp.lt.s32.totalorder %v195, 0
      %v222 = vsub.s32 0, %v195
      %v223 = vsel %vm221, %v222, %v195
      %v224 = vshrl.u32 %v223, 3
      %v225 = vand.u32 %v223, 7
      %v226 = vsub.s32 0, %v225
      %v227 = vsel %vm221, %v226, %v225
      %vm228 = vcmp.lt.s32.totalorder %v196, 0
      %v229 = vsub.s32 0, %v196
      %v230 = vsel %vm228, %v229, %v196
      %v231 = vshrl.u32 %v230, 3
      %v232 = vand.u32 %v230, 7
      %v233 = vsub.s32 0, %v232
      %v234 = vsel %vm228, %v233, %v232
      %vm235 = vcmp.lt.s32.totalorder %v197, 0
      %v236 = vsub.s32 0, %v197
      %v237 = vsel %vm235, %v236, %v197
      %v238 = vshrl.u32 %v237, 3
      %v239 = vand.u32 %v237, 7
      %v240 = vsub.s32 0, %v239
      %v241 = vsel %vm235, %v240, %v239
      %vm242 = vcmp.lt.s32.totalorder %v198, 0
      %v243 = vsub.s32 0, %v198
      %v244 = vsel %vm242, %v243, %v198
      %v245 = vshrl.u32 %v244, 3
      %v246 = vand.u32 %v244, 7
      %v247 = vsub.s32 0, %v246
      %v248 = vsel %vm242, %v247, %v246
      %vm249 = vcmp.lt.s32.totalorder %v199, 0
      %v250 = vsub.s32 0, %v199
      %v251 = vsel %vm249, %v250, %v199
      %v252 = vshrl.u32 %v251, 3
      %v253 = vand.u32 %v251, 7
      %v254 = vsub.s32 0, %v253
      %v255 = vsel %vm249, %v254, %v253
      %vm256 = vcmp.ne.s32.totalorder %v206, 0
      %vm257 = vcmp.ne.s32.totalorder %v213, 0
      %vm258 = vcmp.ne.s32.totalorder %v220, 0
      %vm259 = vcmp.ne.s32.totalorder %v227, 0
      %vm260 = vcmp.ne.s32.totalorder %v234, 0
      %vm261 = vcmp.ne.s32.totalorder %v241, 0
      %vm262 = vcmp.ne.s32.totalorder %v248, 0
      %vm263 = vcmp.ne.s32.totalorder %v255, 0
      %vm264 = vcmp.lt.s32.totalorder %v206, 0
      %vm265 = vcmp.lt.s32.totalorder %v213, 0
      %vm266 = vcmp.lt.s32.totalorder %v220, 0
      %vm267 = vcmp.lt.s32.totalorder %v227, 0
      %vm268 = vcmp.lt.s32.totalorder %v234, 0
      %vm269 = vcmp.lt.s32.totalorder %v241, 0
      %vm270 = vcmp.lt.s32.totalorder %v248, 0
      %vm271 = vcmp.lt.s32.totalorder %v255, 0
      %vm272 = vmand %vm264, %vm256
      %vm273 = vmand %vm265, %vm257
      %vm274 = vmand %vm266, %vm258
      %vm275 = vmand %vm267, %vm259
      %vm276 = vmand %vm268, %vm260
      %vm277 = vmand %vm269, %vm261
      %vm278 = vmand %vm270, %vm262
      %vm279 = vmand %vm271, %vm263
      %v280 = vadd.s32 %v206, 8
      %v281 = vadd.s32 %v213, 8
      %v282 = vadd.s32 %v220, 8
      %v283 = vadd.s32 %v227, 8
      %v284 = vadd.s32 %v234, 8
      %v285 = vadd.s32 %v241, 8
      %v286 = vadd.s32 %v248, 8
      %v287 = vadd.s32 %v255, 8
      %v288 = vsel %vm272, %v280, %v206
      %v289 = vsel %vm273, %v281, %v213
      %v290 = vsel %vm274, %v282, %v220
      %v291 = vsel %vm275, %v283, %v227
      %v292 = vsel %vm276, %v284, %v234
      %v293 = vsel %vm277, %v285, %v241
      %v294 = vsel %vm278, %v286, %v248
      %v295 = vsel %vm279, %v287, %v255
      %v296 = vrot.slane %v183, 7
      %v297 = vrot.slane %v184, 7
      %v298 = vrot.slane %v185, 7
      %v299 = vrot.slane %v186, 7
      %v300 = vrot.slane %v187, 7
      %v301 = vrot.slane %v188, 7
      %v302 = vrot.slane %v189, 7
      %v303 = vrot.slane %v190, 7
      %vm304 = vcmp.lt.s32.totalorder %v192, 1
      %v305 = vsel %vm304, %v302, %v303
      %v306 = vsel %vm304, %v301, %v302
      %v307 = vsel %vm304, %v300, %v301
      %v308 = vsel %vm304, %v299, %v300
      %v309 = vsel %vm304, %v298, %v299
      %v310 = vsel %vm304, %v297, %v298
      %v311 = vsel %vm304, %v296, %v297
      %v312 = vsel %vm304, %v303, %v296
      %vm313 = vcmp.eq.s32.totalorder %v288, 0
      %vm314 = vcmp.eq.s32.totalorder %v289, 0
      %vm315 = vcmp.eq.s32.totalorder %v290, 0
      %vm316 = vcmp.eq.s32.totalorder %v291, 0
      %vm317 = vcmp.eq.s32.totalorder %v292, 0
      %vm318 = vcmp.eq.s32.totalorder %v293, 0
      %vm319 = vcmp.eq.s32.totalorder %v294, 0
      %vm320 = vcmp.eq.s32.totalorder %v295, 0
      %v321 = vsel %vm313, 1, 0
      %v322 = vsel %vm314, 1, 0
      %v323 = vsel %vm315, 1, 0
      %v324 = vsel %vm316, 1, 0
      %v325 = vsel %vm317, 1, 0
      %v326 = vsel %vm318, 1, 0
      %v327 = vsel %vm319, 1, 0
      %v328 = vsel %vm320, 1, 0
      %vm329 = vcmp.eq.s32.totalorder %v321, 1
      %vm330 = vcmp.eq.s32.totalorder %v322, 1
      %vm331 = vcmp.eq.s32.totalorder %v323, 1
      %vm332 = vcmp.eq.s32.totalorder %v324, 1
      %vm333 = vcmp.eq.s32.totalorder %v325, 1
      %vm334 = vcmp.eq.s32.totalorder %v326, 1
      %vm335 = vcmp.eq.s32.totalorder %v327, 1
      %vm336 = vcmp.eq.s32.totalorder %v328, 1
      %v337 = vsel %vm329, 0.0, %v312
      %v338 = vsel %vm330, 0.0, %v311
      %v339 = vsel %vm331, 0.0, %v310
      %v340 = vsel %vm332, 0.0, %v309
      %v341 = vsel %vm333, 0.0, %v308
      %v342 = vsel %vm334, 0.0, %v307
      %v343 = vsel %vm335, 0.0, %v306
      %v344 = vsel %vm336, 0.0, %v305
      %v345 = vrot.slane %v183, 1
      %v346 = vrot.slane %v184, 1
      %v347 = vrot.slane %v185, 1
      %v348 = vrot.slane %v186, 1
      %v349 = vrot.slane %v187, 1
      %v350 = vrot.slane %v188, 1
      %v351 = vrot.slane %v189, 1
      %v352 = vrot.slane %v190, 1
      %vm353 = vcmp.lt.s32.totalorder %v192, 7
      %v354 = vsel %vm353, %v351, %v352
      %v355 = vsel %vm353, %v350, %v351
      %v356 = vsel %vm353, %v349, %v350
      %v357 = vsel %vm353, %v348, %v349
      %v358 = vsel %vm353, %v347, %v348
      %v359 = vsel %vm353, %v346, %v347
      %v360 = vsel %vm353, %v345, %v346
      %v361 = vsel %vm353, %v352, %v345
      %vm362 = vcmp.eq.s32.totalorder %v288, 7
      %vm363 = vcmp.eq.s32.totalorder %v289, 7
      %vm364 = vcmp.eq.s32.totalorder %v290, 7
      %vm365 = vcmp.eq.s32.totalorder %v291, 7
      %vm366 = vcmp.eq.s32.totalorder %v292, 7
      %vm367 = vcmp.eq.s32.totalorder %v293, 7
      %vm368 = vcmp.eq.s32.totalorder %v294, 7
      %vm369 = vcmp.eq.s32.totalorder %v295, 7
      %v370 = vsel %vm362, 1, 0
      %v371 = vsel %vm363, 1, 0
      %v372 = vsel %vm364, 1, 0
      %v373 = vsel %vm365, 1, 0
      %v374 = vsel %vm366, 1, 0
      %v375 = vsel %vm367, 1, 0
      %v376 = vsel %vm368, 1, 0
      %v377 = vsel %vm369, 1, 0
      %vm378 = vcmp.eq.s32.totalorder %v370, 1
      %vm379 = vcmp.eq.s32.totalorder %v371, 1
      %vm380 = vcmp.eq.s32.totalorder %v372, 1
      %vm381 = vcmp.eq.s32.totalorder %v373, 1
      %vm382 = vcmp.eq.s32.totalorder %v374, 1
      %vm383 = vcmp.eq.s32.totalorder %v375, 1
      %vm384 = vcmp.eq.s32.totalorder %v376, 1
      %vm385 = vcmp.eq.s32.totalorder %v377, 1
      %v386 = vsel %vm378, 0.0, %v360
      %v387 = vsel %vm379, 0.0, %v359
      %v388 = vsel %vm380, 0.0, %v358
      %v389 = vsel %vm381, 0.0, %v357
      %v390 = vsel %vm382, 0.0, %v356
      %v391 = vsel %vm383, 0.0, %v355
      %v392 = vsel %vm384, 0.0, %v354
      %v393 = vsel %vm385, 0.0, %v361
      %v394 = vpack.c.bf16 %v338, %v337
      %v395 = vpack.c.bf16 %v184, %v183
      %v396 = vpack.c.bf16 %v387, %v386
      %v397 = vpack.c.bf16 %v340, %v339
      %v398 = vpack.c.bf16 %v186, %v185
      %v399 = vpack.c.bf16 %v389, %v388
      %v400 = vpack.c.bf16 %v342, %v341
      %v401 = vpack.c.bf16 %v188, %v187
      %v402 = vpack.c.bf16 %v391, %v390
      %v403 = vpack.c.bf16 %v344, %v343
      %v404 = vpack.c.bf16 %v190, %v189
      %v405 = vpack.c.bf16 %v393, %v392
      %v406 = vld [vmem:[%s1] sm:$0xf]
      %v407 = vld [vmem:[%s1 + $0x4] sm:$0xf]
      %v408 = vld [vmem:[%s1 + $0x8] sm:$0xf]
      %v409 = vld [vmem:[%s1 + $0xc] sm:$0xf]
      %v410 = vld [vmem:[%s1 + $0x10] sm:$0xf]
      %v411 = vld [vmem:[%s1 + $0x14] sm:$0xf]
      %v412 = vld [vmem:[%s1 + $0x18] sm:$0xf]
      %v413 = vld [vmem:[%s1 + $0x1c] sm:$0xf]
      %v414 = vld [vmem:[%s1 + $0x20] sm:$0xf]
      %v415 = vld [vmem:[%s1 + $0x24] sm:$0xf]
      %v416 = vld [vmem:[%s1 + $0x28] sm:$0xf]
      %v417 = vld [vmem:[%s1 + $0x2c] sm:$0xf]
      %v418 = vld [vmem:[%s1 + $0x30] sm:$0xf]
      %v419 = vld [vmem:[%s1 + $0x34] sm:$0xf]
      %v420 = vld [vmem:[%s1 + $0x38] sm:$0xf]
      %v421 = vld [vmem:[%s1 + $0x3c] sm:$0xf]
      %v422 = vld [vmem:[%s1 + $0x40] sm:$0xf]
      %v423 = vld [vmem:[%s1 + $0x44] sm:$0xf]
      %v424 = vld [vmem:[%s1 + $0x48] sm:$0xf]
      %v425 = vld [vmem:[%s1 + $0x4c] sm:$0xf]
      %v426 = vld [vmem:[%s1 + $0x50] sm:$0xf]
      %v427 = vld [vmem:[%s1 + $0x54] sm:$0xf]
      %v428 = vld [vmem:[%s1 + $0x58] sm:$0xf]
      %v429 = vld [vmem:[%s1 + $0x5c] sm:$0xf]
      %v430 = vld [vmem:[%s1 + $0x60] sm:$0xf]
      %v431 = vld [vmem:[%s1 + $0x64] sm:$0xf]
      %v432 = vld [vmem:[%s1 + $0x68] sm:$0xf]
      %v433 = vld [vmem:[%s1 + $0x6c] sm:$0xf]
      %v434 = vld [vmem:[%s1 + $0x70] sm:$0xf]
      %v435 = vld [vmem:[%s1 + $0x74] sm:$0xf]
      %v436 = vld [vmem:[%s1 + $0x78] sm:$0xf]
      %v437 = vld [vmem:[%s1 + $0x7c] sm:$0xf]
      %v438 = vld [vmem:[%s1 + $0x80] sm:$0xf]
      %v439 = vld [vmem:[%s1 + $0x84] sm:$0xf]
      %v440 = vld [vmem:[%s1 + $0x88] sm:$0xf]
      %v441 = vld [vmem:[%s1 + $0x8c] sm:$0xf]
      %v442 = vld [vmem:[%s1 + $0x90] sm:$0xf]
      %v443 = vld [vmem:[%s1 + $0x94] sm:$0xf]
      %v444 = vld [vmem:[%s1 + $0x98] sm:$0xf]
      %v445 = vld [vmem:[%s1 + $0x9c] sm:$0xf]
      %v446 = vld [vmem:[%s1 + $0xa0] sm:$0xf]
      %v447 = vld [vmem:[%s1 + $0xa4] sm:$0xf]
      %v448 = vld [vmem:[%s1 + $0xa8] sm:$0xf]
      %v449 = vld [vmem:[%s1 + $0xac] sm:$0xf]
      %v450 = vld [vmem:[%s1 + $0xb0] sm:$0xf]
      %v451 = vld [vmem:[%s1 + $0xb4] sm:$0xf]
      %v452 = vld [vmem:[%s1 + $0xb8] sm:$0xf]
      %v453 = vld [vmem:[%s1 + $0xbc] sm:$0xf]
      %v454 = vld [vmem:[%s2] sm:$0x1]
      %v456 = vlaneseq
      %v457 = vshrl.u32 %v456, 7
      %v458 = vsub.s32 0, %v457
      %v459 = vrot.slane %v454, %v458
      %v509 = vunpack.c.l.b16 %v406
      %v510 = vunpack.c.l.b16 %v407
      %v511 = vunpack.c.l.b16 %v408
      %v512 = vunpack.c.l.b16 %v409
      %v513 = vunpack.c.l.b16 %v410
      %v514 = vunpack.c.l.b16 %v411
      %v515 = vunpack.c.l.b16 %v412
      %v516 = vunpack.c.l.b16 %v413
      %v517 = vunpack.c.l.b16 %v414
      %v518 = vunpack.c.l.b16 %v415
      %v519 = vunpack.c.l.b16 %v416
      %v520 = vunpack.c.l.b16 %v417
      %v521 = vunpack.c.l.b16 %v418
      %v522 = vunpack.c.l.b16 %v419
      %v523 = vunpack.c.l.b16 %v420
      %v524 = vunpack.c.l.b16 %v421
      %v525 = vunpack.c.l.b16 %v422
      %v526 = vunpack.c.l.b16 %v423
      %v527 = vunpack.c.l.b16 %v424
      %v528 = vunpack.c.l.b16 %v425
      %v529 = vunpack.c.l.b16 %v426
      %v530 = vunpack.c.l.b16 %v427
      %v531 = vunpack.c.l.b16 %v428
      %v532 = vunpack.c.l.b16 %v429
      %v533 = vunpack.c.l.b16 %v430
      %v534 = vunpack.c.l.b16 %v431
      %v535 = vunpack.c.l.b16 %v432
      %v536 = vunpack.c.l.b16 %v433
      %v537 = vunpack.c.l.b16 %v434
      %v538 = vunpack.c.l.b16 %v435
      %v539 = vunpack.c.l.b16 %v436
      %v540 = vunpack.c.l.b16 %v437
      %v541 = vunpack.c.l.b16 %v438
      %v542 = vunpack.c.l.b16 %v439
      %v543 = vunpack.c.l.b16 %v440
      %v544 = vunpack.c.l.b16 %v441
      %v545 = vunpack.c.l.b16 %v442
      %v546 = vunpack.c.l.b16 %v443
      %v547 = vunpack.c.l.b16 %v444
      %v548 = vunpack.c.l.b16 %v445
      %v549 = vunpack.c.l.b16 %v446
      %v550 = vunpack.c.l.b16 %v447
      %v551 = vunpack.c.l.b16 %v448
      %v552 = vunpack.c.l.b16 %v449
      %v553 = vunpack.c.l.b16 %v450
      %v554 = vunpack.c.l.b16 %v451
      %v555 = vunpack.c.l.b16 %v452
      %v556 = vunpack.c.l.b16 %v453
      %v557 = vpack.c.b16 %v510, %v509
      %v558 = vpack.c.b16 %v512, %v511
      %v559 = vpack.c.b16 %v514, %v513
      %v560 = vpack.c.b16 %v516, %v515
      %v561 = vpack.c.b16 %v518, %v517
      %v562 = vpack.c.b16 %v520, %v519
      %v563 = vpack.c.b16 %v522, %v521
      %v564 = vpack.c.b16 %v524, %v523
      %v565 = vpack.c.b16 %v526, %v525
      %v566 = vpack.c.b16 %v528, %v527
      %v567 = vpack.c.b16 %v530, %v529
      %v568 = vpack.c.b16 %v532, %v531
      %v569 = vpack.c.b16 %v534, %v533
      %v570 = vpack.c.b16 %v536, %v535
      %v571 = vpack.c.b16 %v538, %v537
      %v572 = vpack.c.b16 %v540, %v539
      %v573 = vpack.c.b16 %v542, %v541
      %v574 = vpack.c.b16 %v544, %v543
      %v575 = vpack.c.b16 %v546, %v545
      %v576 = vpack.c.b16 %v548, %v547
      %v577 = vpack.c.b16 %v550, %v549
      %v578 = vpack.c.b16 %v552, %v551
      %v579 = vpack.c.b16 %v554, %v553
      %v580 = vpack.c.b16 %v556, %v555
      %605 = vmatprep.subr.bf16.mxu0 0
      %606 = vmatpush1.bf16.msra.mxu0 %v557
      %607 = vmatprep.subr.bf16.mxu0 0
      %608 = vmatpush1.bf16.msra.mxu0 %v558
      %609 = vmatprep.subr.bf16.mxu0 0
      %610 = vmatpush1.bf16.msra.mxu0 %v559
      %611 = vmatprep.subr.bf16.mxu0 0
      %612 = vmatpush1.bf16.msra.mxu0 %v560
      %613 = vmatprep.subr.bf16.mxu0 0
      %614 = vmatpush1.bf16.msra.mxu0 %v561
      %615 = vmatprep.subr.bf16.mxu0 0
      %616 = vmatpush1.bf16.msra.mxu0 %v562
      %617 = vmatprep.subr.bf16.mxu0 0
      %618 = vmatpush1.bf16.msra.mxu0 %v563
      %619 = vmatprep.subr.bf16.mxu0 0
      %620 = vmatpush1.bf16.msra.mxu0 %v564
      %621 = vmatprep.subr.bf16.mxu0 0
      %622 = vmatpush1.bf16.msra.mxu0 %v565
      %623 = vmatprep.subr.bf16.mxu0 0
      %624 = vmatpush1.bf16.msra.mxu0 %v566
      %625 = vmatprep.subr.bf16.mxu0 0
      %626 = vmatpush1.bf16.msra.mxu0 %v567
      %627 = vmatprep.subr.bf16.mxu0 0
      %628 = vmatpush1.bf16.msra.mxu0 %v568
      %629 = vmatprep.subr.bf16.mxu0 0
      %630 = vmatpush1.bf16.msra.mxu0 %v569
      %631 = vmatprep.subr.bf16.mxu0 0
      %632 = vmatpush1.bf16.msra.mxu0 %v570
      %633 = vmatprep.subr.bf16.mxu0 0
      %634 = vmatpush1.bf16.msra.mxu0 %v571
      %635 = vmatprep.subr.bf16.mxu0 0
      %636 = vmatpush1.bf16.msra.mxu0 %v572
      %637 = vmatprep.mubr.bf16.mxu0 %v395
      %638 = vmatmul.mubr.bf16.gmra.mrb[0].mxu0 %v394
      %v639 = vpop.f32.mrb[0].mxu0
      %v640 = vadd.f32 %v459, %v639
      %v641 = vpop.f32.mrb[0].mxu0
      %v642 = vpop.f32.mrb[0].mxu0
      %v643 = vadd.f32 %v459, %v642
      %v644 = vpop.f32.mrb[0].mxu0
      %645 = vmatprep.mubr.bf16.mxu0 %v398
      %646 = vmatmul.mubr.bf16.gmra.mrb[0].mxu0 %v397
      %v647 = vpop.f32.mrb[0].mxu0
      %v648 = vadd.f32 %v459, %v647
      %v649 = vpop.f32.mrb[0].mxu0
      %v650 = vpop.f32.mrb[0].mxu0
      %v651 = vadd.f32 %v459, %v650
      %v652 = vpop.f32.mrb[0].mxu0
      %653 = vmatprep.mubr.bf16.mxu0 %v401
      %654 = vmatmul.mubr.bf16.gmra.mrb[0].mxu0 %v400
      %v655 = vpop.f32.mrb[0].mxu0
      %v656 = vadd.f32 %v459, %v655
      %v657 = vpop.f32.mrb[0].mxu0
      %v658 = vpop.f32.mrb[0].mxu0
      %v659 = vadd.f32 %v459, %v658
      %v660 = vpop.f32.mrb[0].mxu0
      %661 = vmatprep.mubr.bf16.mxu0 %v404
      %662 = vmatmul.mubr.bf16.gmra.mrb[0].mxu0 %v403
      %v663 = vpop.f32.mrb[0].mxu0
      %v664 = vadd.f32 %v459, %v663
      %v665 = vpop.f32.mrb[0].mxu0
      %v666 = vpop.f32.mrb[0].mxu0
      %v667 = vadd.f32 %v459, %v666
      %v668 = vpop.f32.mrb[0].mxu0
      %669 = vdwg.mxu0
      %670 = vmatprep.subr.bf16.mxu0 0
      %671 = vmatpush1.bf16.msra.mxu0 %v573
      %672 = vmatprep.subr.bf16.mxu0 0
      %673 = vmatpush1.bf16.msra.mxu0 %v574
      %674 = vmatprep.subr.bf16.mxu0 0
      %675 = vmatpush1.bf16.msra.mxu0 %v575
      %676 = vmatprep.subr.bf16.mxu0 0
      %677 = vmatpush1.bf16.msra.mxu0 %v576
      %678 = vmatprep.subr.bf16.mxu0 0
      %679 = vmatpush1.bf16.msra.mxu0 %v577
      %680 = vmatprep.subr.bf16.mxu0 0
      %681 = vmatpush1.bf16.msra.mxu0 %v578
      %682 = vmatprep.subr.bf16.mxu0 0
      %683 = vmatpush1.bf16.msra.mxu0 %v579
      %684 = vmatprep.subr.bf16.mxu0 0
      %685 = vmatpush1.bf16.msra.mxu0 %v580
      %686 = vmatprep.subr.bf16.mxu0 0
      %687 = vmatpush1.bf16.msra.mxu0 0
      %688 = vmatprep.subr.bf16.mxu0 0
      %689 = vmatpush1.bf16.msra.mxu0 0
      %690 = vmatprep.subr.bf16.mxu0 0
      %691 = vmatpush1.bf16.msra.mxu0 0
      %692 = vmatprep.subr.bf16.mxu0 0
      %693 = vmatpush1.bf16.msra.mxu0 0
      %694 = vmatprep.subr.bf16.mxu0 0
      %695 = vmatpush1.bf16.msra.mxu0 0
      %696 = vmatprep.subr.bf16.mxu0 0
      %697 = vmatpush1.bf16.msra.mxu0 0
      %698 = vmatprep.subr.bf16.mxu0 0
      %699 = vmatpush1.bf16.msra.mxu0 0
      %700 = vmatprep.subr.bf16.mxu0 0
      %701 = vmatpush1.bf16.msra.mxu0 0
      %702 = vmatprep.mubr.bf16.mxu0 0
      %703 = vmatmul.mubr.bf16.gmra.mrb[0].mxu0 %v396
      %v704 = vpop.f32.mrb[0].mxu0
      %v705 = vadd.f32 %v640, %v704
      %v706 = vpop.f32.mrb[0].mxu0
      %v707 = vpop.f32.mrb[0].mxu0
      %v708 = vadd.f32 %v643, %v707
      %v709 = vpop.f32.mrb[0].mxu0
      %710 = vmatprep.mubr.bf16.mxu0 0
      %711 = vmatmul.mubr.bf16.gmra.mrb[0].mxu0 %v399
      %v712 = vpop.f32.mrb[0].mxu0
      %v713 = vadd.f32 %v648, %v712
      %v714 = vpop.f32.mrb[0].mxu0
      %v715 = vpop.f32.mrb[0].mxu0
      %v716 = vadd.f32 %v651, %v715
      %v717 = vpop.f32.mrb[0].mxu0
      %718 = vmatprep.mubr.bf16.mxu0 0
      %719 = vmatmul.mubr.bf16.gmra.mrb[0].mxu0 %v402
      %v720 = vpop.f32.mrb[0].mxu0
      %v721 = vadd.f32 %v656, %v720
      %v722 = vpop.f32.mrb[0].mxu0
      %v723 = vpop.f32.mrb[0].mxu0
      %v724 = vadd.f32 %v659, %v723
      %v725 = vpop.f32.mrb[0].mxu0
      %726 = vmatprep.mubr.bf16.mxu0 0
      %727 = vmatmul.mubr.bf16.gmra.mrb[0].mxu0 %v405
      %v728 = vpop.f32.mrb[0].mxu0
      %v729 = vadd.f32 %v664, %v728
      %v730 = vpop.f32.mrb[0].mxu0
      %v731 = vpop.f32.mrb[0].mxu0
      %v732 = vadd.f32 %v667, %v731
      %v733 = vpop.f32.mrb[0].mxu0
      %734 = vdwg.mxu0
      %vm735 = vcmp.gt.f32.partialorder %v705, 0.0
      %vm736 = vcmp.gt.f32.partialorder %v708, 0.0
      %vm737 = vcmp.gt.f32.partialorder %v713, 0.0
      %vm738 = vcmp.gt.f32.partialorder %v716, 0.0
      %vm739 = vcmp.gt.f32.partialorder %v721, 0.0
      %vm740 = vcmp.gt.f32.partialorder %v724, 0.0
      %vm741 = vcmp.gt.f32.partialorder %v729, 0.0
      %vm742 = vcmp.gt.f32.partialorder %v732, 0.0
      %v743 = vmul.f32 %v705, 0.2
      %v744 = vmul.f32 %v708, 0.2
      %v745 = vmul.f32 %v713, 0.2
      %v746 = vmul.f32 %v716, 0.2
      %v747 = vmul.f32 %v721, 0.2
      %v748 = vmul.f32 %v724, 0.2
      %v749 = vmul.f32 %v729, 0.2
      %v750 = vmul.f32 %v732, 0.2
      %v751 = vsel %vm735, %v705, %v743
      %v752 = vsel %vm736, %v708, %v744
      %v753 = vsel %vm737, %v713, %v745
      %v754 = vsel %vm738, %v716, %v746
      %v755 = vsel %vm739, %v721, %v747
      %v756 = vsel %vm740, %v724, %v748
      %v757 = vsel %vm741, %v729, %v749
      %v758 = vsel %vm742, %v732, %v750
      %v759 = vpack.c.bf16 %v752, %v751
      %v760 = vpack.c.bf16 %v754, %v753
      %v761 = vpack.c.bf16 %v756, %v755
      %v762 = vpack.c.bf16 %v758, %v757
      %v767 = vunpack.c.l.b16 %v759
      %v768 = vunpack.c.h.b16 %v759
      %v769 = vunpack.c.l.b16 %v760
      %v770 = vunpack.c.h.b16 %v760
      %v771 = vunpack.c.l.b16 %v761
      %v772 = vunpack.c.h.b16 %v761
      %v773 = vunpack.c.l.b16 %v762
      %v774 = vunpack.c.h.b16 %v762
      %v775 = vpack.c.b16 %v767, %v767
      %v776 = vpack.c.b16 %v768, %v768
      %v777 = vpack.c.b16 %v769, %v769
      %v778 = vpack.c.b16 %v770, %v770
      %v779 = vpack.c.b16 %v771, %v771
      %v780 = vpack.c.b16 %v772, %v772
      %v781 = vpack.c.b16 %v773, %v773
      %v782 = vpack.c.b16 %v774, %v774
      %791 = vst [vmem:[%s172] sm:$0xf] %v775
      %792 = vst [vmem:[%s172 + $0x4] sm:$0xf] %v776
      %793 = vst [vmem:[%s172 + $0x8] sm:$0xf] %v777
      %794 = vst [vmem:[%s172 + $0xc] sm:$0xf] %v778
      %795 = vst [vmem:[%s172 + $0x10] sm:$0xf] %v779
      %796 = vst [vmem:[%s172 + $0x14] sm:$0xf] %v780
      %797 = vst [vmem:[%s172 + $0x18] sm:$0xf] %v781
      %798 = vst [vmem:[%s172 + $0x1c] sm:$0xf] %v782
      %v799 = vld [vmem:[%s166 + $0x20] sm:$0xf]
      %v800 = vunpack.c.l.bf16 %v799
      %v801 = vrot.slane %v800, 7
      %v802 = vsel %vm329, 0.0, %v801
      %v803 = vrot.slane %v800, 1
      %v804 = vsel %vm378, 0.0, %v803
      %v805 = vpack.c.bf16 %v802, %v802
      %v806 = vpack.c.bf16 %v800, %v800
      %v807 = vpack.c.bf16 %v804, %v804
      %v808 = vld [vmem:[%s1] sm:$0xf]
      %v809 = vld [vmem:[%s1 + $0x4] sm:$0xf]
      %v810 = vld [vmem:[%s1 + $0x8] sm:$0xf]
      %v811 = vld [vmem:[%s1 + $0xc] sm:$0xf]
      %v812 = vld [vmem:[%s1 + $0x10] sm:$0xf]
      %v813 = vld [vmem:[%s1 + $0x14] sm:$0xf]
      %v814 = vld [vmem:[%s1 + $0x18] sm:$0xf]
      %v815 = vld [vmem:[%s1 + $0x1c] sm:$0xf]
      %v816 = vld [vmem:[%s1 + $0x20] sm:$0xf]
      %v817 = vld [vmem:[%s1 + $0x24] sm:$0xf]
      %v818 = vld [vmem:[%s1 + $0x28] sm:$0xf]
      %v819 = vld [vmem:[%s1 + $0x2c] sm:$0xf]
      %v820 = vld [vmem:[%s1 + $0x30] sm:$0xf]
      %v821 = vld [vmem:[%s1 + $0x34] sm:$0xf]
      %v822 = vld [vmem:[%s1 + $0x38] sm:$0xf]
      %v823 = vld [vmem:[%s1 + $0x3c] sm:$0xf]
      %v824 = vld [vmem:[%s1 + $0x40] sm:$0xf]
      %v825 = vld [vmem:[%s1 + $0x44] sm:$0xf]
      %v826 = vld [vmem:[%s1 + $0x48] sm:$0xf]
      %v827 = vld [vmem:[%s1 + $0x4c] sm:$0xf]
      %v828 = vld [vmem:[%s1 + $0x50] sm:$0xf]
      %v829 = vld [vmem:[%s1 + $0x54] sm:$0xf]
      %v830 = vld [vmem:[%s1 + $0x58] sm:$0xf]
      %v831 = vld [vmem:[%s1 + $0x5c] sm:$0xf]
      %v832 = vld [vmem:[%s1 + $0x60] sm:$0xf]
      %v833 = vld [vmem:[%s1 + $0x64] sm:$0xf]
      %v834 = vld [vmem:[%s1 + $0x68] sm:$0xf]
      %v835 = vld [vmem:[%s1 + $0x6c] sm:$0xf]
      %v836 = vld [vmem:[%s1 + $0x70] sm:$0xf]
      %v837 = vld [vmem:[%s1 + $0x74] sm:$0xf]
      %v838 = vld [vmem:[%s1 + $0x78] sm:$0xf]
      %v839 = vld [vmem:[%s1 + $0x7c] sm:$0xf]
      %v840 = vld [vmem:[%s1 + $0x80] sm:$0xf]
      %v841 = vld [vmem:[%s1 + $0x84] sm:$0xf]
      %v842 = vld [vmem:[%s1 + $0x88] sm:$0xf]
      %v843 = vld [vmem:[%s1 + $0x8c] sm:$0xf]
      %v844 = vld [vmem:[%s1 + $0x90] sm:$0xf]
      %v845 = vld [vmem:[%s1 + $0x94] sm:$0xf]
      %v846 = vld [vmem:[%s1 + $0x98] sm:$0xf]
      %v847 = vld [vmem:[%s1 + $0x9c] sm:$0xf]
      %v848 = vld [vmem:[%s1 + $0xa0] sm:$0xf]
      %v849 = vld [vmem:[%s1 + $0xa4] sm:$0xf]
      %v850 = vld [vmem:[%s1 + $0xa8] sm:$0xf]
      %v851 = vld [vmem:[%s1 + $0xac] sm:$0xf]
      %v852 = vld [vmem:[%s1 + $0xb0] sm:$0xf]
      %v853 = vld [vmem:[%s1 + $0xb4] sm:$0xf]
      %v854 = vld [vmem:[%s1 + $0xb8] sm:$0xf]
      %v855 = vld [vmem:[%s1 + $0xbc] sm:$0xf]
      %v856 = vld [vmem:[%s2] sm:$0x1]
      %v858 = vlaneseq
      %v859 = vshrl.u32 %v858, 7
      %v860 = vsub.s32 0, %v859
      %v861 = vrot.slane %v856, %v860
      %v911 = vunpack.c.l.b16 %v808
      %v912 = vunpack.c.l.b16 %v809
      %v913 = vunpack.c.l.b16 %v810
      %v914 = vunpack.c.l.b16 %v811
      %v915 = vunpack.c.l.b16 %v812
      %v916 = vunpack.c.l.b16 %v813
      %v917 = vunpack.c.l.b16 %v814
      %v918 = vunpack.c.l.b16 %v815
      %v919 = vunpack.c.l.b16 %v816
      %v920 = vunpack.c.l.b16 %v817
      %v921 = vunpack.c.l.b16 %v818
      %v922 = vunpack.c.l.b16 %v819
      %v923 = vunpack.c.l.b16 %v820
      %v924 = vunpack.c.l.b16 %v821
      %v925 = vunpack.c.l.b16 %v822
      %v926 = vunpack.c.l.b16 %v823
      %v927 = vunpack.c.l.b16 %v824
      %v928 = vunpack.c.l.b16 %v825
      %v929 = vunpack.c.l.b16 %v826
      %v930 = vunpack.c.l.b16 %v827
      %v931 = vunpack.c.l.b16 %v828
      %v932 = vunpack.c.l.b16 %v829
      %v933 = vunpack.c.l.b16 %v830
      %v934 = vunpack.c.l.b16 %v831
      %v935 = vunpack.c.l.b16 %v832
      %v936 = vunpack.c.l.b16 %v833
      %v937 = vunpack.c.l.b16 %v834
      %v938 = vunpack.c.l.b16 %v835
      %v939 = vunpack.c.l.b16 %v836
      %v940 = vunpack.c.l.b16 %v837
      %v941 = vunpack.c.l.b16 %v838
      %v942 = vunpack.c.l.b16 %v839
      %v943 = vunpack.c.l.b16 %v840
      %v944 = vunpack.c.l.b16 %v841
      %v945 = vunpack.c.l.b16 %v842
      %v946 = vunpack.c.l.b16 %v843
      %v947 = vunpack.c.l.b16 %v844
      %v948 = vunpack.c.l.b16 %v845
      %v949 = vunpack.c.l.b16 %v846
      %v950 = vunpack.c.l.b16 %v847
      %v951 = vunpack.c.l.b16 %v848
      %v952 = vunpack.c.l.b16 %v849
      %v953 = vunpack.c.l.b16 %v850
      %v954 = vunpack.c.l.b16 %v851
      %v955 = vunpack.c.l.b16 %v852
      %v956 = vunpack.c.l.b16 %v853
      %v957 = vunpack.c.l.b16 %v854
      %v958 = vunpack.c.l.b16 %v855
      %v959 = vpack.c.b16 %v912, %v911
      %v960 = vpack.c.b16 %v914, %v913
      %v961 = vpack.c.b16 %v916, %v915
      %v962 = vpack.c.b16 %v918, %v917
      %v963 = vpack.c.b16 %v920, %v919
      %v964 = vpack.c.b16 %v922, %v921
      %v965 = vpack.c.b16 %v924, %v923
      %v966 = vpack.c.b16 %v926, %v925
      %v967 = vpack.c.b16 %v928, %v927
      %v968 = vpack.c.b16 %v930, %v929
      %v969 = vpack.c.b16 %v932, %v931
      %v970 = vpack.c.b16 %v934, %v933
      %v971 = vpack.c.b16 %v936, %v935
      %v972 = vpack.c.b16 %v938, %v937
      %v973 = vpack.c.b16 %v940, %v939
      %v974 = vpack.c.b16 %v942, %v941
      %v975 = vpack.c.b16 %v944, %v943
      %v976 = vpack.c.b16 %v946, %v945
      %v977 = vpack.c.b16 %v948, %v947
      %v978 = vpack.c.b16 %v950, %v949
      %v979 = vpack.c.b16 %v952, %v951
      %v980 = vpack.c.b16 %v954, %v953
      %v981 = vpack.c.b16 %v956, %v955
      %v982 = vpack.c.b16 %v958, %v957
      %1007 = vmatprep.subr.bf16.mxu0 0
      %1008 = vmatpush1.bf16.msra.mxu0 %v959
      %1009 = vmatprep.subr.bf16.mxu0 0
      %1010 = vmatpush1.bf16.msra.mxu0 %v960
      %1011 = vmatprep.subr.bf16.mxu0 0
      %1012 = vmatpush1.bf16.msra.mxu0 %v961
      %1013 = vmatprep.subr.bf16.mxu0 0
      %1014 = vmatpush1.bf16.msra.mxu0 %v962
      %1015 = vmatprep.subr.bf16.mxu0 0
      %1016 = vmatpush1.bf16.msra.mxu0 %v963
      %1017 = vmatprep.subr.bf16.mxu0 0
      %1018 = vmatpush1.bf16.msra.mxu0 %v964
      %1019 = vmatprep.subr.bf16.mxu0 0
      %1020 = vmatpush1.bf16.msra.mxu0 %v965
      %1021 = vmatprep.subr.bf16.mxu0 0
      %1022 = vmatpush1.bf16.msra.mxu0 %v966
      %1023 = vmatprep.subr.bf16.mxu0 0
      %1024 = vmatpush1.bf16.msra.mxu0 %v967
      %1025 = vmatprep.subr.bf16.mxu0 0
      %1026 = vmatpush1.bf16.msra.mxu0 %v968
      %1027 = vmatprep.subr.bf16.mxu0 0
      %1028 = vmatpush1.bf16.msra.mxu0 %v969
      %1029 = vmatprep.subr.bf16.mxu0 0
      %1030 = vmatpush1.bf16.msra.mxu0 %v970
      %1031 = vmatprep.subr.bf16.mxu0 0
      %1032 = vmatpush1.bf16.msra.mxu0 %v971
      %1033 = vmatprep.subr.bf16.mxu0 0
      %1034 = vmatpush1.bf16.msra.mxu0 %v972
      %1035 = vmatprep.subr.bf16.mxu0 0
      %1036 = vmatpush1.bf16.msra.mxu0 %v973
      %1037 = vmatprep.subr.bf16.mxu0 0
      %1038 = vmatpush1.bf16.msra.mxu0 %v974
      %1039 = vmatprep.mubr.bf16.mxu0 %v806
      %1040 = vmatmul.mubr.bf16.gmra.mrb[0].mxu0 %v805
      %v1041 = vpop.f32.mrb[0].mxu0
      %v1042 = vadd.f32 %v861, %v1041
      %v1043 = vpop.f32.mrb[0].mxu0
      %v1044 = vpop.f32.mrb[0].mxu0
      %v1045 = vpop.f32.mrb[0].mxu0
      %1046 = vdwg.mxu0
      %1047 = vmatprep.subr.bf16.mxu0 0
      %1048 = vmatpush1.bf16.msra.mxu0 %v975
      %1049 = vmatprep.subr.bf16.mxu0 0
      %1050 = vmatpush1.bf16.msra.mxu0 %v976
      %1051 = vmatprep.subr.bf16.mxu0 0
      %1052 = vmatpush1.bf16.msra.mxu0 %v977
      %1053 = vmatprep.subr.bf16.mxu0 0
      %1054 = vmatpush1.bf16.msra.mxu0 %v978
      %1055 = vmatprep.subr.bf16.mxu0 0
      %1056 = vmatpush1.bf16.msra.mxu0 %v979
      %1057 = vmatprep.subr.bf16.mxu0 0
      %1058 = vmatpush1.bf16.msra.mxu0 %v980
      %1059 = vmatprep.subr.bf16.mxu0 0
      %1060 = vmatpush1.bf16.msra.mxu0 %v981
      %1061 = vmatprep.subr.bf16.mxu0 0
      %1062 = vmatpush1.bf16.msra.mxu0 %v982
      %1063 = vmatprep.subr.bf16.mxu0 0
      %1064 = vmatpush1.bf16.msra.mxu0 0
      %1065 = vmatprep.subr.bf16.mxu0 0
      %1066 = vmatpush1.bf16.msra.mxu0 0
      %1067 = vmatprep.subr.bf16.mxu0 0
      %1068 = vmatpush1.bf16.msra.mxu0 0
      %1069 = vmatprep.subr.bf16.mxu0 0
      %1070 = vmatpush1.bf16.msra.mxu0 0
      %1071 = vmatprep.subr.bf16.mxu0 0
      %1072 = vmatpush1.bf16.msra.mxu0 0
      %1073 = vmatprep.subr.bf16.mxu0 0
      %1074 = vmatpush1.bf16.msra.mxu0 0
      %1075 = vmatprep.subr.bf16.mxu0 0
      %1076 = vmatpush1.bf16.msra.mxu0 0
      %1077 = vmatprep.subr.bf16.mxu0 0
      %1078 = vmatpush1.bf16.msra.mxu0 0
      %1079 = vmatprep.mubr.bf16.mxu0 0
      %1080 = vmatmul.mubr.bf16.gmra.mrb[0].mxu0 %v807
      %v1081 = vpop.f32.mrb[0].mxu0
      %v1082 = vadd.f32 %v1042, %v1081
      %v1083 = vpop.f32.mrb[0].mxu0
      %v1084 = vpop.f32.mrb[0].mxu0
      %v1085 = vpop.f32.mrb[0].mxu0
      %1086 = vdwg.mxu0
      %vm1087 = vcmp.gt.f32.partialorder %v1082, 0.0
      %v1088 = vmul.f32 %v1082, 0.2
      %v1089 = vsel %vm1087, %v1082, %v1088
      %v1090 = vpack.c.bf16 %v1089, %v1089
      %1091 = vst [vmem:[%s172 + $0x20] sm:$0xf] %v1090
      %s1092 = smul.u32 9, %s14
      %p1093 = scmp.lt.s32.totalorder %s1092, 17
      %s1094 = scalar_select %p1093, %s1092, 17
      %s1095 = smul.addr %s1094, 4
      %s1096 = scalar_lea.vmem %s3, %s1095
      // Predicated region
      $region33: #{sav_concat.4} parent=31 // pred_check
        %p1097 = pneg %p100
      $region34: #{sav_concat.4} parent=31 // pred_check_branch
        %1099 = sbr.rel (%p1097) target = $region36
      $region35: #{sav_concat.4} parent=31 // pred_region
        %s1100 = smul.u32 9, %s14
      $region36: #{sav_concat.4} parent=31 // pred_fallthru
        _
    $region32: #{sav_concat.4} parent=5 // pred_fallthru
      _
    %p1101 = scmp.le.s32.totalorder 2, %s9
    // Predicated region
    $region37: #{sav_concat.4} parent=5 // pred_check
      %p1102 = pneg %p1101
    $region38: #{sav_concat.4} parent=5 // pred_check_branch
      %1104 = sbr.rel (%p1102) target = $region40
    $region39: #{sav_concat.4} parent=5 // pred_region
      %s1105 = ssub.s32 %s9, 2
      // Predicated region
      $region41: #{sav_concat.4} parent=39 // pred_check
        %p1106 = pneg %p106
      $region42: #{sav_concat.4} parent=39 // pred_check_branch
        %1108 = sbr.rel (%p1106) target = $region44
      $region43: #{sav_concat.4} parent=39 // pred_region
        %s1109 = smul.u32 9, %s15
        %p1110 = scmp.lt.s32.totalorder %s1109, 17
        %s1111 = scalar_select %p1110, %s1109, 17
        %s1112 = smul.addr %s1111, 4
        %s1113 = scalar_lea.vmem %s3, %s1112
      $region44: #{sav_concat.4} parent=39 // pred_fallthru
        _
    $region40: #{sav_concat.4} parent=5 // pred_fallthru
      _
  $region6: #{sav_concat.4} parent=0 // loop_footer
    %s13 = sadd.s32 1, %s9
  $region7: #{sav_concat.4} parent=0 // loop_footer_branch
    %8 = sbr.rel target = $region3
  $region8: #{sav_concat.4} parent=0 // loop_exit
    _

// kernel: tile.28
$region0: #{tile.28}
  #allocation0 [shape = 's32[1]{0}', space=sflag, size = 0x4, scoped, tag = 'scoped memory for tile.28']
  %s0 = inlined_call_operand.vmem [shape: f32[16], index: 0, kind: input, shape index: {}]
  %s1 = inlined_call_operand.vmem [shape: f32[9,16], index: 1, kind: output, shape index: {}]
  // Predicated region
  $region2: #{tile.28} parent=0 // pred_check
    _
  $region3: #{tile.28} parent=0 // pred_check_branch
    %3 = sbr.rel (0) target = $region5
  $region4: #{tile.28} parent=0 // pred_region
    _
  $region5: #{tile.28} parent=0 // pred_fallthru
    _
  %v4 = vld [vmem:[%s0] ss:$0 sm:$0xff]
  %5 = vst [vmem:[%s1] sm:$0xff] %v4
  %s6 = scalar_lea.vmem %s1, 8
  %7 = vst [vmem:[%s6] sm:$0xff] %v4

// kernel: tile.29
$region0: #{tile.29}
  %s0 = inlined_call_operand.vmem [shape: f32[9,16], index: 0, kind: input, shape index: {}]
  %s1 = inlined_call_operand.vmem [shape: f32[1,144], index: 1, kind: output, shape index: {}]
  $region1: #{tile.29} parent=0
    #allocation0 [shape = 'u8[8192]{0}', space=vmem, size = 0x2000, scoped, tag = 'scoped mem for output reshape']
    %s2 = smov 3
    %v3 = vld [vmem:[%s0] ss:$8 sm:%s2]
    %vm4 = vcmask 130048
    %5 = vst.msk [vmem:[#allocation0] ss:$8 sm:$0x3] %vm4, %v3
    %s6 = scalar_lea.vmem %s0, 7
    %v7 = vld [vmem:[%s6] sm:$0x1]
    %8 = vrot.lane.b32.xlu0 %v7, 112
    %v9 = vpop.permute.xlu0 %8
    %vm10 = vcmask 1048448
    %11 = vst.msk [vmem:[#allocation0] sm:$0x1] %vm10, %v9
    %s12 = scalar_lea.vmem %s0, 6
    %v13 = vld [vmem:[%s12] sm:$0x1]
    %14 = vrot.lane.b32.xlu0 %v13, 96
    %v15 = vpop.permute.xlu0 %14
    %vm16 = vcmask 917248
    %17 = vst.msk [vmem:[#allocation0] sm:$0x1] %vm16, %v15
    %s18 = scalar_lea.vmem %s0, 5
    %v19 = vld [vmem:[%s18] sm:$0x1]
    %20 = vrot.lane.b32.xlu0 %v19, 80
    %v21 = vpop.permute.xlu0 %20
    %vm22 = vcmask 786048
    %23 = vst.msk [vmem:[#allocation0] sm:$0x1] %vm22, %v21
    %s24 = scalar_lea.vmem %s0, 4
    %v25 = vld [vmem:[%s24] sm:$0x1]
    %26 = vrot.lane.b32.xlu0 %v25, 64
    %v27 = vpop.permute.xlu0 %26
    %vm28 = vcmask 654848
    %29 = vst.msk [vmem:[#allocation0] sm:$0x1] %vm28, %v27
    %s30 = scalar_lea.vmem %s0, 3
    %v31 = vld [vmem:[%s30] sm:$0x1]
    %32 = vrot.lane.b32.xlu0 %v31, 48
    %v33 = vpop.permute.xlu0 %32
    %vm34 = vcmask 523648
    %35 = vst.msk [vmem:[#allocation0] sm:$0x1] %vm34, %v33
    %s36 = scalar_lea.vmem %s0, 2
    %v37 = vld [vmem:[%s36] sm:$0x1]
    %38 = vrot.lane.b32.xlu0 %v37, 32
    %v39 = vpop.permute.xlu0 %38
    %vm40 = vcmask 392448
    %41 = vst.msk [vmem:[#allocation0] sm:$0x1] %vm40, %v39
    %s42 = scalar_lea.vmem %s0, 1
    %v43 = vld [vmem:[%s42] sm:$0x1]
    %44 = vrot.lane.b32.xlu0 %v43, 16
    %v45 = vpop.permute.xlu0 %44
    %vm46 = vcmask 261248
    %47 = vst.msk [vmem:[#allocation0] sm:$0x1] %vm46, %v45
    %s49 = sshllo.u32 0, 1
    %v51 = vld [vmem:[#allocation0] sm:%s49]
    %s52 = sshllo.u32 0, 1
    %53 = vst [vmem:[%s1] sm:%s52] %v51
    %s54 = scalar_lea.vmem [#allocation0], 8
    %v55 = vld [vmem:[%s54] sm:%s49]
    %s56 = sshllo.u32 0, 1
    %s57 = scalar_lea.vmem %s1, 1
    %58 = vst [vmem:[%s57] sm:%s56] %v55

// kernel: sav_concat.5
$region0: #{sav_concat.5}
  #allocation0 [shape = 'u32[]', space=smem, size = 0x4, offset = 0x4, fixed_abs, tag = 'smem constant byte address 0x4 - core index']
  #allocation1 [shape = 'u32[144,128]{1,0:T(1,128)}', space=vmem, size = 0x12000, scoped, tag = 'internal scratch']
  %s0 = inlined_call_operand.vmem [shape: bf16[128,144], index: 0, kind: input, shape index: {}]
  %s1 = inlined_call_operand.vmem [shape: bf16[144,144], index: 1, kind: input, shape index: {}]
  %s2 = inlined_call_operand.vmem [shape: f32[1,144], index: 2, kind: input, shape index: {}]
  %s3 = inlined_call_operand.vmem [shape: bf16[128,144], index: 3, kind: output, shape index: {}]
  %s4 = sld [smem:[#allocation0]]
  $region45: #{sav_concat.5} parent=0
    _
  %s6 = ssub.s32 1, %s4
  %s7 = scalar_select 0, %s6, %s4
  loop: start=0, step=1, limit=4
  $region2: #{sav_concat.5} parent=0 // loop_pre_header
    _
  $region3: #{sav_concat.5} parent=0 // loop_header
    %s9 = sphi 0, %s13
    %p10 = scmp.ge.s32.totalorder %s9, 4
    %s19 = sphi 0, %s21
    %s22 = sphi 0, %s19
    %s23 = sphi 0, %s22
    %s39 = sphi 0, %s23
    %s43 = sphi 0, %s43
    %s45 = sphi 0, %s43
    %s46 = sphi 0, %s45
    %s60 = sphi 0, %s46
    %s64 = sphi 0, %s64
    %s66 = sphi 0, %s64
    %s67 = sphi 0, %s66
    %s81 = sphi 0, %s67
    %s87 = sphi 0, %s89
    %s90 = sphi 0, %s87
    %s91 = sphi 0, %s90
    %s107 = sphi 0, %s91
  $region4: #{sav_concat.5} parent=0 // loop_header_branch
    %12 = sbr.rel (%p10) target = $region8
  $region5: #{sav_concat.5} parent=0 // loop_body
    %s14 = ssub.s32 %s9, 1
    %s15 = ssub.s32 %s9, 2
    %s16 = sadd.s32 %s9, 1
    %s17 = ssub.s32 %s9, %s16
    %p18 = scmp.eq.s32.totalorder %s17, 0
    %s20 = sadd.s32 %s19, 1
    %s21 = scalar_select %p18, %s19, %s20
    %p24 = pneg %p18
    %p25 = scmp.eq.s32.totalorder %s9, 1
    %p26 = por %p24, %p25
    %p27 = scmp.ne.s32.totalorder %s19, %s22
    %p28 = scmp.eq.s32.totalorder %s9, 0
    %p29 = por %p27, %p28
    %p30 = scmp.ne.s32.totalorder %s19, %s22
    %p31 = scmp.eq.s32.totalorder %s14, 1
    %p32 = por %p30, %p31
    %p33 = scmp.ne.s32.totalorder %s22, %s23
    %p34 = scmp.eq.s32.totalorder %s14, 0
    %p35 = por %p33, %p34
    %p36 = scmp.ne.s32.totalorder %s22, %s23
    %p37 = scmp.eq.s32.totalorder %s15, 1
    %p38 = por %p36, %p37
    %p40 = scmp.ne.s32.totalorder %s23, %s39
    %p41 = scmp.eq.s32.totalorder %s15, 0
    %p42 = por %p40, %p41
    %s44 = sadd.s32 %s43, 1
    %p47 = scmp.eq.s32.totalorder %s9, 1
    %p48 = scmp.ne.s32.totalorder %s43, %s45
    %p49 = scmp.eq.s32.totalorder %s9, 0
    %p50 = por %p48, %p49
    %p51 = scmp.ne.s32.totalorder %s43, %s45
    %p52 = scmp.eq.s32.totalorder %s14, 1
    %p53 = por %p51, %p52
    %p54 = scmp.ne.s32.totalorder %s45, %s46
    %p55 = scmp.eq.s32.totalorder %s14, 0
    %p56 = por %p54, %p55
    %p57 = scmp.ne.s32.totalorder %s45, %s46
    %p58 = scmp.eq.s32.totalorder %s15, 1
    %p59 = por %p57, %p58
    %p61 = scmp.ne.s32.totalorder %s46, %s60
    %p62 = scmp.eq.s32.totalorder %s15, 0
    %p63 = por %p61, %p62
    %s65 = sadd.s32 %s64, 1
    %p68 = scmp.eq.s32.totalorder %s9, 1
    %p69 = scmp.ne.s32.totalorder %s64, %s66
    %p70 = scmp.eq.s32.totalorder %s9, 0
    %p71 = por %p69, %p70
    %p72 = scmp.ne.s32.totalorder %s64, %s66
    %p73 = scmp.eq.s32.totalorder %s14, 1
    %p74 = por %p72, %p73
    %p75 = scmp.ne.s32.totalorder %s66, %s67
    %p76 = scmp.eq.s32.totalorder %s14, 0
    %p77 = por %p75, %p76
    %p78 = scmp.ne.s32.totalorder %s66, %s67
    %p79 = scmp.eq.s32.totalorder %s15, 1
    %p80 = por %p78, %p79
    %p82 = scmp.ne.s32.totalorder %s67, %s81
    %p83 = scmp.eq.s32.totalorder %s15, 0
    %p84 = por %p82, %p83
    %s85 = ssub.s32 %s9, %s16
    %p86 = scmp.eq.s32.totalorder %s85, 0
    %s88 = sadd.s32 %s87, 1
    %s89 = scalar_select %p86, %s87, %s88
    %p92 = pneg %p86
    %p93 = scmp.eq.s32.totalorder %s9, 1
    %p94 = por %p92, %p93
    %p95 = scmp.ne.s32.totalorder %s87, %s90
    %p96 = scmp.eq.s32.totalorder %s9, 0
    %p97 = por %p95, %p96
    %p98 = scmp.ne.s32.totalorder %s87, %s90
    %p99 = scmp.eq.s32.totalorder %s14, 1
    %p100 = por %p98, %p99
    %p101 = scmp.ne.s32.totalorder %s90, %s91
    %p102 = scmp.eq.s32.totalorder %s14, 0
    %p103 = por %p101, %p102
    %p104 = scmp.ne.s32.totalorder %s90, %s91
    %p105 = scmp.eq.s32.totalorder %s15, 1
    %p106 = por %p104, %p105
    %p108 = scmp.ne.s32.totalorder %s91, %s107
    %p109 = scmp.eq.s32.totalorder %s15, 0
    %p110 = por %p108, %p109
    %p111 = scmp.le.s32.totalorder 1, %s9
    %p112 = scmp.lt.s32.totalorder %s9, 3
    %p113 = pnand %p111, %p112
    %p114 = pneg %p113
    // Predicated region
    $region9: #{sav_concat.5} parent=5 // pred_check
      _
    $region10: #{sav_concat.5} parent=5 // pred_check_branch
      %116 = sbr.rel (%p113) target = $region12
    $region11: #{sav_concat.5} parent=5 // pred_region
      %s117 = ssub.s32 %s9, 1
      // Predicated region
      $region13: #{sav_concat.5} parent=11 // pred_check
        %p118 = pneg %p56
      $region14: #{sav_concat.5} parent=11 // pred_check_branch
        %120 = sbr.rel (%p118) target = $region16
      $region15: #{sav_concat.5} parent=11 // pred_region
        _
      $region16: #{sav_concat.5} parent=11 // pred_fallthru
        _
      // Predicated region
      $region17: #{sav_concat.5} parent=11 // pred_check
        %p121 = pneg %p77
      $region18: #{sav_concat.5} parent=11 // pred_check_branch
        %123 = sbr.rel (%p121) target = $region20
      $region19: #{sav_concat.5} parent=11 // pred_region
        _
      $region20: #{sav_concat.5} parent=11 // pred_fallthru
        _
    $region12: #{sav_concat.5} parent=5 // pred_fallthru
      _
    %p124 = scmp.lt.s32.totalorder %s9, 2
    // Predicated region
    $region21: #{sav_concat.5} parent=5 // pred_check
      %p125 = pneg %p124
    $region22: #{sav_concat.5} parent=5 // pred_check_branch
      %127 = sbr.rel (%p125) target = $region24
    $region23: #{sav_concat.5} parent=5 // pred_region
      // Predicated region
      $region25: #{sav_concat.5} parent=23 // pred_check
        %p128 = pneg %p29
      $region26: #{sav_concat.5} parent=23 // pred_check_branch
        %130 = sbr.rel (%p128) target = $region28
      $region27: #{sav_concat.5} parent=23 // pred_region
        %s131 = smul.u32 8, %s9
        %p132 = scmp.lt.s32.totalorder %s131, 15
        %s133 = scalar_select %p132, %s131, 15
        %s134 = smul.addr %s133, 2
        %s135 = smul.addr %s134, 4
        %s136 = scalar_lea.vmem %s0, %s135
        %s137 = smul.u32 8, %s9
      $region28: #{sav_concat.5} parent=23 // pred_fallthru
        _
    $region24: #{sav_concat.5} parent=5 // pred_fallthru
      _
    %p138 = scmp.le.s32.totalorder 1, %s9
    %p139 = scmp.lt.s32.totalorder %s9, 3
    %p140 = pnand %p138, %p139
    %p141 = pneg %p140
    // Predicated region
    $region29: #{sav_concat.5} parent=5 // pred_check
      _
    $region30: #{sav_concat.5} parent=5 // pred_check_branch
      %143 = sbr.rel (%p140) target = $region32
    $region31: #{sav_concat.5} parent=5 // pred_region
      %s144 = ssub.s32 %s9, 1
      %s145 = smul.u32 8, %s14
      %p146 = scmp.lt.s32.totalorder %s145, 15
      %s147 = scalar_select %p146, %s145, 15
      %s148 = smul.addr %s147, 2
      %s149 = smul.addr %s148, 4
      %s150 = scalar_lea.vmem %s0, %s149
      %p151 = pneg %p35
      %p152 = pneg %p32
      %p153 = pneg %p56
      %p154 = pneg %p53
      %p155 = pneg %p77
      %p156 = pneg %p74
      %p157 = pneg %p103
      %p158 = pneg %p100
      %s159 = smul.u32 8, %s14
      %p160 = scmp.lt.s32.totalorder %s159, 15
      %s161 = scalar_select %p160, %s159, 15
      %s162 = smul.addr %s161, 2
      %s163 = smul.addr %s162, 4
      %s164 = scalar_lea.vmem %s3, %s163
      %s165 = smul.u32 8, %s14
      %p166 = scmp.lt.s32.totalorder %s165, 15
      %s167 = scalar_select %p166, %s165, 15
      %s168 = smul.addr %s167, 2
      %s169 = smul.addr %s168, 4
      %s170 = scalar_lea.vmem %s0, %s169
      %s171 = smul.u32 8, %s14
      %s172 = smul.u32 8, %s14
      %p173 = scmp.lt.s32.totalorder %s172, 15
      %s174 = scalar_select %p173, %s172, 15
      %s175 = smul.addr %s174, 2
      %s176 = smul.addr %s175, 4
      %s177 = scalar_lea.vmem %s3, %s176
      %s178 = smul.u32 8, %s14
      %s180 = smul.u32 0, 2
      %s181 = smul.addr %s180, 4
      %s182 = scalar_lea.vmem %s170, %s181
      %v183 = vld [vmem:[%s182] sm:$0xff]
      %v184 = vld [vmem:[%s182 + $0x8] sm:$0xff]
      %v185 = vld [vmem:[%s182 + $0x10] sm:$0xff]
      %v186 = vld [vmem:[%s182 + $0x18] sm:$0xff]
      %v187 = vld [vmem:[%s182 + $0x20] sm:$0xff]
      %v188 = vld [vmem:[%s182 + $0x28] sm:$0xff]
      %v189 = vld [vmem:[%s182 + $0x30] sm:$0xff]
      %v190 = vld [vmem:[%s182 + $0x38] sm:$0xff]
      %v191 = vld [vmem:[%s1] sm:$0xff]
      %v192 = vld [vmem:[%s1 + $0x8] sm:$0xff]
      %v193 = vld [vmem:[%s1 + $0x10] sm:$0xff]
      %v194 = vld [vmem:[%s1 + $0x18] sm:$0xff]
      %v195 = vld [vmem:[%s1 + $0x20] sm:$0xff]
      %v196 = vld [vmem:[%s1 + $0x28] sm:$0xff]
      %v197 = vld [vmem:[%s1 + $0x30] sm:$0xff]
      %v198 = vld [vmem:[%s1 + $0x38] sm:$0xff]
      %v199 = vld [vmem:[%s1 + $0x40] sm:$0xff]
      %v200 = vld [vmem:[%s1 + $0x48] sm:$0xff]
      %v201 = vld [vmem:[%s1 + $0x50] sm:$0xff]
      %v202 = vld [vmem:[%s1 + $0x58] sm:$0xff]
      %v203 = vld [vmem:[%s1 + $0x60] sm:$0xff]
      %v204 = vld [vmem:[%s1 + $0x68] sm:$0xff]
      %v205 = vld [vmem:[%s1 + $0x70] sm:$0xff]
      %v206 = vld [vmem:[%s1 + $0x78] sm:$0xff]
      %v207 = vld [vmem:[%s1 + $0x80] sm:$0xff]
      %v208 = vld [vmem:[%s1 + $0x88] sm:$0xff]
      %v209 = vld [vmem:[%s2] sm:$0x3]
      %v211 = vlaneseq
      %v212 = vshrl.u32 %v211, 7
      %v213 = vsub.s32 0, %v212
      %v214 = vrot.slane %v209, %v213
      %v215 = vlaneseq
      %v216 = vshrl.u32 %v215, 7
      %v217 = vsub.s32 1, %v216
      %v218 = vrot.slane %v209, %v217
      %v229 = vunpack.c.l.b16 %v183
      %v230 = vunpack.c.h.b16 %v183
      %v231 = vunpack.c.l.b16 %v184
      %v232 = vunpack.c.h.b16 %v184
      %v233 = vunpack.c.l.b16 %v185
      %v234 = vunpack.c.h.b16 %v185
      %v235 = vunpack.c.l.b16 %v186
      %v236 = vunpack.c.h.b16 %v186
      %v237 = vunpack.c.l.b16 %v187
      %v238 = vunpack.c.h.b16 %v187
      %v239 = vunpack.c.l.b16 %v188
      %v240 = vunpack.c.h.b16 %v188
      %v241 = vunpack.c.l.b16 %v189
      %v242 = vunpack.c.h.b16 %v189
      %v243 = vunpack.c.l.b16 %v190
      %v244 = vunpack.c.h.b16 %v190
      %v245 = vpack.c.b16 %v231, %v229
      %v246 = vpack.c.b16 %v232, %v230
      %v247 = vpack.c.b16 %v235, %v233
      %v248 = vpack.c.b16 %v236, %v234
      %v249 = vpack.c.b16 %v239, %v237
      %v250 = vpack.c.b16 %v240, %v238
      %v251 = vpack.c.b16 %v243, %v241
      %v252 = vpack.c.b16 %v244, %v242
      %v275 = vunpack.c.l.b16 %v191
      %v276 = vunpack.c.h.b16 %v191
      %v277 = vunpack.c.l.b16 %v192
      %v278 = vunpack.c.h.b16 %v192
      %v279 = vunpack.c.l.b16 %v193
      %v280 = vunpack.c.h.b16 %v193
      %v281 = vunpack.c.l.b16 %v194
      %v282 = vunpack.c.h.b16 %v194
      %v283 = vunpack.c.l.b16 %v195
      %v284 = vunpack.c.h.b16 %v195
      %v285 = vunpack.c.l.b16 %v196
      %v286 = vunpack.c.h.b16 %v196
      %v287 = vunpack.c.l.b16 %v197
      %v288 = vunpack.c.h.b16 %v197
      %v289 = vunpack.c.l.b16 %v198
      %v290 = vunpack.c.h.b16 %v198
      %v291 = vunpack.c.l.b16 %v199
      %v292 = vunpack.c.h.b16 %v199
      %v293 = vunpack.c.l.b16 %v200
      %v294 = vunpack.c.h.b16 %v200
      %v295 = vunpack.c.l.b16 %v201
      %v296 = vunpack.c.h.b16 %v201
      %v297 = vunpack.c.l.b16 %v202
      %v298 = vunpack.c.h.b16 %v202
      %v299 = vunpack.c.l.b16 %v203
      %v300 = vunpack.c.h.b16 %v203
      %v301 = vunpack.c.l.b16 %v204
      %v302 = vunpack.c.h.b16 %v204
      %v303 = vunpack.c.l.b16 %v205
      %v304 = vunpack.c.h.b16 %v205
      %v305 = vunpack.c.l.b16 %v206
      %v306 = vunpack.c.h.b16 %v206
      %v307 = vunpack.c.l.b16 %v207
      %v308 = vunpack.c.h.b16 %v207
      %v309 = vunpack.c.l.b16 %v208
      %v310 = vunpack.c.h.b16 %v208
      %v311 = vpack.c.b16 %v277, %v275
      %v312 = vpack.c.b16 %v278, %v276
      %v313 = vpack.c.b16 %v281, %v279
      %v314 = vpack.c.b16 %v282, %v280
      %v315 = vpack.c.b16 %v285, %v283
      %v316 = vpack.c.b16 %v286, %v284
      %v317 = vpack.c.b16 %v289, %v287
      %v318 = vpack.c.b16 %v290, %v288
      %v319 = vpack.c.b16 %v293, %v291
      %v320 = vpack.c.b16 %v294, %v292
      %v321 = vpack.c.b16 %v297, %v295
      %v322 = vpack.c.b16 %v298, %v296
      %v323 = vpack.c.b16 %v301, %v299
      %v324 = vpack.c.b16 %v302, %v300
      %v325 = vpack.c.b16 %v305, %v303
      %v326 = vpack.c.b16 %v306, %v304
      %v327 = vpack.c.b16 %v309, %v307
      %v328 = vpack.c.b16 %v310, %v308
      %vm347 = vcmask 130048
      %v349 = vsel %vm347, %v246, 0
      %v352 = vsel %vm347, %v248, 0
      %v355 = vsel %vm347, %v250, 0
      %v358 = vsel %vm347, %v252, 0
      %360 = vmatprep.subr.bf16.mxu0 %v312
      %361 = vmatpush1.bf16.msra.mxu0 %v311
      %362 = vmatprep.subr.bf16.mxu0 %v314
      %363 = vmatpush1.bf16.msra.mxu0 %v313
      %364 = vmatprep.subr.bf16.mxu0 %v316
      %365 = vmatpush1.bf16.msra.mxu0 %v315
      %366 = vmatprep.subr.bf16.mxu0 %v318
      %367 = vmatpush1.bf16.msra.mxu0 %v317
      %368 = vmatprep.subr.bf16.mxu0 %v320
      %369 = vmatpush1.bf16.msra.mxu0 %v319
      %370 = vmatprep.subr.bf16.mxu0 %v322
      %371 = vmatpush1.bf16.msra.mxu0 %v321
      %372 = vmatprep.subr.bf16.mxu0 %v324
      %373 = vmatpush1.bf16.msra.mxu0 %v323
      %374 = vmatprep.subr.bf16.mxu0 %v326
      %375 = vmatpush1.bf16.msra.mxu0 %v325
      %376 = vmatprep.subr.bf16.mxu0 %v328
      %377 = vmatpush1.bf16.msra.mxu0 %v327
      %378 = vmatprep.subr.bf16.mxu0 0
      %379 = vmatpush1.bf16.msra.mxu0 0
      %380 = vmatprep.subr.bf16.mxu0 0
      %381 = vmatpush1.bf16.msra.mxu0 0
      %382 = vmatprep.subr.bf16.mxu0 0
      %383 = vmatpush1.bf16.msra.mxu0 0
      %384 = vmatprep.subr.bf16.mxu0 0
      %385 = vmatpush1.bf16.msra.mxu0 0
      %386 = vmatprep.subr.bf16.mxu0 0
      %387 = vmatpush1.bf16.msra.mxu0 0
      %388 = vmatprep.subr.bf16.mxu0 0
      %389 = vmatpush1.bf16.msra.mxu0 0
      %390 = vmatprep.subr.bf16.mxu0 0
      %391 = vmatpush1.bf16.msra.mxu0 0
      %392 = vmatprep.mubr.bf16.mxu0 %v349
      %393 = vmatmul.mubr.bf16.gmra.mrb[0].mxu0 %v245
      %v394 = vpop.f32.mrb[0].mxu0
      %v395 = vadd.f32 %v214, %v394
      %v396 = vpop.f32.mrb[0].mxu0
      %v397 = vadd.f32 %v218, %v396
      %v398 = vpop.f32.mrb[0].mxu0
      %v399 = vadd.f32 %v214, %v398
      %v400 = vpop.f32.mrb[0].mxu0
      %v401 = vadd.f32 %v218, %v400
      %402 = vmatprep.mubr.bf16.mxu0 %v352
      %403 = vmatmul.mubr.bf16.gmra.mrb[0].mxu0 %v247
      %v404 = vpop.f32.mrb[0].mxu0
      %v405 = vadd.f32 %v214, %v404
      %v406 = vpop.f32.mrb[0].mxu0
      %v407 = vadd.f32 %v218, %v406
      %v408 = vpop.f32.mrb[0].mxu0
      %v409 = vadd.f32 %v214, %v408
      %v410 = vpop.f32.mrb[0].mxu0
      %v411 = vadd.f32 %v218, %v410
      %412 = vmatprep.mubr.bf16.mxu0 %v355
      %413 = vmatmul.mubr.bf16.gmra.mrb[0].mxu0 %v249
      %v414 = vpop.f32.mrb[0].mxu0
      %v415 = vadd.f32 %v214, %v414
      %v416 = vpop.f32.mrb[0].mxu0
      %v417 = vadd.f32 %v218, %v416
      %v418 = vpop.f32.mrb[0].mxu0
      %v419 = vadd.f32 %v214, %v418
      %v420 = vpop.f32.mrb[0].mxu0
      %v421 = vadd.f32 %v218, %v420
      %422 = vmatprep.mubr.bf16.mxu0 %v358
      %423 = vmatmul.mubr.bf16.gmra.mrb[0].mxu0 %v251
      %v424 = vpop.f32.mrb[0].mxu0
      %v425 = vadd.f32 %v214, %v424
      %v426 = vpop.f32.mrb[0].mxu0
      %v427 = vadd.f32 %v218, %v426
      %v428 = vpop.f32.mrb[0].mxu0
      %v429 = vadd.f32 %v214, %v428
      %v430 = vpop.f32.mrb[0].mxu0
      %v431 = vadd.f32 %v218, %v430
      %432 = vdwg.mxu0
      %vm433 = vcmp.gt.f32.partialorder %v395, 0.0
      %vm434 = vcmp.gt.f32.partialorder %v397, 0.0
      %vm435 = vcmp.gt.f32.partialorder %v399, 0.0
      %vm436 = vcmp.gt.f32.partialorder %v401, 0.0
      %vm437 = vcmp.gt.f32.partialorder %v405, 0.0
      %vm438 = vcmp.gt.f32.partialorder %v407, 0.0
      %vm439 = vcmp.gt.f32.partialorder %v409, 0.0
      %vm440 = vcmp.gt.f32.partialorder %v411, 0.0
      %vm441 = vcmp.gt.f32.partialorder %v415, 0.0
      %vm442 = vcmp.gt.f32.partialorder %v417, 0.0
      %vm443 = vcmp.gt.f32.partialorder %v419, 0.0
      %vm444 = vcmp.gt.f32.partialorder %v421, 0.0
      %vm445 = vcmp.gt.f32.partialorder %v425, 0.0
      %vm446 = vcmp.gt.f32.partialorder %v427, 0.0
      %vm447 = vcmp.gt.f32.partialorder %v429, 0.0
      %vm448 = vcmp.gt.f32.partialorder %v431, 0.0
      %v449 = vmul.f32 %v395, 0.2
      %v450 = vmul.f32 %v397, 0.2
      %v451 = vmul.f32 %v399, 0.2
      %v452 = vmul.f32 %v401, 0.2
      %v453 = vmul.f32 %v405, 0.2
      %v454 = vmul.f32 %v407, 0.2
      %v455 = vmul.f32 %v409, 0.2
      %v456 = vmul.f32 %v411, 0.2
      %v457 = vmul.f32 %v415, 0.2
      %v458 = vmul.f32 %v417, 0.2
      %v459 = vmul.f32 %v419, 0.2
      %v460 = vmul.f32 %v421, 0.2
      %v461 = vmul.f32 %v425, 0.2
      %v462 = vmul.f32 %v427, 0.2
      %v463 = vmul.f32 %v429, 0.2
      %v464 = vmul.f32 %v431, 0.2
      %v465 = vsel %vm433, %v395, %v449
      %v466 = vsel %vm434, %v397, %v450
      %v467 = vsel %vm435, %v399, %v451
      %v468 = vsel %vm436, %v401, %v452
      %v469 = vsel %vm437, %v405, %v453
      %v470 = vsel %vm438, %v407, %v454
      %v471 = vsel %vm439, %v409, %v455
      %v472 = vsel %vm440, %v411, %v456
      %v473 = vsel %vm441, %v415, %v457
      %v474 = vsel %vm442, %v417, %v458
      %v475 = vsel %vm443, %v419, %v459
      %v476 = vsel %vm444, %v421, %v460
      %v477 = vsel %vm445, %v425, %v461
      %v478 = vsel %vm446, %v427, %v462
      %v479 = vsel %vm447, %v429, %v463
      %v480 = vsel %vm448, %v431, %v464
      %v481 = vpack.c.bf16 %v467, %v465
      %v482 = vpack.c.bf16 %v468, %v466
      %v483 = vpack.c.bf16 %v471, %v469
      %v484 = vpack.c.bf16 %v472, %v470
      %v485 = vpack.c.bf16 %v475, %v473
      %v486 = vpack.c.bf16 %v476, %v474
      %v487 = vpack.c.bf16 %v479, %v477
      %v488 = vpack.c.bf16 %v480, %v478
      %v497 = vunpack.c.l.b16 %v481
      %v498 = vunpack.c.l.b16 %v482
      %v499 = vunpack.c.h.b16 %v481
      %v500 = vunpack.c.h.b16 %v482
      %v501 = vunpack.c.l.b16 %v483
      %v502 = vunpack.c.l.b16 %v484
      %v503 = vunpack.c.h.b16 %v483
      %v504 = vunpack.c.h.b16 %v484
      %v505 = vunpack.c.l.b16 %v485
      %v506 = vunpack.c.l.b16 %v486
      %v507 = vunpack.c.h.b16 %v485
      %v508 = vunpack.c.h.b16 %v486
      %v509 = vunpack.c.l.b16 %v487
      %v510 = vunpack.c.l.b16 %v488
      %v511 = vunpack.c.h.b16 %v487
      %v512 = vunpack.c.h.b16 %v488
      %v513 = vpack.c.b16 %v498, %v497
      %v514 = vpack.c.b16 %v500, %v499
      %v515 = vpack.c.b16 %v502, %v501
      %v516 = vpack.c.b16 %v504, %v503
      %v517 = vpack.c.b16 %v506, %v505
      %v518 = vpack.c.b16 %v508, %v507
      %v519 = vpack.c.b16 %v510, %v509
      %v520 = vpack.c.b16 %v512, %v511
      %s529 = smul.addr %s180, 4
      %s530 = scalar_lea.vmem %s177, %s529
      %vm531 = vcmask 1043456
      %vm532 = vcmask 130052
      %vm533 = vmor %vm532, %vm531
      %534 = vst.msk [vmem:[%s530] sm:$0xff] %vm533, %v513
      %535 = vst.msk [vmem:[%s530 + $0x8] sm:$0xff] %vm533, %v514
      %536 = vst.msk [vmem:[%s530 + $0x10] sm:$0xff] %vm533, %v515
      %537 = vst.msk [vmem:[%s530 + $0x18] sm:$0xff] %vm533, %v516
      %538 = vst.msk [vmem:[%s530 + $0x20] sm:$0xff] %vm533, %v517
      %539 = vst.msk [vmem:[%s530 + $0x28] sm:$0xff] %vm533, %v518
      %540 = vst.msk [vmem:[%s530 + $0x30] sm:$0xff] %vm533, %v519
      %541 = vst.msk [vmem:[%s530 + $0x38] sm:$0xff] %vm533, %v520
      %s542 = smul.u32 8, %s14
      %p543 = scmp.lt.s32.totalorder %s542, 15
      %s544 = scalar_select %p543, %s542, 15
      %s545 = smul.addr %s544, 2
      %s546 = smul.addr %s545, 4
      %s547 = scalar_lea.vmem %s3, %s546
      // Predicated region
      $region33: #{sav_concat.5} parent=31 // pred_check
        %p548 = pneg %p100
      $region34: #{sav_concat.5} parent=31 // pred_check_branch
        %550 = sbr.rel (%p548) target = $region36
      $region35: #{sav_concat.5} parent=31 // pred_region
        %s551 = smul.u32 8, %s14
      $region36: #{sav_concat.5} parent=31 // pred_fallthru
        _
    $region32: #{sav_concat.5} parent=5 // pred_fallthru
      _
    %p552 = scmp.le.s32.totalorder 2, %s9
    // Predicated region
    $region37: #{sav_concat.5} parent=5 // pred_check
      %p553 = pneg %p552
    $region38: #{sav_concat.5} parent=5 // pred_check_branch
      %555 = sbr.rel (%p553) target = $region40
    $region39: #{sav_concat.5} parent=5 // pred_region
      %s556 = ssub.s32 %s9, 2
      // Predicated region
      $region41: #{sav_concat.5} parent=39 // pred_check
        %p557 = pneg %p106
      $region42: #{sav_concat.5} parent=39 // pred_check_branch
        %559 = sbr.rel (%p557) target = $region44
      $region43: #{sav_concat.5} parent=39 // pred_region
        %s560 = smul.u32 8, %s15
        %p561 = scmp.lt.s32.totalorder %s560, 15
        %s562 = scalar_select %p561, %s560, 15
        %s563 = smul.addr %s562, 2
        %s564 = smul.addr %s563, 4
        %s565 = scalar_lea.vmem %s3, %s564
      $region44: #{sav_concat.5} parent=39 // pred_fallthru
        _
    $region40: #{sav_concat.5} parent=5 // pred_fallthru
      _
  $region6: #{sav_concat.5} parent=0 // loop_footer
    %s13 = sadd.s32 1, %s9
  $region7: #{sav_concat.5} parent=0 // loop_footer_branch
    %8 = sbr.rel target = $region3
  $region8: #{sav_concat.5} parent=0 // loop_exit
    _

// kernel: tile.33
$region0: #{tile.33}
  #allocation0 [shape = 's32[1]{0}', space=sflag, size = 0x4, scoped, tag = 'scoped memory for tile.33']
  %s0 = inlined_call_operand.vmem [shape: f32[16], index: 0, kind: input, shape index: {}]
  %s1 = inlined_call_operand.vmem [shape: f32[24,16], index: 1, kind: output, shape index: {}]
  // Predicated region
  $region2: #{tile.33} parent=0 // pred_check
    _
  $region3: #{tile.33} parent=0 // pred_check_branch
    %3 = sbr.rel (0) target = $region5
  $region4: #{tile.33} parent=0 // pred_region
    _
  $region5: #{tile.33} parent=0 // pred_fallthru
    _
  %v4 = vld [vmem:[%s0] ss:$0 sm:$0xff]
  %5 = vst [vmem:[%s1] sm:$0xff] %v4
  %s6 = scalar_lea.vmem %s1, 8
  %7 = vst [vmem:[%s6] sm:$0xff] %v4
  %s8 = scalar_lea.vmem %s1, 16
  %9 = vst [vmem:[%s8] sm:$0xff] %v4

// kernel: tile.34
$region0: #{tile.34}
  %s0 = inlined_call_operand.vmem [shape: f32[24,16], index: 0, kind: input, shape index: {}]
  %s1 = inlined_call_operand.vmem [shape: f32[1,384], index: 1, kind: output, shape index: {}]
  $region1: #{tile.34} parent=0
    #allocation0 [shape = 'u8[12288]{0}', space=vmem, size = 0x3000, scoped, tag = 'scoped mem for output reshape']
    %v2 = vld [vmem:[%s0] ss:$8 sm:$0x7]
    %vm3 = vcmask 130048
    %4 = vst.msk [vmem:[#allocation0] ss:$8 sm:$0x7] %vm3, %v2
    %s5 = scalar_lea.vmem %s0, 7
    %v6 = vld [vmem:[%s5] ss:$8 sm:$0x7]
    %7 = vrot.lane.b32.xlu0 %v6, 112
    %v8 = vpop.permute.xlu0 %7
    %vm9 = vcmask 1048448
    %10 = vst.msk [vmem:[#allocation0] ss:$8 sm:$0x7] %vm9, %v8
    %s11 = scalar_lea.vmem %s0, 6
    %v12 = vld [vmem:[%s11] ss:$8 sm:$0x7]
    %13 = vrot.lane.b32.xlu0 %v12, 96
    %v14 = vpop.permute.xlu0 %13
    %vm15 = vcmask 917248
    %16 = vst.msk [vmem:[#allocation0] ss:$8 sm:$0x7] %vm15, %v14
    %s17 = scalar_lea.vmem %s0, 5
    %v18 = vld [vmem:[%s17] ss:$8 sm:$0x7]
    %19 = vrot.lane.b32.xlu0 %v18, 80
    %v20 = vpop.permute.xlu0 %19
    %vm21 = vcmask 786048
    %22 = vst.msk [vmem:[#allocation0] ss:$8 sm:$0x7] %vm21, %v20
    %s23 = scalar_lea.vmem %s0, 4
    %v24 = vld [vmem:[%s23] ss:$8 sm:$0x7]
    %25 = vrot.lane.b32.xlu0 %v24, 64
    %v26 = vpop.permute.xlu0 %25
    %vm27 = vcmask 654848
    %28 = vst.msk [vmem:[#allocation0] ss:$8 sm:$0x7] %vm27, %v26
    %s29 = scalar_lea.vmem %s0, 3
    %v30 = vld [vmem:[%s29] ss:$8 sm:$0x7]
    %31 = vrot.lane.b32.xlu0 %v30, 48
    %v32 = vpop.permute.xlu0 %31
    %vm33 = vcmask 523648
    %34 = vst.msk [vmem:[#allocation0] ss:$8 sm:$0x7] %vm33, %v32
    %s35 = scalar_lea.vmem %s0, 2
    %v36 = vld [vmem:[%s35] ss:$8 sm:$0x7]
    %37 = vrot.lane.b32.xlu0 %v36, 32
    %v38 = vpop.permute.xlu0 %37
    %vm39 = vcmask 392448
    %40 = vst.msk [vmem:[#allocation0] ss:$8 sm:$0x7] %vm39, %v38
    %s41 = scalar_lea.vmem %s0, 1
    %v42 = vld [vmem:[%s41] ss:$8 sm:$0x7]
    %43 = vrot.lane.b32.xlu0 %v42, 16
    %v44 = vpop.permute.xlu0 %43
    %vm45 = vcmask 261248
    %46 = vst.msk [vmem:[#allocation0] ss:$8 sm:$0x7] %vm45, %v44
    %s48 = sshllo.u32 0, 1
    %v50 = vld [vmem:[#allocation0] sm:%s48]
    %s51 = sshllo.u32 0, 1
    %52 = vst [vmem:[%s1] sm:%s51] %v50
    %s53 = scalar_lea.vmem [#allocation0], 8
    %v54 = vld [vmem:[%s53] sm:%s48]
    %s55 = sshllo.u32 0, 1
    %s56 = scalar_lea.vmem %s1, 1
    %57 = vst [vmem:[%s56] sm:%s55] %v54
    %s58 = scalar_lea.vmem [#allocation0], 16
    %v59 = vld [vmem:[%s58] sm:%s48]
    %s60 = sshllo.u32 0, 1
    %s61 = smul.addr 1, 2
    %s62 = scalar_lea.vmem %s1, %s61
    %63 = vst [vmem:[%s62] sm:%s60] %v59

// kernel: sav_concat.6
$region0: #{sav_concat.6}
  #allocation0 [shape = 'u32[]', space=smem, size = 0x4, offset = 0x4, fixed_abs, tag = 'smem constant byte address 0x4 - core index']
  #allocation1 [shape = 'u32[144,128]{1,0:T(1,128)}', space=vmem, size = 0x12000, scoped, tag = 'internal scratch']
  %s0 = inlined_call_operand.vmem [shape: bf16[48,384], index: 0, kind: input, shape index: {}]
  %s1 = inlined_call_operand.vmem [shape: bf16[384,384], index: 1, kind: input, shape index: {}]
  %s2 = inlined_call_operand.vmem [shape: f32[1,384], index: 2, kind: input, shape index: {}]
  %s3 = inlined_call_operand.vmem [shape: bf16[48,384], index: 3, kind: output, shape index: {}]
  %s4 = sld [smem:[#allocation0]]
  $region45: #{sav_concat.6} parent=0
    _
  %s6 = ssub.s32 1, %s4
  %s7 = scalar_select 0, %s6, %s4
  loop: start=0, step=1, limit=4
  $region2: #{sav_concat.6} parent=0 // loop_pre_header
    _
  $region3: #{sav_concat.6} parent=0 // loop_header
    %s9 = sphi 0, %s13
    %p10 = scmp.ge.s32.totalorder %s9, 4
    %s19 = sphi 0, %s21
    %s22 = sphi 0, %s19
    %s23 = sphi 0, %s22
    %s39 = sphi 0, %s23
    %s43 = sphi 0, %s43
    %s45 = sphi 0, %s43
    %s46 = sphi 0, %s45
    %s60 = sphi 0, %s46
    %s64 = sphi 0, %s64
    %s66 = sphi 0, %s64
    %s67 = sphi 0, %s66
    %s81 = sphi 0, %s67
    %s87 = sphi 0, %s89
    %s90 = sphi 0, %s87
    %s91 = sphi 0, %s90
    %s107 = sphi 0, %s91
  $region4: #{sav_concat.6} parent=0 // loop_header_branch
    %12 = sbr.rel (%p10) target = $region8
  $region5: #{sav_concat.6} parent=0 // loop_body
    %s14 = ssub.s32 %s9, 1
    %s15 = ssub.s32 %s9, 2
    %s16 = sadd.s32 %s9, 1
    %s17 = ssub.s32 %s9, %s16
    %p18 = scmp.eq.s32.totalorder %s17, 0
    %s20 = sadd.s32 %s19, 1
    %s21 = scalar_select %p18, %s19, %s20
    %p24 = pneg %p18
    %p25 = scmp.eq.s32.totalorder %s9, 1
    %p26 = por %p24, %p25
    %p27 = scmp.ne.s32.totalorder %s19, %s22
    %p28 = scmp.eq.s32.totalorder %s9, 0
    %p29 = por %p27, %p28
    %p30 = scmp.ne.s32.totalorder %s19, %s22
    %p31 = scmp.eq.s32.totalorder %s14, 1
    %p32 = por %p30, %p31
    %p33 = scmp.ne.s32.totalorder %s22, %s23
    %p34 = scmp.eq.s32.totalorder %s14, 0
    %p35 = por %p33, %p34
    %p36 = scmp.ne.s32.totalorder %s22, %s23
    %p37 = scmp.eq.s32.totalorder %s15, 1
    %p38 = por %p36, %p37
    %p40 = scmp.ne.s32.totalorder %s23, %s39
    %p41 = scmp.eq.s32.totalorder %s15, 0
    %p42 = por %p40, %p41
    %s44 = sadd.s32 %s43, 1
    %p47 = scmp.eq.s32.totalorder %s9, 1
    %p48 = scmp.ne.s32.totalorder %s43, %s45
    %p49 = scmp.eq.s32.totalorder %s9, 0
    %p50 = por %p48, %p49
    %p51 = scmp.ne.s32.totalorder %s43, %s45
    %p52 = scmp.eq.s32.totalorder %s14, 1
    %p53 = por %p51, %p52
    %p54 = scmp.ne.s32.totalorder %s45, %s46
    %p55 = scmp.eq.s32.totalorder %s14, 0
    %p56 = por %p54, %p55
    %p57 = scmp.ne.s32.totalorder %s45, %s46
    %p58 = scmp.eq.s32.totalorder %s15, 1
    %p59 = por %p57, %p58
    %p61 = scmp.ne.s32.totalorder %s46, %s60
    %p62 = scmp.eq.s32.totalorder %s15, 0
    %p63 = por %p61, %p62
    %s65 = sadd.s32 %s64, 1
    %p68 = scmp.eq.s32.totalorder %s9, 1
    %p69 = scmp.ne.s32.totalorder %s64, %s66
    %p70 = scmp.eq.s32.totalorder %s9, 0
    %p71 = por %p69, %p70
    %p72 = scmp.ne.s32.totalorder %s64, %s66
    %p73 = scmp.eq.s32.totalorder %s14, 1
    %p74 = por %p72, %p73
    %p75 = scmp.ne.s32.totalorder %s66, %s67
    %p76 = scmp.eq.s32.totalorder %s14, 0
    %p77 = por %p75, %p76
    %p78 = scmp.ne.s32.totalorder %s66, %s67
    %p79 = scmp.eq.s32.totalorder %s15, 1
    %p80 = por %p78, %p79
    %p82 = scmp.ne.s32.totalorder %s67, %s81
    %p83 = scmp.eq.s32.totalorder %s15, 0
    %p84 = por %p82, %p83
    %s85 = ssub.s32 %s9, %s16
    %p86 = scmp.eq.s32.totalorder %s85, 0
    %s88 = sadd.s32 %s87, 1
    %s89 = scalar_select %p86, %s87, %s88
    %p92 = pneg %p86
    %p93 = scmp.eq.s32.totalorder %s9, 1
    %p94 = por %p92, %p93
    %p95 = scmp.ne.s32.totalorder %s87, %s90
    %p96 = scmp.eq.s32.totalorder %s9, 0
    %p97 = por %p95, %p96
    %p98 = scmp.ne.s32.totalorder %s87, %s90
    %p99 = scmp.eq.s32.totalorder %s14, 1
    %p100 = por %p98, %p99
    %p101 = scmp.ne.s32.totalorder %s90, %s91
    %p102 = scmp.eq.s32.totalorder %s14, 0
    %p103 = por %p101, %p102
    %p104 = scmp.ne.s32.totalorder %s90, %s91
    %p105 = scmp.eq.s32.totalorder %s15, 1
    %p106 = por %p104, %p105
    %p108 = scmp.ne.s32.totalorder %s91, %s107
    %p109 = scmp.eq.s32.totalorder %s15, 0
    %p110 = por %p108, %p109
    %p111 = scmp.le.s32.totalorder 1, %s9
    %p112 = scmp.lt.s32.totalorder %s9, 3
    %p113 = pnand %p111, %p112
    %p114 = pneg %p113
    // Predicated region
    $region9: #{sav_concat.6} parent=5 // pred_check
      _
    $region10: #{sav_concat.6} parent=5 // pred_check_branch
      %116 = sbr.rel (%p113) target = $region12
    $region11: #{sav_concat.6} parent=5 // pred_region
      %s117 = ssub.s32 %s9, 1
      // Predicated region
      $region13: #{sav_concat.6} parent=11 // pred_check
        %p118 = pneg %p56
      $region14: #{sav_concat.6} parent=11 // pred_check_branch
        %120 = sbr.rel (%p118) target = $region16
      $region15: #{sav_concat.6} parent=11 // pred_region
        _
      $region16: #{sav_concat.6} parent=11 // pred_fallthru
        _
      // Predicated region
      $region17: #{sav_concat.6} parent=11 // pred_check
        %p121 = pneg %p77
      $region18: #{sav_concat.6} parent=11 // pred_check_branch
        %123 = sbr.rel (%p121) target = $region20
      $region19: #{sav_concat.6} parent=11 // pred_region
        _
      $region20: #{sav_concat.6} parent=11 // pred_fallthru
        _
    $region12: #{sav_concat.6} parent=5 // pred_fallthru
      _
    %p124 = scmp.lt.s32.totalorder %s9, 2
    // Predicated region
    $region21: #{sav_concat.6} parent=5 // pred_check
      %p125 = pneg %p124
    $region22: #{sav_concat.6} parent=5 // pred_check_branch
      %127 = sbr.rel (%p125) target = $region24
    $region23: #{sav_concat.6} parent=5 // pred_region
      // Predicated region
      $region25: #{sav_concat.6} parent=23 // pred_check
        %p128 = pneg %p29
      $region26: #{sav_concat.6} parent=23 // pred_check_branch
        %130 = sbr.rel (%p128) target = $region28
      $region27: #{sav_concat.6} parent=23 // pred_region
        %s131 = smul.u32 3, %s9
        %p132 = scmp.lt.s32.totalorder %s131, 5
        %s133 = scalar_select %p132, %s131, 5
        %s134 = smul.addr %s133, 3
        %s135 = smul.addr %s134, 4
        %s136 = scalar_lea.vmem %s0, %s135
        %s137 = smul.u32 3, %s9
      $region28: #{sav_concat.6} parent=23 // pred_fallthru
        _
    $region24: #{sav_concat.6} parent=5 // pred_fallthru
      _
    %p138 = scmp.le.s32.totalorder 1, %s9
    %p139 = scmp.lt.s32.totalorder %s9, 3
    %p140 = pnand %p138, %p139
    %p141 = pneg %p140
    // Predicated region
    $region29: #{sav_concat.6} parent=5 // pred_check
      _
    $region30: #{sav_concat.6} parent=5 // pred_check_branch
      %143 = sbr.rel (%p140) target = $region32
    $region31: #{sav_concat.6} parent=5 // pred_region
      %s144 = ssub.s32 %s9, 1
      %s145 = smul.u32 3, %s14
      %p146 = scmp.lt.s32.totalorder %s145, 5
      %s147 = scalar_select %p146, %s145, 5
      %s148 = smul.addr %s147, 3
      %s149 = smul.addr %s148, 4
      %s150 = scalar_lea.vmem %s0, %s149
      %p151 = pneg %p35
      %p152 = pneg %p32
      %p153 = pneg %p56
      %p154 = pneg %p53
      %p155 = pneg %p77
      %p156 = pneg %p74
      %p157 = pneg %p103
      %p158 = pneg %p100
      %s159 = smul.u32 3, %s14
      %p160 = scmp.lt.s32.totalorder %s159, 5
      %s161 = scalar_select %p160, %s159, 5
      %s162 = smul.addr %s161, 3
      %s163 = smul.addr %s162, 4
      %s164 = scalar_lea.vmem %s3, %s163
      %s165 = smul.u32 3, %s14
      %p166 = scmp.lt.s32.totalorder %s165, 5
      %s167 = scalar_select %p166, %s165, 5
      %s168 = smul.addr %s167, 3
      %s169 = smul.addr %s168, 4
      %s170 = scalar_lea.vmem %s0, %s169
      %s171 = smul.u32 3, %s14
      %s172 = smul.u32 3, %s14
      %p173 = scmp.lt.s32.totalorder %s172, 5
      %s174 = scalar_select %p173, %s172, 5
      %s175 = smul.addr %s174, 3
      %s176 = smul.addr %s175, 4
      %s177 = scalar_lea.vmem %s3, %s176
      %s178 = smul.u32 3, %s14
      %v180 = vld [vmem:[%s170] sm:$0xff]
      %v181 = vld [vmem:[%s170 + $0x8] sm:$0xf]
      %v182 = vld [vmem:[%s170 + $0xc] sm:$0xff]
      %v183 = vld [vmem:[%s170 + $0x14] sm:$0xf]
      %v184 = vld [vmem:[%s170 + $0x18] sm:$0xff]
      %v185 = vld [vmem:[%s170 + $0x20] sm:$0xf]
      %v186 = vld [vmem:[%s1] sm:$0xff]
      %v187 = vld [vmem:[%s1 + $0x8] sm:$0xf]
      %v188 = vld [vmem:[%s1 + $0xc] sm:$0xff]
      %v189 = vld [vmem:[%s1 + $0x14] sm:$0xf]
      %v190 = vld [vmem:[%s1 + $0x18] sm:$0xff]
      %v191 = vld [vmem:[%s1 + $0x20] sm:$0xf]
      %v192 = vld [vmem:[%s1 + $0x24] sm:$0xff]
      %v193 = vld [vmem:[%s1 + $0x2c] sm:$0xf]
      %v194 = vld [vmem:[%s1 + $0x30] sm:$0xff]
      %v195 = vld [vmem:[%s1 + $0x38] sm:$0xf]
      %v196 = vld [vmem:[%s1 + $0x3c] sm:$0xff]
      %v197 = vld [vmem:[%s1 + $0x44] sm:$0xf]
      %v198 = vld [vmem:[%s1 + $0x48] sm:$0xff]
      %v199 = vld [vmem:[%s1 + $0x50] sm:$0xf]
      %v200 = vld [vmem:[%s1 + $0x54] sm:$0xff]
      %v201 = vld [vmem:[%s1 + $0x5c] sm:$0xf]
      %v202 = vld [vmem:[%s1 + $0x60] sm:$0xff]
      %v203 = vld [vmem:[%s1 + $0x68] sm:$0xf]
      %v204 = vld [vmem:[%s1 + $0x6c] sm:$0xff]
      %v205 = vld [vmem:[%s1 + $0x74] sm:$0xf]
      %v206 = vld [vmem:[%s1 + $0x78] sm:$0xff]
      %v207 = vld [vmem:[%s1 + $0x80] sm:$0xf]
      %v208 = vld [vmem:[%s1 + $0x84] sm:$0xff]
      %v209 = vld [vmem:[%s1 + $0x8c] sm:$0xf]
      %v210 = vld [vmem:[%s1 + $0x90] sm:$0xff]
      %v211 = vld [vmem:[%s1 + $0x98] sm:$0xf]
      %v212 = vld [vmem:[%s1 + $0x9c] sm:$0xff]
      %v213 = vld [vmem:[%s1 + $0xa4] sm:$0xf]
      %v214 = vld [vmem:[%s1 + $0xa8] sm:$0xff]
      %v215 = vld [vmem:[%s1 + $0xb0] sm:$0xf]
      %v216 = vld [vmem:[%s1 + $0xb4] sm:$0xff]
      %v217 = vld [vmem:[%s1 + $0xbc] sm:$0xf]
      %v218 = vld [vmem:[%s1 + $0xc0] sm:$0xff]
      %v219 = vld [vmem:[%s1 + $0xc8] sm:$0xf]
      %v220 = vld [vmem:[%s1 + $0xcc] sm:$0xff]
      %v221 = vld [vmem:[%s1 + $0xd4] sm:$0xf]
      %v222 = vld [vmem:[%s1 + $0xd8] sm:$0xff]
      %v223 = vld [vmem:[%s1 + $0xe0] sm:$0xf]
      %v224 = vld [vmem:[%s1 + $0xe4] sm:$0xff]
      %v225 = vld [vmem:[%s1 + $0xec] sm:$0xf]
      %v226 = vld [vmem:[%s1 + $0xf0] sm:$0xff]
      %v227 = vld [vmem:[%s1 + $0xf8] sm:$0xf]
      %v228 = vld [vmem:[%s1 + $0xfc] sm:$0xff]
      %v229 = vld [vmem:[%s1 + $0x104] sm:$0xf]
      %v230 = vld [vmem:[%s1 + $0x108] sm:$0xff]
      %v231 = vld [vmem:[%s1 + $0x110] sm:$0xf]
      %v232 = vld [vmem:[%s1 + $0x114] sm:$0xff]
      %v233 = vld [vmem:[%s1 + $0x11c] sm:$0xf]
      %v234 = vld [vmem:[%s1 + $0x120] sm:$0xff]
      %v235 = vld [vmem:[%s1 + $0x128] sm:$0xf]
      %v236 = vld [vmem:[%s1 + $0x12c] sm:$0xff]
      %v237 = vld [vmem:[%s1 + $0x134] sm:$0xf]
      %v238 = vld [vmem:[%s1 + $0x138] sm:$0xff]
      %v239 = vld [vmem:[%s1 + $0x140] sm:$0xf]
      %v240 = vld [vmem:[%s1 + $0x144] sm:$0xff]
      %v241 = vld [vmem:[%s1 + $0x14c] sm:$0xf]
      %v242 = vld [vmem:[%s1 + $0x150] sm:$0xff]
      %v243 = vld [vmem:[%s1 + $0x158] sm:$0xf]
      %v244 = vld [vmem:[%s1 + $0x15c] sm:$0xff]
      %v245 = vld [vmem:[%s1 + $0x164] sm:$0xf]
      %v246 = vld [vmem:[%s1 + $0x168] sm:$0xff]
      %v247 = vld [vmem:[%s1 + $0x170] sm:$0xf]
      %v248 = vld [vmem:[%s1 + $0x174] sm:$0xff]
      %v249 = vld [vmem:[%s1 + $0x17c] sm:$0xf]
      %v250 = vld [vmem:[%s1 + $0x180] sm:$0xff]
      %v251 = vld [vmem:[%s1 + $0x188] sm:$0xf]
      %v252 = vld [vmem:[%s1 + $0x18c] sm:$0xff]
      %v253 = vld [vmem:[%s1 + $0x194] sm:$0xf]
      %v254 = vld [vmem:[%s1 + $0x198] sm:$0xff]
      %v255 = vld [vmem:[%s1 + $0x1a0] sm:$0xf]
      %v256 = vld [vmem:[%s1 + $0x1a4] sm:$0xff]
      %v257 = vld [vmem:[%s1 + $0x1ac] sm:$0xf]
      %v258 = vld [vmem:[%s1 + $0x1b0] sm:$0xff]
      %v259 = vld [vmem:[%s1 + $0x1b8] sm:$0xf]
      %v260 = vld [vmem:[%s1 + $0x1bc] sm:$0xff]
      %v261 = vld [vmem:[%s1 + $0x1c4] sm:$0xf]
      %v262 = vld [vmem:[%s1 + $0x1c8] sm:$0xff]
      %v263 = vld [vmem:[%s1 + $0x1d0] sm:$0xf]
      %v264 = vld [vmem:[%s1 + $0x1d4] sm:$0xff]
      %v265 = vld [vmem:[%s1 + $0x1dc] sm:$0xf]
      %v266 = vld [vmem:[%s1 + $0x1e0] sm:$0xff]
      %v267 = vld [vmem:[%s1 + $0x1e8] sm:$0xf]
      %v268 = vld [vmem:[%s1 + $0x1ec] sm:$0xff]
      %v269 = vld [vmem:[%s1 + $0x1f4] sm:$0xf]
      %v270 = vld [vmem:[%s1 + $0x1f8] sm:$0xff]
      %v271 = vld [vmem:[%s1 + $0x200] sm:$0xf]
      %v272 = vld [vmem:[%s1 + $0x204] sm:$0xff]
      %v273 = vld [vmem:[%s1 + $0x20c] sm:$0xf]
      %v274 = vld [vmem:[%s1 + $0x210] sm:$0xff]
      %v275 = vld [vmem:[%s1 + $0x218] sm:$0xf]
      %v276 = vld [vmem:[%s1 + $0x21c] sm:$0xff]
      %v277 = vld [vmem:[%s1 + $0x224] sm:$0xf]
      %v278 = vld [vmem:[%s1 + $0x228] sm:$0xff]
      %v279 = vld [vmem:[%s1 + $0x230] sm:$0xf]
      %v280 = vld [vmem:[%s1 + $0x234] sm:$0xff]
      %v281 = vld [vmem:[%s1 + $0x23c] sm:$0xf]
      %v282 = vld [vmem:[%s2] sm:$0x7]
      %v284 = vlaneseq
      %v285 = vshrl.u32 %v284, 7
      %v286 = vsub.s32 0, %v285
      %v287 = vrot.slane %v282, %v286
      %v288 = vlaneseq
      %v289 = vshrl.u32 %v288, 7
      %v290 = vsub.s32 1, %v289
      %v291 = vrot.slane %v282, %v290
      %v292 = vlaneseq
      %v293 = vshrl.u32 %v292, 7
      %v294 = vsub.s32 2, %v293
      %v295 = vrot.slane %v282, %v294
      %v305 = vunpack.c.l.b16 %v180
      %v306 = vunpack.c.h.b16 %v180
      %v307 = vunpack.c.l.b16 %v181
      %v308 = vunpack.c.l.b16 %v182
      %v309 = vunpack.c.h.b16 %v182
      %v310 = vunpack.c.l.b16 %v183
      %v311 = vunpack.c.l.b16 %v184
      %v312 = vunpack.c.h.b16 %v184
      %v313 = vunpack.c.l.b16 %v185
      %v314 = vpack.c.b16 %v308, %v305
      %v315 = vpack.c.b16 %v309, %v306
      %v316 = vpack.c.b16 %v310, %v307
      %v317 = vpack.c.b16 %v311, %v311
      %v318 = vpack.c.b16 %v312, %v312
      %v319 = vpack.c.b16 %v313, %v313
      %v422 = vunpack.c.l.b16 %v186
      %v423 = vunpack.c.h.b16 %v186
      %v424 = vunpack.c.l.b16 %v187
      %v425 = vunpack.c.l.b16 %v188
      %v426 = vunpack.c.h.b16 %v188
      %v427 = vunpack.c.l.b16 %v189
      %v428 = vunpack.c.l.b16 %v190
      %v429 = vunpack.c.h.b16 %v190
      %v430 = vunpack.c.l.b16 %v191
      %v431 = vunpack.c.l.b16 %v192
      %v432 = vunpack.c.h.b16 %v192
      %v433 = vunpack.c.l.b16 %v193
      %v434 = vunpack.c.l.b16 %v194
      %v435 = vunpack.c.h.b16 %v194
      %v436 = vunpack.c.l.b16 %v195
      %v437 = vunpack.c.l.b16 %v196
      %v438 = vunpack.c.h.b16 %v196
      %v439 = vunpack.c.l.b16 %v197
      %v440 = vunpack.c.l.b16 %v198
      %v441 = vunpack.c.h.b16 %v198
      %v442 = vunpack.c.l.b16 %v199
      %v443 = vunpack.c.l.b16 %v200
      %v444 = vunpack.c.h.b16 %v200
      %v445 = vunpack.c.l.b16 %v201
      %v446 = vunpack.c.l.b16 %v202
      %v447 = vunpack.c.h.b16 %v202
      %v448 = vunpack.c.l.b16 %v203
      %v449 = vunpack.c.l.b16 %v204
      %v450 = vunpack.c.h.b16 %v204
      %v451 = vunpack.c.l.b16 %v205
      %v452 = vunpack.c.l.b16 %v206
      %v453 = vunpack.c.h.b16 %v206
      %v454 = vunpack.c.l.b16 %v207
      %v455 = vunpack.c.l.b16 %v208
      %v456 = vunpack.c.h.b16 %v208
      %v457 = vunpack.c.l.b16 %v209
      %v458 = vunpack.c.l.b16 %v210
      %v459 = vunpack.c.h.b16 %v210
      %v460 = vunpack.c.l.b16 %v211
      %v461 = vunpack.c.l.b16 %v212
      %v462 = vunpack.c.h.b16 %v212
      %v463 = vunpack.c.l.b16 %v213
      %v464 = vunpack.c.l.b16 %v214
      %v465 = vunpack.c.h.b16 %v214
      %v466 = vunpack.c.l.b16 %v215
      %v467 = vunpack.c.l.b16 %v216
      %v468 = vunpack.c.h.b16 %v216
      %v469 = vunpack.c.l.b16 %v217
      %v470 = vunpack.c.l.b16 %v218
      %v471 = vunpack.c.h.b16 %v218
      %v472 = vunpack.c.l.b16 %v219
      %v473 = vunpack.c.l.b16 %v220
      %v474 = vunpack.c.h.b16 %v220
      %v475 = vunpack.c.l.b16 %v221
      %v476 = vunpack.c.l.b16 %v222
      %v477 = vunpack.c.h.b16 %v222
      %v478 = vunpack.c.l.b16 %v223
      %v479 = vunpack.c.l.b16 %v224
      %v480 = vunpack.c.h.b16 %v224
      %v481 = vunpack.c.l.b16 %v225
      %v482 = vunpack.c.l.b16 %v226
      %v483 = vunpack.c.h.b16 %v226
      %v484 = vunpack.c.l.b16 %v227
      %v485 = vunpack.c.l.b16 %v228
      %v486 = vunpack.c.h.b16 %v228
      %v487 = vunpack.c.l.b16 %v229
      %v488 = vunpack.c.l.b16 %v230
      %v489 = vunpack.c.h.b16 %v230
      %v490 = vunpack.c.l.b16 %v231
      %v491 = vunpack.c.l.b16 %v232
      %v492 = vunpack.c.h.b16 %v232
      %v493 = vunpack.c.l.b16 %v233
      %v494 = vunpack.c.l.b16 %v234
      %v495 = vunpack.c.h.b16 %v234
      %v496 = vunpack.c.l.b16 %v235
      %v497 = vunpack.c.l.b16 %v236
      %v498 = vunpack.c.h.b16 %v236
      %v499 = vunpack.c.l.b16 %v237
      %v500 = vunpack.c.l.b16 %v238
      %v501 = vunpack.c.h.b16 %v238
      %v502 = vunpack.c.l.b16 %v239
      %v503 = vunpack.c.l.b16 %v240
      %v504 = vunpack.c.h.b16 %v240
      %v505 = vunpack.c.l.b16 %v241
      %v506 = vunpack.c.l.b16 %v242
      %v507 = vunpack.c.h.b16 %v242
      %v508 = vunpack.c.l.b16 %v243
      %v509 = vunpack.c.l.b16 %v244
      %v510 = vunpack.c.h.b16 %v244
      %v511 = vunpack.c.l.b16 %v245
      %v512 = vunpack.c.l.b16 %v246
      %v513 = vunpack.c.h.b16 %v246
      %v514 = vunpack.c.l.b16 %v247
      %v515 = vunpack.c.l.b16 %v248
      %v516 = vunpack.c.h.b16 %v248
      %v517 = vunpack.c.l.b16 %v249
      %v518 = vunpack.c.l.b16 %v250
      %v519 = vunpack.c.h.b16 %v250
      %v520 = vunpack.c.l.b16 %v251
      %v521 = vunpack.c.l.b16 %v252
      %v522 = vunpack.c.h.b16 %v252
      %v523 = vunpack.c.l.b16 %v253
      %v524 = vunpack.c.l.b16 %v254
      %v525 = vunpack.c.h.b16 %v254
      %v526 = vunpack.c.l.b16 %v255
      %v527 = vunpack.c.l.b16 %v256
      %v528 = vunpack.c.h.b16 %v256
      %v529 = vunpack.c.l.b16 %v257
      %v530 = vunpack.c.l.b16 %v258
      %v531 = vunpack.c.h.b16 %v258
      %v532 = vunpack.c.l.b16 %v259
      %v533 = vunpack.c.l.b16 %v260
      %v534 = vunpack.c.h.b16 %v260
      %v535 = vunpack.c.l.b16 %v261
      %v536 = vunpack.c.l.b16 %v262
      %v537 = vunpack.c.h.b16 %v262
      %v538 = vunpack.c.l.b16 %v263
      %v539 = vunpack.c.l.b16 %v264
      %v540 = vunpack.c.h.b16 %v264
      %v541 = vunpack.c.l.b16 %v265
      %v542 = vunpack.c.l.b16 %v266
      %v543 = vunpack.c.h.b16 %v266
      %v544 = vunpack.c.l.b16 %v267
      %v545 = vunpack.c.l.b16 %v268
      %v546 = vunpack.c.h.b16 %v268
      %v547 = vunpack.c.l.b16 %v269
      %v548 = vunpack.c.l.b16 %v270
      %v549 = vunpack.c.h.b16 %v270
      %v550 = vunpack.c.l.b16 %v271
      %v551 = vunpack.c.l.b16 %v272
      %v552 = vunpack.c.h.b16 %v272
      %v553 = vunpack.c.l.b16 %v273
      %v554 = vunpack.c.l.b16 %v274
      %v555 = vunpack.c.h.b16 %v274
      %v556 = vunpack.c.l.b16 %v275
      %v557 = vunpack.c.l.b16 %v276
      %v558 = vunpack.c.h.b16 %v276
      %v559 = vunpack.c.l.b16 %v277
      %v560 = vunpack.c.l.b16 %v278
      %v561 = vunpack.c.h.b16 %v278
      %v562 = vunpack.c.l.b16 %v279
      %v563 = vunpack.c.l.b16 %v280
      %v564 = vunpack.c.h.b16 %v280
      %v565 = vunpack.c.l.b16 %v281
      %v566 = vpack.c.b16 %v425, %v422
      %v567 = vpack.c.b16 %v426, %v423
      %v568 = vpack.c.b16 %v427, %v424
      %v569 = vpack.c.b16 %v431, %v428
      %v570 = vpack.c.b16 %v432, %v429
      %v571 = vpack.c.b16 %v433, %v430
      %v572 = vpack.c.b16 %v437, %v434
      %v573 = vpack.c.b16 %v438, %v435
      %v574 = vpack.c.b16 %v439, %v436
      %v575 = vpack.c.b16 %v443, %v440
      %v576 = vpack.c.b16 %v444, %v441
      %v577 = vpack.c.b16 %v445, %v442
      %v578 = vpack.c.b16 %v449, %v446
      %v579 = vpack.c.b16 %v450, %v447
      %v580 = vpack.c.b16 %v451, %v448
      %v581 = vpack.c.b16 %v455, %v452
      %v582 = vpack.c.b16 %v456, %v453
      %v583 = vpack.c.b16 %v457, %v454
      %v584 = vpack.c.b16 %v461, %v458
      %v585 = vpack.c.b16 %v462, %v459
      %v586 = vpack.c.b16 %v463, %v460
      %v587 = vpack.c.b16 %v467, %v464
      %v588 = vpack.c.b16 %v468, %v465
      %v589 = vpack.c.b16 %v469, %v466
      %v590 = vpack.c.b16 %v473, %v470
      %v591 = vpack.c.b16 %v474, %v471
      %v592 = vpack.c.b16 %v475, %v472
      %v593 = vpack.c.b16 %v479, %v476
      %v594 = vpack.c.b16 %v480, %v477
      %v595 = vpack.c.b16 %v481, %v478
      %v596 = vpack.c.b16 %v485, %v482
      %v597 = vpack.c.b16 %v486, %v483
      %v598 = vpack.c.b16 %v487, %v484
      %v599 = vpack.c.b16 %v491, %v488
      %v600 = vpack.c.b16 %v492, %v489
      %v601 = vpack.c.b16 %v493, %v490
      %v602 = vpack.c.b16 %v497, %v494
      %v603 = vpack.c.b16 %v498, %v495
      %v604 = vpack.c.b16 %v499, %v496
      %v605 = vpack.c.b16 %v503, %v500
      %v606 = vpack.c.b16 %v504, %v501
      %v607 = vpack.c.b16 %v505, %v502
      %v608 = vpack.c.b16 %v509, %v506
      %v609 = vpack.c.b16 %v510, %v507
      %v610 = vpack.c.b16 %v511, %v508
      %v611 = vpack.c.b16 %v515, %v512
      %v612 = vpack.c.b16 %v516, %v513
      %v613 = vpack.c.b16 %v517, %v514
      %v614 = vpack.c.b16 %v521, %v518
      %v615 = vpack.c.b16 %v522, %v519
      %v616 = vpack.c.b16 %v523, %v520
      %v617 = vpack.c.b16 %v527, %v524
      %v618 = vpack.c.b16 %v528, %v525
      %v619 = vpack.c.b16 %v529, %v526
      %v620 = vpack.c.b16 %v533, %v530
      %v621 = vpack.c.b16 %v534, %v531
      %v622 = vpack.c.b16 %v535, %v532
      %v623 = vpack.c.b16 %v539, %v536
      %v624 = vpack.c.b16 %v540, %v537
      %v625 = vpack.c.b16 %v541, %v538
      %v626 = vpack.c.b16 %v545, %v542
      %v627 = vpack.c.b16 %v546, %v543
      %v628 = vpack.c.b16 %v547, %v544
      %v629 = vpack.c.b16 %v551, %v548
      %v630 = vpack.c.b16 %v552, %v549
      %v631 = vpack.c.b16 %v553, %v550
      %v632 = vpack.c.b16 %v557, %v554
      %v633 = vpack.c.b16 %v558, %v555
      %v634 = vpack.c.b16 %v559, %v556
      %v635 = vpack.c.b16 %v563, %v560
      %v636 = vpack.c.b16 %v564, %v561
      %v637 = vpack.c.b16 %v565, %v562
      %710 = vmatprep.subr.bf16.mxu0 %v567
      %711 = vmatpush1.bf16.msra.mxu0 %v566
      %712 = vmatprep.subr.bf16.mxu0 %v570
      %713 = vmatpush1.bf16.msra.mxu0 %v569
      %714 = vmatprep.subr.bf16.mxu0 %v573
      %715 = vmatpush1.bf16.msra.mxu0 %v572
      %716 = vmatprep.subr.bf16.mxu0 %v576
      %717 = vmatpush1.bf16.msra.mxu0 %v575
      %718 = vmatprep.subr.bf16.mxu0 %v579
      %719 = vmatpush1.bf16.msra.mxu0 %v578
      %720 = vmatprep.subr.bf16.mxu0 %v582
      %721 = vmatpush1.bf16.msra.mxu0 %v581
      %722 = vmatprep.subr.bf16.mxu0 %v585
      %723 = vmatpush1.bf16.msra.mxu0 %v584
      %724 = vmatprep.subr.bf16.mxu0 %v588
      %725 = vmatpush1.bf16.msra.mxu0 %v587
      %726 = vmatprep.subr.bf16.mxu0 %v591
      %727 = vmatpush1.bf16.msra.mxu0 %v590
      %728 = vmatprep.subr.bf16.mxu0 %v594
      %729 = vmatpush1.bf16.msra.mxu0 %v593
      %730 = vmatprep.subr.bf16.mxu0 %v597
      %731 = vmatpush1.bf16.msra.mxu0 %v596
      %732 = vmatprep.subr.bf16.mxu0 %v600
      %733 = vmatpush1.bf16.msra.mxu0 %v599
      %734 = vmatprep.subr.bf16.mxu0 %v603
      %735 = vmatpush1.bf16.msra.mxu0 %v602
      %736 = vmatprep.subr.bf16.mxu0 %v606
      %737 = vmatpush1.bf16.msra.mxu0 %v605
      %738 = vmatprep.subr.bf16.mxu0 %v609
      %739 = vmatpush1.bf16.msra.mxu0 %v608
      %740 = vmatprep.subr.bf16.mxu0 %v612
      %741 = vmatpush1.bf16.msra.mxu0 %v611
      %742 = vmatprep.mubr.bf16.mxu0 %v315
      %743 = vmatmul.mubr.bf16.gmra.mrb[0].mxu0 %v314
      %v744 = vpop.f32.mrb[0].mxu0
      %v745 = vadd.f32 %v287, %v744
      %v746 = vpop.f32.mrb[0].mxu0
      %v747 = vadd.f32 %v291, %v746
      %v748 = vpop.f32.mrb[0].mxu0
      %v749 = vadd.f32 %v287, %v748
      %v750 = vpop.f32.mrb[0].mxu0
      %v751 = vadd.f32 %v291, %v750
      %752 = vmatprep.mubr.bf16.mxu0 %v318
      %753 = vmatmul.mubr.bf16.gmra.mrb[0].mxu0 %v317
      %v754 = vpop.f32.mrb[0].mxu0
      %v755 = vadd.f32 %v287, %v754
      %v756 = vpop.f32.mrb[0].mxu0
      %v757 = vadd.f32 %v291, %v756
      %v758 = vpop.f32.mrb[0].mxu0
      %v759 = vpop.f32.mrb[0].mxu0
      %760 = vdwg.mxu0
      %761 = vmatprep.subr.bf16.mxu0 %v615
      %762 = vmatpush1.bf16.msra.mxu0 %v614
      %763 = vmatprep.subr.bf16.mxu0 %v618
      %764 = vmatpush1.bf16.msra.mxu0 %v617
      %765 = vmatprep.subr.bf16.mxu0 %v621
      %766 = vmatpush1.bf16.msra.mxu0 %v620
      %767 = vmatprep.subr.bf16.mxu0 %v624
      %768 = vmatpush1.bf16.msra.mxu0 %v623
      %769 = vmatprep.subr.bf16.mxu0 %v627
      %770 = vmatpush1.bf16.msra.mxu0 %v626
      %771 = vmatprep.subr.bf16.mxu0 %v630
      %772 = vmatpush1.bf16.msra.mxu0 %v629
      %773 = vmatprep.subr.bf16.mxu0 %v633
      %774 = vmatpush1.bf16.msra.mxu0 %v632
      %775 = vmatprep.subr.bf16.mxu0 %v636
      %776 = vmatpush1.bf16.msra.mxu0 %v635
      %777 = vmatprep.subr.bf16.mxu0 0
      %778 = vmatpush1.bf16.msra.mxu0 0
      %779 = vmatprep.subr.bf16.mxu0 0
      %780 = vmatpush1.bf16.msra.mxu0 0
      %781 = vmatprep.subr.bf16.mxu0 0
      %782 = vmatpush1.bf16.msra.mxu0 0
      %783 = vmatprep.subr.bf16.mxu0 0
      %784 = vmatpush1.bf16.msra.mxu0 0
      %785 = vmatprep.subr.bf16.mxu0 0
      %786 = vmatpush1.bf16.msra.mxu0 0
      %787 = vmatprep.subr.bf16.mxu0 0
      %788 = vmatpush1.bf16.msra.mxu0 0
      %789 = vmatprep.subr.bf16.mxu0 0
      %790 = vmatpush1.bf16.msra.mxu0 0
      %791 = vmatprep.subr.bf16.mxu0 0
      %792 = vmatpush1.bf16.msra.mxu0 0
      %793 = vmatprep.mubr.bf16.mxu0 0
      %794 = vmatmul.mubr.bf16.gmra.mrb[0].mxu0 %v316
      %v795 = vpop.f32.mrb[0].mxu0
      %v796 = vadd.f32 %v745, %v795
      %v797 = vpop.f32.mrb[0].mxu0
      %v798 = vadd.f32 %v747, %v797
      %v799 = vpop.f32.mrb[0].mxu0
      %v800 = vadd.f32 %v749, %v799
      %v801 = vpop.f32.mrb[0].mxu0
      %v802 = vadd.f32 %v751, %v801
      %803 = vmatprep.mubr.bf16.mxu0 0
      %804 = vmatmul.mubr.bf16.gmra.mrb[0].mxu0 %v319
      %v805 = vpop.f32.mrb[0].mxu0
      %v806 = vadd.f32 %v755, %v805
      %v807 = vpop.f32.mrb[0].mxu0
      %v808 = vadd.f32 %v757, %v807
      %v809 = vpop.f32.mrb[0].mxu0
      %v810 = vpop.f32.mrb[0].mxu0
      %811 = vdwg.mxu0
      %812 = vmatprep.subr.bf16.mxu0 0
      %813 = vmatpush1.bf16.msra.mxu0 %v568
      %814 = vmatprep.subr.bf16.mxu0 0
      %815 = vmatpush1.bf16.msra.mxu0 %v571
      %816 = vmatprep.subr.bf16.mxu0 0
      %817 = vmatpush1.bf16.msra.mxu0 %v574
      %818 = vmatprep.subr.bf16.mxu0 0
      %819 = vmatpush1.bf16.msra.mxu0 %v577
      %820 = vmatprep.subr.bf16.mxu0 0
      %821 = vmatpush1.bf16.msra.mxu0 %v580
      %822 = vmatprep.subr.bf16.mxu0 0
      %823 = vmatpush1.bf16.msra.mxu0 %v583
      %824 = vmatprep.subr.bf16.mxu0 0
      %825 = vmatpush1.bf16.msra.mxu0 %v586
      %826 = vmatprep.subr.bf16.mxu0 0
      %827 = vmatpush1.bf16.msra.mxu0 %v589
      %828 = vmatprep.subr.bf16.mxu0 0
      %829 = vmatpush1.bf16.msra.mxu0 %v592
      %830 = vmatprep.subr.bf16.mxu0 0
      %831 = vmatpush1.bf16.msra.mxu0 %v595
      %832 = vmatprep.subr.bf16.mxu0 0
      %833 = vmatpush1.bf16.msra.mxu0 %v598
      %834 = vmatprep.subr.bf16.mxu0 0
      %835 = vmatpush1.bf16.msra.mxu0 %v601
      %836 = vmatprep.subr.bf16.mxu0 0
      %837 = vmatpush1.bf16.msra.mxu0 %v604
      %838 = vmatprep.subr.bf16.mxu0 0
      %839 = vmatpush1.bf16.msra.mxu0 %v607
      %840 = vmatprep.subr.bf16.mxu0 0
      %841 = vmatpush1.bf16.msra.mxu0 %v610
      %842 = vmatprep.subr.bf16.mxu0 0
      %843 = vmatpush1.bf16.msra.mxu0 %v613
      %844 = vmatprep.mubr.bf16.mxu0 %v315
      %845 = vmatmul.mubr.bf16.gmra.mrb[0].mxu0 %v314
      %v846 = vpop.f32.mrb[0].mxu0
      %v847 = vadd.f32 %v295, %v846
      %v848 = vpop.f32.mrb[0].mxu0
      %v849 = vpop.f32.mrb[0].mxu0
      %v850 = vadd.f32 %v295, %v849
      %v851 = vpop.f32.mrb[0].mxu0
      %852 = vmatprep.mubr.bf16.mxu0 %v318
      %853 = vmatmul.mubr.bf16.gmra.mrb[0].mxu0 %v317
      %v854 = vpop.f32.mrb[0].mxu0
      %v855 = vadd.f32 %v295, %v854
      %v856 = vpop.f32.mrb[0].mxu0
      %v857 = vpop.f32.mrb[0].mxu0
      %v858 = vpop.f32.mrb[0].mxu0
      %859 = vdwg.mxu0
      %860 = vmatprep.subr.bf16.mxu0 0
      %861 = vmatpush1.bf16.msra.mxu0 %v616
      %862 = vmatprep.subr.bf16.mxu0 0
      %863 = vmatpush1.bf16.msra.mxu0 %v619
      %864 = vmatprep.subr.bf16.mxu0 0
      %865 = vmatpush1.bf16.msra.mxu0 %v622
      %866 = vmatprep.subr.bf16.mxu0 0
      %867 = vmatpush1.bf16.msra.mxu0 %v625
      %868 = vmatprep.subr.bf16.mxu0 0
      %869 = vmatpush1.bf16.msra.mxu0 %v628
      %870 = vmatprep.subr.bf16.mxu0 0
      %871 = vmatpush1.bf16.msra.mxu0 %v631
      %872 = vmatprep.subr.bf16.mxu0 0
      %873 = vmatpush1.bf16.msra.mxu0 %v634
      %874 = vmatprep.subr.bf16.mxu0 0
      %875 = vmatpush1.bf16.msra.mxu0 %v637
      %876 = vmatprep.subr.bf16.mxu0 0
      %877 = vmatpush1.bf16.msra.mxu0 0
      %878 = vmatprep.subr.bf16.mxu0 0
      %879 = vmatpush1.bf16.msra.mxu0 0
      %880 = vmatprep.subr.bf16.mxu0 0
      %881 = vmatpush1.bf16.msra.mxu0 0
      %882 = vmatprep.subr.bf16.mxu0 0
      %883 = vmatpush1.bf16.msra.mxu0 0
      %884 = vmatprep.subr.bf16.mxu0 0
      %885 = vmatpush1.bf16.msra.mxu0 0
      %886 = vmatprep.subr.bf16.mxu0 0
      %887 = vmatpush1.bf16.msra.mxu0 0
      %888 = vmatprep.subr.bf16.mxu0 0
      %889 = vmatpush1.bf16.msra.mxu0 0
      %890 = vmatprep.subr.bf16.mxu0 0
      %891 = vmatpush1.bf16.msra.mxu0 0
      %892 = vmatprep.mubr.bf16.mxu0 0
      %893 = vmatmul.mubr.bf16.gmra.mrb[0].mxu0 %v316
      %v894 = vpop.f32.mrb[0].mxu0
      %v895 = vadd.f32 %v847, %v894
      %v896 = vpop.f32.mrb[0].mxu0
      %v897 = vpop.f32.mrb[0].mxu0
      %v898 = vadd.f32 %v850, %v897
      %v899 = vpop.f32.mrb[0].mxu0
      %900 = vmatprep.mubr.bf16.mxu0 0
      %901 = vmatmul.mubr.bf16.gmra.mrb[0].mxu0 %v319
      %v902 = vpop.f32.mrb[0].mxu0
      %v903 = vadd.f32 %v855, %v902
      %v904 = vpop.f32.mrb[0].mxu0
      %v905 = vpop.f32.mrb[0].mxu0
      %v906 = vpop.f32.mrb[0].mxu0
      %907 = vdwg.mxu0
      %vm908 = vcmp.gt.f32.partialorder %v796, 0.0
      %vm909 = vcmp.gt.f32.partialorder %v798, 0.0
      %vm910 = vcmp.gt.f32.partialorder %v895, 0.0
      %vm911 = vcmp.gt.f32.partialorder %v800, 0.0
      %vm912 = vcmp.gt.f32.partialorder %v802, 0.0
      %vm913 = vcmp.gt.f32.partialorder %v898, 0.0
      %vm914 = vcmp.gt.f32.partialorder %v806, 0.0
      %vm915 = vcmp.gt.f32.partialorder %v808, 0.0
      %vm916 = vcmp.gt.f32.partialorder %v903, 0.0
      %v917 = vmul.f32 %v796, 0.2
      %v918 = vmul.f32 %v798, 0.2
      %v919 = vmul.f32 %v895, 0.2
      %v920 = vmul.f32 %v800, 0.2
      %v921 = vmul.f32 %v802, 0.2
      %v922 = vmul.f32 %v898, 0.2
      %v923 = vmul.f32 %v806, 0.2
      %v924 = vmul.f32 %v808, 0.2
      %v925 = vmul.f32 %v903, 0.2
      %v926 = vsel %vm908, %v796, %v917
      %v927 = vsel %vm909, %v798, %v918
      %v928 = vsel %vm910, %v895, %v919
      %v929 = vsel %vm911, %v800, %v920
      %v930 = vsel %vm912, %v802, %v921
      %v931 = vsel %vm913, %v898, %v922
      %v932 = vsel %vm914, %v806, %v923
      %v933 = vsel %vm915, %v808, %v924
      %v934 = vsel %vm916, %v903, %v925
      %v935 = vpack.c.bf16 %v929, %v926
      %v936 = vpack.c.bf16 %v930, %v927
      %v937 = vpack.c.bf16 %v931, %v928
      %v938 = vpack.c.bf16 %v932, %v932
      %v939 = vpack.c.bf16 %v933, %v933
      %v940 = vpack.c.bf16 %v934, %v934
      %v947 = vunpack.c.l.b16 %v935
      %v948 = vunpack.c.l.b16 %v936
      %v949 = vunpack.c.l.b16 %v937
      %v950 = vunpack.c.h.b16 %v935
      %v951 = vunpack.c.h.b16 %v936
      %v952 = vunpack.c.h.b16 %v937
      %v953 = vunpack.c.l.b16 %v938
      %v954 = vunpack.c.l.b16 %v939
      %v955 = vunpack.c.l.b16 %v940
      %v956 = vpack.c.b16 %v948, %v947
      %v957 = vpack.c.b16 %v949, %v949
      %v958 = vpack.c.b16 %v951, %v950
      %v959 = vpack.c.b16 %v952, %v952
      %v960 = vpack.c.b16 %v954, %v953
      %v961 = vpack.c.b16 %v955, %v955
      %968 = vst [vmem:[%s177] sm:$0xff] %v956
      %969 = vst [vmem:[%s177 + $0x8] sm:$0xf] %v957
      %970 = vst [vmem:[%s177 + $0xc] sm:$0xff] %v958
      %971 = vst [vmem:[%s177 + $0x14] sm:$0xf] %v959
      %972 = vst [vmem:[%s177 + $0x18] sm:$0xff] %v960
      %973 = vst [vmem:[%s177 + $0x20] sm:$0xf] %v961
      %s974 = smul.u32 3, %s14
      %p975 = scmp.lt.s32.totalorder %s974, 5
      %s976 = scalar_select %p975, %s974, 5
      %s977 = smul.addr %s976, 3
      %s978 = smul.addr %s977, 4
      %s979 = scalar_lea.vmem %s3, %s978
      // Predicated region
      $region33: #{sav_concat.6} parent=31 // pred_check
        %p980 = pneg %p100
      $region34: #{sav_concat.6} parent=31 // pred_check_branch
        %982 = sbr.rel (%p980) target = $region36
      $region35: #{sav_concat.6} parent=31 // pred_region
        %s983 = smul.u32 3, %s14
      $region36: #{sav_concat.6} parent=31 // pred_fallthru
        _
    $region32: #{sav_concat.6} parent=5 // pred_fallthru
      _
    %p984 = scmp.le.s32.totalorder 2, %s9
    // Predicated region
    $region37: #{sav_concat.6} parent=5 // pred_check
      %p985 = pneg %p984
    $region38: #{sav_concat.6} parent=5 // pred_check_branch
      %987 = sbr.rel (%p985) target = $region40
    $region39: #{sav_concat.6} parent=5 // pred_region
      %s988 = ssub.s32 %s9, 2
      // Predicated region
      $region41: #{sav_concat.6} parent=39 // pred_check
        %p989 = pneg %p106
      $region42: #{sav_concat.6} parent=39 // pred_check_branch
        %991 = sbr.rel (%p989) target = $region44
      $region43: #{sav_concat.6} parent=39 // pred_region
        %s992 = smul.u32 3, %s15
        %p993 = scmp.lt.s32.totalorder %s992, 5
        %s994 = scalar_select %p993, %s992, 5
        %s995 = smul.addr %s994, 3
        %s996 = smul.addr %s995, 4
        %s997 = scalar_lea.vmem %s3, %s996
      $region44: #{sav_concat.6} parent=39 // pred_fallthru
        _
    $region40: #{sav_concat.6} parent=5 // pred_fallthru
      _
  $region6: #{sav_concat.6} parent=0 // loop_footer
    %s13 = sadd.s32 1, %s9
  $region7: #{sav_concat.6} parent=0 // loop_footer_branch
    %8 = sbr.rel target = $region3
  $region8: #{sav_concat.6} parent=0 // loop_exit
    _

// kernel: sav_concat.7
$region0: #{sav_concat.7}
  #allocation0 [shape = 'u32[]', space=smem, size = 0x4, offset = 0x4, fixed_abs, tag = 'smem constant byte address 0x4 - core index']
  #allocation1 [shape = 'u32[144,128]{1,0:T(1,128)}', space=vmem, size = 0x12000, scoped, tag = 'internal scratch']
  %s0 = inlined_call_operand.vmem [shape: bf16[48,384], index: 0, kind: input, shape index: {}]
  %s1 = inlined_call_operand.vmem [shape: bf16[384,384], index: 1, kind: input, shape index: {}]
  %s2 = inlined_call_operand.vmem [shape: f32[1,384], index: 2, kind: input, shape index: {}]
  %s3 = inlined_call_operand.vmem [shape: f32[48,384], index: 3, kind: output, shape index: {}]
  %s4 = sld [smem:[#allocation0]]
  $region45: #{sav_concat.7} parent=0
    _
  %s6 = ssub.s32 1, %s4
  %s7 = scalar_select 0, %s6, %s4
  loop: start=0, step=1, limit=4
  $region2: #{sav_concat.7} parent=0 // loop_pre_header
    _
  $region3: #{sav_concat.7} parent=0 // loop_header
    %s9 = sphi 0, %s13
    %p10 = scmp.ge.s32.totalorder %s9, 4
    %s19 = sphi 0, %s21
    %s22 = sphi 0, %s19
    %s23 = sphi 0, %s22
    %s39 = sphi 0, %s23
    %s43 = sphi 0, %s43
    %s45 = sphi 0, %s43
    %s46 = sphi 0, %s45
    %s60 = sphi 0, %s46
    %s64 = sphi 0, %s64
    %s66 = sphi 0, %s64
    %s67 = sphi 0, %s66
    %s81 = sphi 0, %s67
    %s87 = sphi 0, %s89
    %s90 = sphi 0, %s87
    %s91 = sphi 0, %s90
    %s107 = sphi 0, %s91
  $region4: #{sav_concat.7} parent=0 // loop_header_branch
    %12 = sbr.rel (%p10) target = $region8
  $region5: #{sav_concat.7} parent=0 // loop_body
    %s14 = ssub.s32 %s9, 1
    %s15 = ssub.s32 %s9, 2
    %s16 = sadd.s32 %s9, 1
    %s17 = ssub.s32 %s9, %s16
    %p18 = scmp.eq.s32.totalorder %s17, 0
    %s20 = sadd.s32 %s19, 1
    %s21 = scalar_select %p18, %s19, %s20
    %p24 = pneg %p18
    %p25 = scmp.eq.s32.totalorder %s9, 1
    %p26 = por %p24, %p25
    %p27 = scmp.ne.s32.totalorder %s19, %s22
    %p28 = scmp.eq.s32.totalorder %s9, 0
    %p29 = por %p27, %p28
    %p30 = scmp.ne.s32.totalorder %s19, %s22
    %p31 = scmp.eq.s32.totalorder %s14, 1
    %p32 = por %p30, %p31
    %p33 = scmp.ne.s32.totalorder %s22, %s23
    %p34 = scmp.eq.s32.totalorder %s14, 0
    %p35 = por %p33, %p34
    %p36 = scmp.ne.s32.totalorder %s22, %s23
    %p37 = scmp.eq.s32.totalorder %s15, 1
    %p38 = por %p36, %p37
    %p40 = scmp.ne.s32.totalorder %s23, %s39
    %p41 = scmp.eq.s32.totalorder %s15, 0
    %p42 = por %p40, %p41
    %s44 = sadd.s32 %s43, 1
    %p47 = scmp.eq.s32.totalorder %s9, 1
    %p48 = scmp.ne.s32.totalorder %s43, %s45
    %p49 = scmp.eq.s32.totalorder %s9, 0
    %p50 = por %p48, %p49
    %p51 = scmp.ne.s32.totalorder %s43, %s45
    %p52 = scmp.eq.s32.totalorder %s14, 1
    %p53 = por %p51, %p52
    %p54 = scmp.ne.s32.totalorder %s45, %s46
    %p55 = scmp.eq.s32.totalorder %s14, 0
    %p56 = por %p54, %p55
    %p57 = scmp.ne.s32.totalorder %s45, %s46
    %p58 = scmp.eq.s32.totalorder %s15, 1
    %p59 = por %p57, %p58
    %p61 = scmp.ne.s32.totalorder %s46, %s60
    %p62 = scmp.eq.s32.totalorder %s15, 0
    %p63 = por %p61, %p62
    %s65 = sadd.s32 %s64, 1
    %p68 = scmp.eq.s32.totalorder %s9, 1
    %p69 = scmp.ne.s32.totalorder %s64, %s66
    %p70 = scmp.eq.s32.totalorder %s9, 0
    %p71 = por %p69, %p70
    %p72 = scmp.ne.s32.totalorder %s64, %s66
    %p73 = scmp.eq.s32.totalorder %s14, 1
    %p74 = por %p72, %p73
    %p75 = scmp.ne.s32.totalorder %s66, %s67
    %p76 = scmp.eq.s32.totalorder %s14, 0
    %p77 = por %p75, %p76
    %p78 = scmp.ne.s32.totalorder %s66, %s67
    %p79 = scmp.eq.s32.totalorder %s15, 1
    %p80 = por %p78, %p79
    %p82 = scmp.ne.s32.totalorder %s67, %s81
    %p83 = scmp.eq.s32.totalorder %s15, 0
    %p84 = por %p82, %p83
    %s85 = ssub.s32 %s9, %s16
    %p86 = scmp.eq.s32.totalorder %s85, 0
    %s88 = sadd.s32 %s87, 1
    %s89 = scalar_select %p86, %s87, %s88
    %p92 = pneg %p86
    %p93 = scmp.eq.s32.totalorder %s9, 1
    %p94 = por %p92, %p93
    %p95 = scmp.ne.s32.totalorder %s87, %s90
    %p96 = scmp.eq.s32.totalorder %s9, 0
    %p97 = por %p95, %p96
    %p98 = scmp.ne.s32.totalorder %s87, %s90
    %p99 = scmp.eq.s32.totalorder %s14, 1
    %p100 = por %p98, %p99
    %p101 = scmp.ne.s32.totalorder %s90, %s91
    %p102 = scmp.eq.s32.totalorder %s14, 0
    %p103 = por %p101, %p102
    %p104 = scmp.ne.s32.totalorder %s90, %s91
    %p105 = scmp.eq.s32.totalorder %s15, 1
    %p106 = por %p104, %p105
    %p108 = scmp.ne.s32.totalorder %s91, %s107
    %p109 = scmp.eq.s32.totalorder %s15, 0
    %p110 = por %p108, %p109
    %p111 = scmp.le.s32.totalorder 1, %s9
    %p112 = scmp.lt.s32.totalorder %s9, 3
    %p113 = pnand %p111, %p112
    %p114 = pneg %p113
    // Predicated region
    $region9: #{sav_concat.7} parent=5 // pred_check
      _
    $region10: #{sav_concat.7} parent=5 // pred_check_branch
      %116 = sbr.rel (%p113) target = $region12
    $region11: #{sav_concat.7} parent=5 // pred_region
      %s117 = ssub.s32 %s9, 1
      // Predicated region
      $region13: #{sav_concat.7} parent=11 // pred_check
        %p118 = pneg %p56
      $region14: #{sav_concat.7} parent=11 // pred_check_branch
        %120 = sbr.rel (%p118) target = $region16
      $region15: #{sav_concat.7} parent=11 // pred_region
        _
      $region16: #{sav_concat.7} parent=11 // pred_fallthru
        _
      // Predicated region
      $region17: #{sav_concat.7} parent=11 // pred_check
        %p121 = pneg %p77
      $region18: #{sav_concat.7} parent=11 // pred_check_branch
        %123 = sbr.rel (%p121) target = $region20
      $region19: #{sav_concat.7} parent=11 // pred_region
        _
      $region20: #{sav_concat.7} parent=11 // pred_fallthru
        _
    $region12: #{sav_concat.7} parent=5 // pred_fallthru
      _
    %p124 = scmp.lt.s32.totalorder %s9, 2
    // Predicated region
    $region21: #{sav_concat.7} parent=5 // pred_check
      %p125 = pneg %p124
    $region22: #{sav_concat.7} parent=5 // pred_check_branch
      %127 = sbr.rel (%p125) target = $region24
    $region23: #{sav_concat.7} parent=5 // pred_region
      // Predicated region
      $region25: #{sav_concat.7} parent=23 // pred_check
        %p128 = pneg %p29
      $region26: #{sav_concat.7} parent=23 // pred_check_branch
        %130 = sbr.rel (%p128) target = $region28
      $region27: #{sav_concat.7} parent=23 // pred_region
        %s131 = smul.u32 3, %s9
        %p132 = scmp.lt.s32.totalorder %s131, 5
        %s133 = scalar_select %p132, %s131, 5
        %s134 = smul.addr %s133, 3
        %s135 = smul.addr %s134, 4
        %s136 = scalar_lea.vmem %s0, %s135
        %s137 = smul.u32 3, %s9
      $region28: #{sav_concat.7} parent=23 // pred_fallthru
        _
    $region24: #{sav_concat.7} parent=5 // pred_fallthru
      _
    %p138 = scmp.le.s32.totalorder 1, %s9
    %p139 = scmp.lt.s32.totalorder %s9, 3
    %p140 = pnand %p138, %p139
    %p141 = pneg %p140
    // Predicated region
    $region29: #{sav_concat.7} parent=5 // pred_check
      _
    $region30: #{sav_concat.7} parent=5 // pred_check_branch
      %143 = sbr.rel (%p140) target = $region32
    $region31: #{sav_concat.7} parent=5 // pred_region
      %s144 = ssub.s32 %s9, 1
      %s145 = smul.u32 3, %s14
      %p146 = scmp.lt.s32.totalorder %s145, 5
      %s147 = scalar_select %p146, %s145, 5
      %s148 = smul.addr %s147, 3
      %s149 = smul.addr %s148, 4
      %s150 = scalar_lea.vmem %s0, %s149
      %p151 = pneg %p35
      %p152 = pneg %p32
      %p153 = pneg %p56
      %p154 = pneg %p53
      %p155 = pneg %p77
      %p156 = pneg %p74
      %p157 = pneg %p103
      %p158 = pneg %p100
      %s159 = smul.u32 3, %s14
      %p160 = scmp.lt.s32.totalorder %s159, 5
      %s161 = scalar_select %p160, %s159, 5
      %s162 = smul.addr %s161, 3
      %s163 = smul.addr %s162, 8
      %s164 = scalar_lea.vmem %s3, %s163
      %s165 = smul.u32 3, %s14
      %p166 = scmp.lt.s32.totalorder %s165, 5
      %s167 = scalar_select %p166, %s165, 5
      %s168 = smul.addr %s167, 3
      %s169 = smul.addr %s168, 4
      %s170 = scalar_lea.vmem %s0, %s169
      %s171 = smul.u32 3, %s14
      %s172 = smul.u32 3, %s14
      %p173 = scmp.lt.s32.totalorder %s172, 5
      %s174 = scalar_select %p173, %s172, 5
      %s175 = smul.addr %s174, 3
      %s176 = smul.addr %s175, 8
      %s177 = scalar_lea.vmem %s3, %s176
      %s178 = smul.u32 3, %s14
      %v180 = vld [vmem:[%s170] sm:$0xff]
      %v181 = vld [vmem:[%s170 + $0x8] sm:$0xf]
      %v182 = vld [vmem:[%s170 + $0xc] sm:$0xff]
      %v183 = vld [vmem:[%s170 + $0x14] sm:$0xf]
      %v184 = vld [vmem:[%s170 + $0x18] sm:$0xff]
      %v185 = vld [vmem:[%s170 + $0x20] sm:$0xf]
      %v186 = vld [vmem:[%s1] sm:$0xff]
      %v187 = vld [vmem:[%s1 + $0x8] sm:$0xf]
      %v188 = vld [vmem:[%s1 + $0xc] sm:$0xff]
      %v189 = vld [vmem:[%s1 + $0x14] sm:$0xf]
      %v190 = vld [vmem:[%s1 + $0x18] sm:$0xff]
      %v191 = vld [vmem:[%s1 + $0x20] sm:$0xf]
      %v192 = vld [vmem:[%s1 + $0x24] sm:$0xff]
      %v193 = vld [vmem:[%s1 + $0x2c] sm:$0xf]
      %v194 = vld [vmem:[%s1 + $0x30] sm:$0xff]
      %v195 = vld [vmem:[%s1 + $0x38] sm:$0xf]
      %v196 = vld [vmem:[%s1 + $0x3c] sm:$0xff]
      %v197 = vld [vmem:[%s1 + $0x44] sm:$0xf]
      %v198 = vld [vmem:[%s1 + $0x48] sm:$0xff]
      %v199 = vld [vmem:[%s1 + $0x50] sm:$0xf]
      %v200 = vld [vmem:[%s1 + $0x54] sm:$0xff]
      %v201 = vld [vmem:[%s1 + $0x5c] sm:$0xf]
      %v202 = vld [vmem:[%s1 + $0x60] sm:$0xff]
      %v203 = vld [vmem:[%s1 + $0x68] sm:$0xf]
      %v204 = vld [vmem:[%s1 + $0x6c] sm:$0xff]
      %v205 = vld [vmem:[%s1 + $0x74] sm:$0xf]
      %v206 = vld [vmem:[%s1 + $0x78] sm:$0xff]
      %v207 = vld [vmem:[%s1 + $0x80] sm:$0xf]
      %v208 = vld [vmem:[%s1 + $0x84] sm:$0xff]
      %v209 = vld [vmem:[%s1 + $0x8c] sm:$0xf]
      %v210 = vld [vmem:[%s1 + $0x90] sm:$0xff]
      %v211 = vld [vmem:[%s1 + $0x98] sm:$0xf]
      %v212 = vld [vmem:[%s1 + $0x9c] sm:$0xff]
      %v213 = vld [vmem:[%s1 + $0xa4] sm:$0xf]
      %v214 = vld [vmem:[%s1 + $0xa8] sm:$0xff]
      %v215 = vld [vmem:[%s1 + $0xb0] sm:$0xf]
      %v216 = vld [vmem:[%s1 + $0xb4] sm:$0xff]
      %v217 = vld [vmem:[%s1 + $0xbc] sm:$0xf]
      %v218 = vld [vmem:[%s1 + $0xc0] sm:$0xff]
      %v219 = vld [vmem:[%s1 + $0xc8] sm:$0xf]
      %v220 = vld [vmem:[%s1 + $0xcc] sm:$0xff]
      %v221 = vld [vmem:[%s1 + $0xd4] sm:$0xf]
      %v222 = vld [vmem:[%s1 + $0xd8] sm:$0xff]
      %v223 = vld [vmem:[%s1 + $0xe0] sm:$0xf]
      %v224 = vld [vmem:[%s1 + $0xe4] sm:$0xff]
      %v225 = vld [vmem:[%s1 + $0xec] sm:$0xf]
      %v226 = vld [vmem:[%s1 + $0xf0] sm:$0xff]
      %v227 = vld [vmem:[%s1 + $0xf8] sm:$0xf]
      %v228 = vld [vmem:[%s1 + $0xfc] sm:$0xff]
      %v229 = vld [vmem:[%s1 + $0x104] sm:$0xf]
      %v230 = vld [vmem:[%s1 + $0x108] sm:$0xff]
      %v231 = vld [vmem:[%s1 + $0x110] sm:$0xf]
      %v232 = vld [vmem:[%s1 + $0x114] sm:$0xff]
      %v233 = vld [vmem:[%s1 + $0x11c] sm:$0xf]
      %v234 = vld [vmem:[%s1 + $0x120] sm:$0xff]
      %v235 = vld [vmem:[%s1 + $0x128] sm:$0xf]
      %v236 = vld [vmem:[%s1 + $0x12c] sm:$0xff]
      %v237 = vld [vmem:[%s1 + $0x134] sm:$0xf]
      %v238 = vld [vmem:[%s1 + $0x138] sm:$0xff]
      %v239 = vld [vmem:[%s1 + $0x140] sm:$0xf]
      %v240 = vld [vmem:[%s1 + $0x144] sm:$0xff]
      %v241 = vld [vmem:[%s1 + $0x14c] sm:$0xf]
      %v242 = vld [vmem:[%s1 + $0x150] sm:$0xff]
      %v243 = vld [vmem:[%s1 + $0x158] sm:$0xf]
      %v244 = vld [vmem:[%s1 + $0x15c] sm:$0xff]
      %v245 = vld [vmem:[%s1 + $0x164] sm:$0xf]
      %v246 = vld [vmem:[%s1 + $0x168] sm:$0xff]
      %v247 = vld [vmem:[%s1 + $0x170] sm:$0xf]
      %v248 = vld [vmem:[%s1 + $0x174] sm:$0xff]
      %v249 = vld [vmem:[%s1 + $0x17c] sm:$0xf]
      %v250 = vld [vmem:[%s1 + $0x180] sm:$0xff]
      %v251 = vld [vmem:[%s1 + $0x188] sm:$0xf]
      %v252 = vld [vmem:[%s1 + $0x18c] sm:$0xff]
      %v253 = vld [vmem:[%s1 + $0x194] sm:$0xf]
      %v254 = vld [vmem:[%s1 + $0x198] sm:$0xff]
      %v255 = vld [vmem:[%s1 + $0x1a0] sm:$0xf]
      %v256 = vld [vmem:[%s1 + $0x1a4] sm:$0xff]
      %v257 = vld [vmem:[%s1 + $0x1ac] sm:$0xf]
      %v258 = vld [vmem:[%s1 + $0x1b0] sm:$0xff]
      %v259 = vld [vmem:[%s1 + $0x1b8] sm:$0xf]
      %v260 = vld [vmem:[%s1 + $0x1bc] sm:$0xff]
      %v261 = vld [vmem:[%s1 + $0x1c4] sm:$0xf]
      %v262 = vld [vmem:[%s1 + $0x1c8] sm:$0xff]
      %v263 = vld [vmem:[%s1 + $0x1d0] sm:$0xf]
      %v264 = vld [vmem:[%s1 + $0x1d4] sm:$0xff]
      %v265 = vld [vmem:[%s1 + $0x1dc] sm:$0xf]
      %v266 = vld [vmem:[%s1 + $0x1e0] sm:$0xff]
      %v267 = vld [vmem:[%s1 + $0x1e8] sm:$0xf]
      %v268 = vld [vmem:[%s1 + $0x1ec] sm:$0xff]
      %v269 = vld [vmem:[%s1 + $0x1f4] sm:$0xf]
      %v270 = vld [vmem:[%s1 + $0x1f8] sm:$0xff]
      %v271 = vld [vmem:[%s1 + $0x200] sm:$0xf]
      %v272 = vld [vmem:[%s1 + $0x204] sm:$0xff]
      %v273 = vld [vmem:[%s1 + $0x20c] sm:$0xf]
      %v274 = vld [vmem:[%s1 + $0x210] sm:$0xff]
      %v275 = vld [vmem:[%s1 + $0x218] sm:$0xf]
      %v276 = vld [vmem:[%s1 + $0x21c] sm:$0xff]
      %v277 = vld [vmem:[%s1 + $0x224] sm:$0xf]
      %v278 = vld [vmem:[%s1 + $0x228] sm:$0xff]
      %v279 = vld [vmem:[%s1 + $0x230] sm:$0xf]
      %v280 = vld [vmem:[%s1 + $0x234] sm:$0xff]
      %v281 = vld [vmem:[%s1 + $0x23c] sm:$0xf]
      %v282 = vld [vmem:[%s2] sm:$0x7]
      %v284 = vlaneseq
      %v285 = vshrl.u32 %v284, 7
      %v286 = vsub.s32 0, %v285
      %v287 = vrot.slane %v282, %v286
      %v288 = vlaneseq
      %v289 = vshrl.u32 %v288, 7
      %v290 = vsub.s32 1, %v289
      %v291 = vrot.slane %v282, %v290
      %v292 = vlaneseq
      %v293 = vshrl.u32 %v292, 7
      %v294 = vsub.s32 2, %v293
      %v295 = vrot.slane %v282, %v294
      %v305 = vunpack.c.l.b16 %v180
      %v306 = vunpack.c.h.b16 %v180
      %v307 = vunpack.c.l.b16 %v181
      %v308 = vunpack.c.l.b16 %v182
      %v309 = vunpack.c.h.b16 %v182
      %v310 = vunpack.c.l.b16 %v183
      %v311 = vunpack.c.l.b16 %v184
      %v312 = vunpack.c.h.b16 %v184
      %v313 = vunpack.c.l.b16 %v185
      %v314 = vpack.c.b16 %v308, %v305
      %v315 = vpack.c.b16 %v309, %v306
      %v316 = vpack.c.b16 %v310, %v307
      %v317 = vpack.c.b16 %v311, %v311
      %v318 = vpack.c.b16 %v312, %v312
      %v319 = vpack.c.b16 %v313, %v313
      %v422 = vunpack.c.l.b16 %v186
      %v423 = vunpack.c.h.b16 %v186
      %v424 = vunpack.c.l.b16 %v187
      %v425 = vunpack.c.l.b16 %v188
      %v426 = vunpack.c.h.b16 %v188
      %v427 = vunpack.c.l.b16 %v189
      %v428 = vunpack.c.l.b16 %v190
      %v429 = vunpack.c.h.b16 %v190
      %v430 = vunpack.c.l.b16 %v191
      %v431 = vunpack.c.l.b16 %v192
      %v432 = vunpack.c.h.b16 %v192
      %v433 = vunpack.c.l.b16 %v193
      %v434 = vunpack.c.l.b16 %v194
      %v435 = vunpack.c.h.b16 %v194
      %v436 = vunpack.c.l.b16 %v195
      %v437 = vunpack.c.l.b16 %v196
      %v438 = vunpack.c.h.b16 %v196
      %v439 = vunpack.c.l.b16 %v197
      %v440 = vunpack.c.l.b16 %v198
      %v441 = vunpack.c.h.b16 %v198
      %v442 = vunpack.c.l.b16 %v199
      %v443 = vunpack.c.l.b16 %v200
      %v444 = vunpack.c.h.b16 %v200
      %v445 = vunpack.c.l.b16 %v201
      %v446 = vunpack.c.l.b16 %v202
      %v447 = vunpack.c.h.b16 %v202
      %v448 = vunpack.c.l.b16 %v203
      %v449 = vunpack.c.l.b16 %v204
      %v450 = vunpack.c.h.b16 %v204
      %v451 = vunpack.c.l.b16 %v205
      %v452 = vunpack.c.l.b16 %v206
      %v453 = vunpack.c.h.b16 %v206
      %v454 = vunpack.c.l.b16 %v207
      %v455 = vunpack.c.l.b16 %v208
      %v456 = vunpack.c.h.b16 %v208
      %v457 = vunpack.c.l.b16 %v209
      %v458 = vunpack.c.l.b16 %v210
      %v459 = vunpack.c.h.b16 %v210
      %v460 = vunpack.c.l.b16 %v211
      %v461 = vunpack.c.l.b16 %v212
      %v462 = vunpack.c.h.b16 %v212
      %v463 = vunpack.c.l.b16 %v213
      %v464 = vunpack.c.l.b16 %v214
      %v465 = vunpack.c.h.b16 %v214
      %v466 = vunpack.c.l.b16 %v215
      %v467 = vunpack.c.l.b16 %v216
      %v468 = vunpack.c.h.b16 %v216
      %v469 = vunpack.c.l.b16 %v217
      %v470 = vunpack.c.l.b16 %v218
      %v471 = vunpack.c.h.b16 %v218
      %v472 = vunpack.c.l.b16 %v219
      %v473 = vunpack.c.l.b16 %v220
      %v474 = vunpack.c.h.b16 %v220
      %v475 = vunpack.c.l.b16 %v221
      %v476 = vunpack.c.l.b16 %v222
      %v477 = vunpack.c.h.b16 %v222
      %v478 = vunpack.c.l.b16 %v223
      %v479 = vunpack.c.l.b16 %v224
      %v480 = vunpack.c.h.b16 %v224
      %v481 = vunpack.c.l.b16 %v225
      %v482 = vunpack.c.l.b16 %v226
      %v483 = vunpack.c.h.b16 %v226
      %v484 = vunpack.c.l.b16 %v227
      %v485 = vunpack.c.l.b16 %v228
      %v486 = vunpack.c.h.b16 %v228
      %v487 = vunpack.c.l.b16 %v229
      %v488 = vunpack.c.l.b16 %v230
      %v489 = vunpack.c.h.b16 %v230
      %v490 = vunpack.c.l.b16 %v231
      %v491 = vunpack.c.l.b16 %v232
      %v492 = vunpack.c.h.b16 %v232
      %v493 = vunpack.c.l.b16 %v233
      %v494 = vunpack.c.l.b16 %v234
      %v495 = vunpack.c.h.b16 %v234
      %v496 = vunpack.c.l.b16 %v235
      %v497 = vunpack.c.l.b16 %v236
      %v498 = vunpack.c.h.b16 %v236
      %v499 = vunpack.c.l.b16 %v237
      %v500 = vunpack.c.l.b16 %v238
      %v501 = vunpack.c.h.b16 %v238
      %v502 = vunpack.c.l.b16 %v239
      %v503 = vunpack.c.l.b16 %v240
      %v504 = vunpack.c.h.b16 %v240
      %v505 = vunpack.c.l.b16 %v241
      %v506 = vunpack.c.l.b16 %v242
      %v507 = vunpack.c.h.b16 %v242
      %v508 = vunpack.c.l.b16 %v243
      %v509 = vunpack.c.l.b16 %v244
      %v510 = vunpack.c.h.b16 %v244
      %v511 = vunpack.c.l.b16 %v245
      %v512 = vunpack.c.l.b16 %v246
      %v513 = vunpack.c.h.b16 %v246
      %v514 = vunpack.c.l.b16 %v247
      %v515 = vunpack.c.l.b16 %v248
      %v516 = vunpack.c.h.b16 %v248
      %v517 = vunpack.c.l.b16 %v249
      %v518 = vunpack.c.l.b16 %v250
      %v519 = vunpack.c.h.b16 %v250
      %v520 = vunpack.c.l.b16 %v251
      %v521 = vunpack.c.l.b16 %v252
      %v522 = vunpack.c.h.b16 %v252
      %v523 = vunpack.c.l.b16 %v253
      %v524 = vunpack.c.l.b16 %v254
      %v525 = vunpack.c.h.b16 %v254
      %v526 = vunpack.c.l.b16 %v255
      %v527 = vunpack.c.l.b16 %v256
      %v528 = vunpack.c.h.b16 %v256
      %v529 = vunpack.c.l.b16 %v257
      %v530 = vunpack.c.l.b16 %v258
      %v531 = vunpack.c.h.b16 %v258
      %v532 = vunpack.c.l.b16 %v259
      %v533 = vunpack.c.l.b16 %v260
      %v534 = vunpack.c.h.b16 %v260
      %v535 = vunpack.c.l.b16 %v261
      %v536 = vunpack.c.l.b16 %v262
      %v537 = vunpack.c.h.b16 %v262
      %v538 = vunpack.c.l.b16 %v263
      %v539 = vunpack.c.l.b16 %v264
      %v540 = vunpack.c.h.b16 %v264
      %v541 = vunpack.c.l.b16 %v265
      %v542 = vunpack.c.l.b16 %v266
      %v543 = vunpack.c.h.b16 %v266
      %v544 = vunpack.c.l.b16 %v267
      %v545 = vunpack.c.l.b16 %v268
      %v546 = vunpack.c.h.b16 %v268
      %v547 = vunpack.c.l.b16 %v269
      %v548 = vunpack.c.l.b16 %v270
      %v549 = vunpack.c.h.b16 %v270
      %v550 = vunpack.c.l.b16 %v271
      %v551 = vunpack.c.l.b16 %v272
      %v552 = vunpack.c.h.b16 %v272
      %v553 = vunpack.c.l.b16 %v273
      %v554 = vunpack.c.l.b16 %v274
      %v555 = vunpack.c.h.b16 %v274
      %v556 = vunpack.c.l.b16 %v275
      %v557 = vunpack.c.l.b16 %v276
      %v558 = vunpack.c.h.b16 %v276
      %v559 = vunpack.c.l.b16 %v277
      %v560 = vunpack.c.l.b16 %v278
      %v561 = vunpack.c.h.b16 %v278
      %v562 = vunpack.c.l.b16 %v279
      %v563 = vunpack.c.l.b16 %v280
      %v564 = vunpack.c.h.b16 %v280
      %v565 = vunpack.c.l.b16 %v281
      %v566 = vpack.c.b16 %v425, %v422
      %v567 = vpack.c.b16 %v426, %v423
      %v568 = vpack.c.b16 %v427, %v424
      %v569 = vpack.c.b16 %v431, %v428
      %v570 = vpack.c.b16 %v432, %v429
      %v571 = vpack.c.b16 %v433, %v430
      %v572 = vpack.c.b16 %v437, %v434
      %v573 = vpack.c.b16 %v438, %v435
      %v574 = vpack.c.b16 %v439, %v436
      %v575 = vpack.c.b16 %v443, %v440
      %v576 = vpack.c.b16 %v444, %v441
      %v577 = vpack.c.b16 %v445, %v442
      %v578 = vpack.c.b16 %v449, %v446
      %v579 = vpack.c.b16 %v450, %v447
      %v580 = vpack.c.b16 %v451, %v448
      %v581 = vpack.c.b16 %v455, %v452
      %v582 = vpack.c.b16 %v456, %v453
      %v583 = vpack.c.b16 %v457, %v454
      %v584 = vpack.c.b16 %v461, %v458
      %v585 = vpack.c.b16 %v462, %v459
      %v586 = vpack.c.b16 %v463, %v460
      %v587 = vpack.c.b16 %v467, %v464
      %v588 = vpack.c.b16 %v468, %v465
      %v589 = vpack.c.b16 %v469, %v466
      %v590 = vpack.c.b16 %v473, %v470
      %v591 = vpack.c.b16 %v474, %v471
      %v592 = vpack.c.b16 %v475, %v472
      %v593 = vpack.c.b16 %v479, %v476
      %v594 = vpack.c.b16 %v480, %v477
      %v595 = vpack.c.b16 %v481, %v478
      %v596 = vpack.c.b16 %v485, %v482
      %v597 = vpack.c.b16 %v486, %v483
      %v598 = vpack.c.b16 %v487, %v484
      %v599 = vpack.c.b16 %v491, %v488
      %v600 = vpack.c.b16 %v492, %v489
      %v601 = vpack.c.b16 %v493, %v490
      %v602 = vpack.c.b16 %v497, %v494
      %v603 = vpack.c.b16 %v498, %v495
      %v604 = vpack.c.b16 %v499, %v496
      %v605 = vpack.c.b16 %v503, %v500
      %v606 = vpack.c.b16 %v504, %v501
      %v607 = vpack.c.b16 %v505, %v502
      %v608 = vpack.c.b16 %v509, %v506
      %v609 = vpack.c.b16 %v510, %v507
      %v610 = vpack.c.b16 %v511, %v508
      %v611 = vpack.c.b16 %v515, %v512
      %v612 = vpack.c.b16 %v516, %v513
      %v613 = vpack.c.b16 %v517, %v514
      %v614 = vpack.c.b16 %v521, %v518
      %v615 = vpack.c.b16 %v522, %v519
      %v616 = vpack.c.b16 %v523, %v520
      %v617 = vpack.c.b16 %v527, %v524
      %v618 = vpack.c.b16 %v528, %v525
      %v619 = vpack.c.b16 %v529, %v526
      %v620 = vpack.c.b16 %v533, %v530
      %v621 = vpack.c.b16 %v534, %v531
      %v622 = vpack.c.b16 %v535, %v532
      %v623 = vpack.c.b16 %v539, %v536
      %v624 = vpack.c.b16 %v540, %v537
      %v625 = vpack.c.b16 %v541, %v538
      %v626 = vpack.c.b16 %v545, %v542
      %v627 = vpack.c.b16 %v546, %v543
      %v628 = vpack.c.b16 %v547, %v544
      %v629 = vpack.c.b16 %v551, %v548
      %v630 = vpack.c.b16 %v552, %v549
      %v631 = vpack.c.b16 %v553, %v550
      %v632 = vpack.c.b16 %v557, %v554
      %v633 = vpack.c.b16 %v558, %v555
      %v634 = vpack.c.b16 %v559, %v556
      %v635 = vpack.c.b16 %v563, %v560
      %v636 = vpack.c.b16 %v564, %v561
      %v637 = vpack.c.b16 %v565, %v562
      %710 = vmatprep.subr.bf16.mxu0 %v567
      %711 = vmatpush1.bf16.msra.mxu0 %v566
      %712 = vmatprep.subr.bf16.mxu0 %v570
      %713 = vmatpush1.bf16.msra.mxu0 %v569
      %714 = vmatprep.subr.bf16.mxu0 %v573
      %715 = vmatpush1.bf16.msra.mxu0 %v572
      %716 = vmatprep.subr.bf16.mxu0 %v576
      %717 = vmatpush1.bf16.msra.mxu0 %v575
      %718 = vmatprep.subr.bf16.mxu0 %v579
      %719 = vmatpush1.bf16.msra.mxu0 %v578
      %720 = vmatprep.subr.bf16.mxu0 %v582
      %721 = vmatpush1.bf16.msra.mxu0 %v581
      %722 = vmatprep.subr.bf16.mxu0 %v585
      %723 = vmatpush1.bf16.msra.mxu0 %v584
      %724 = vmatprep.subr.bf16.mxu0 %v588
      %725 = vmatpush1.bf16.msra.mxu0 %v587
      %726 = vmatprep.subr.bf16.mxu0 %v591
      %727 = vmatpush1.bf16.msra.mxu0 %v590
      %728 = vmatprep.subr.bf16.mxu0 %v594
      %729 = vmatpush1.bf16.msra.mxu0 %v593
      %730 = vmatprep.subr.bf16.mxu0 %v597
      %731 = vmatpush1.bf16.msra.mxu0 %v596
      %732 = vmatprep.subr.bf16.mxu0 %v600
      %733 = vmatpush1.bf16.msra.mxu0 %v599
      %734 = vmatprep.subr.bf16.mxu0 %v603
      %735 = vmatpush1.bf16.msra.mxu0 %v602
      %736 = vmatprep.subr.bf16.mxu0 %v606
      %737 = vmatpush1.bf16.msra.mxu0 %v605
      %738 = vmatprep.subr.bf16.mxu0 %v609
      %739 = vmatpush1.bf16.msra.mxu0 %v608
      %740 = vmatprep.subr.bf16.mxu0 %v612
      %741 = vmatpush1.bf16.msra.mxu0 %v611
      %742 = vmatprep.mubr.bf16.mxu0 %v315
      %743 = vmatmul.mubr.bf16.gmra.mrb[0].mxu0 %v314
      %v744 = vpop.f32.mrb[0].mxu0
      %v745 = vadd.f32 %v287, %v744
      %v746 = vpop.f32.mrb[0].mxu0
      %v747 = vadd.f32 %v291, %v746
      %v748 = vpop.f32.mrb[0].mxu0
      %v749 = vadd.f32 %v287, %v748
      %v750 = vpop.f32.mrb[0].mxu0
      %v751 = vadd.f32 %v291, %v750
      %752 = vmatprep.mubr.bf16.mxu0 %v318
      %753 = vmatmul.mubr.bf16.gmra.mrb[0].mxu0 %v317
      %v754 = vpop.f32.mrb[0].mxu0
      %v755 = vadd.f32 %v287, %v754
      %v756 = vpop.f32.mrb[0].mxu0
      %v757 = vadd.f32 %v291, %v756
      %v758 = vpop.f32.mrb[0].mxu0
      %v759 = vpop.f32.mrb[0].mxu0
      %760 = vdwg.mxu0
      %761 = vmatprep.subr.bf16.mxu0 %v615
      %762 = vmatpush1.bf16.msra.mxu0 %v614
      %763 = vmatprep.subr.bf16.mxu0 %v618
      %764 = vmatpush1.bf16.msra.mxu0 %v617
      %765 = vmatprep.subr.bf16.mxu0 %v621
      %766 = vmatpush1.bf16.msra.mxu0 %v620
      %767 = vmatprep.subr.bf16.mxu0 %v624
      %768 = vmatpush1.bf16.msra.mxu0 %v623
      %769 = vmatprep.subr.bf16.mxu0 %v627
      %770 = vmatpush1.bf16.msra.mxu0 %v626
      %771 = vmatprep.subr.bf16.mxu0 %v630
      %772 = vmatpush1.bf16.msra.mxu0 %v629
      %773 = vmatprep.subr.bf16.mxu0 %v633
      %774 = vmatpush1.bf16.msra.mxu0 %v632
      %775 = vmatprep.subr.bf16.mxu0 %v636
      %776 = vmatpush1.bf16.msra.mxu0 %v635
      %777 = vmatprep.subr.bf16.mxu0 0
      %778 = vmatpush1.bf16.msra.mxu0 0
      %779 = vmatprep.subr.bf16.mxu0 0
      %780 = vmatpush1.bf16.msra.mxu0 0
      %781 = vmatprep.subr.bf16.mxu0 0
      %782 = vmatpush1.bf16.msra.mxu0 0
      %783 = vmatprep.subr.bf16.mxu0 0
      %784 = vmatpush1.bf16.msra.mxu0 0
      %785 = vmatprep.subr.bf16.mxu0 0
      %786 = vmatpush1.bf16.msra.mxu0 0
      %787 = vmatprep.subr.bf16.mxu0 0
      %788 = vmatpush1.bf16.msra.mxu0 0
      %789 = vmatprep.subr.bf16.mxu0 0
      %790 = vmatpush1.bf16.msra.mxu0 0
      %791 = vmatprep.subr.bf16.mxu0 0
      %792 = vmatpush1.bf16.msra.mxu0 0
      %793 = vmatprep.mubr.bf16.mxu0 0
      %794 = vmatmul.mubr.bf16.gmra.mrb[0].mxu0 %v316
      %v795 = vpop.f32.mrb[0].mxu0
      %v796 = vadd.f32 %v745, %v795
      %v797 = vpop.f32.mrb[0].mxu0
      %v798 = vadd.f32 %v747, %v797
      %v799 = vpop.f32.mrb[0].mxu0
      %v800 = vadd.f32 %v749, %v799
      %v801 = vpop.f32.mrb[0].mxu0
      %v802 = vadd.f32 %v751, %v801
      %803 = vmatprep.mubr.bf16.mxu0 0
      %804 = vmatmul.mubr.bf16.gmra.mrb[0].mxu0 %v319
      %v805 = vpop.f32.mrb[0].mxu0
      %v806 = vadd.f32 %v755, %v805
      %v807 = vpop.f32.mrb[0].mxu0
      %v808 = vadd.f32 %v757, %v807
      %v809 = vpop.f32.mrb[0].mxu0
      %v810 = vpop.f32.mrb[0].mxu0
      %811 = vdwg.mxu0
      %812 = vmatprep.subr.bf16.mxu0 0
      %813 = vmatpush1.bf16.msra.mxu0 %v568
      %814 = vmatprep.subr.bf16.mxu0 0
      %815 = vmatpush1.bf16.msra.mxu0 %v571
      %816 = vmatprep.subr.bf16.mxu0 0
      %817 = vmatpush1.bf16.msra.mxu0 %v574
      %818 = vmatprep.subr.bf16.mxu0 0
      %819 = vmatpush1.bf16.msra.mxu0 %v577
      %820 = vmatprep.subr.bf16.mxu0 0
      %821 = vmatpush1.bf16.msra.mxu0 %v580
      %822 = vmatprep.subr.bf16.mxu0 0
      %823 = vmatpush1.bf16.msra.mxu0 %v583
      %824 = vmatprep.subr.bf16.mxu0 0
      %825 = vmatpush1.bf16.msra.mxu0 %v586
      %826 = vmatprep.subr.bf16.mxu0 0
      %827 = vmatpush1.bf16.msra.mxu0 %v589
      %828 = vmatprep.subr.bf16.mxu0 0
      %829 = vmatpush1.bf16.msra.mxu0 %v592
      %830 = vmatprep.subr.bf16.mxu0 0
      %831 = vmatpush1.bf16.msra.mxu0 %v595
      %832 = vmatprep.subr.bf16.mxu0 0
      %833 = vmatpush1.bf16.msra.mxu0 %v598
      %834 = vmatprep.subr.bf16.mxu0 0
      %835 = vmatpush1.bf16.msra.mxu0 %v601
      %836 = vmatprep.subr.bf16.mxu0 0
      %837 = vmatpush1.bf16.msra.mxu0 %v604
      %838 = vmatprep.subr.bf16.mxu0 0
      %839 = vmatpush1.bf16.msra.mxu0 %v607
      %840 = vmatprep.subr.bf16.mxu0 0
      %841 = vmatpush1.bf16.msra.mxu0 %v610
      %842 = vmatprep.subr.bf16.mxu0 0
      %843 = vmatpush1.bf16.msra.mxu0 %v613
      %844 = vmatprep.mubr.bf16.mxu0 %v315
      %845 = vmatmul.mubr.bf16.gmra.mrb[0].mxu0 %v314
      %v846 = vpop.f32.mrb[0].mxu0
      %v847 = vadd.f32 %v295, %v846
      %v848 = vpop.f32.mrb[0].mxu0
      %v849 = vpop.f32.mrb[0].mxu0
      %v850 = vadd.f32 %v295, %v849
      %v851 = vpop.f32.mrb[0].mxu0
      %852 = vmatprep.mubr.bf16.mxu0 %v318
      %853 = vmatmul.mubr.bf16.gmra.mrb[0].mxu0 %v317
      %v854 = vpop.f32.mrb[0].mxu0
      %v855 = vadd.f32 %v295, %v854
      %v856 = vpop.f32.mrb[0].mxu0
      %v857 = vpop.f32.mrb[0].mxu0
      %v858 = vpop.f32.mrb[0].mxu0
      %859 = vdwg.mxu0
      %860 = vmatprep.subr.bf16.mxu0 0
      %861 = vmatpush1.bf16.msra.mxu0 %v616
      %862 = vmatprep.subr.bf16.mxu0 0
      %863 = vmatpush1.bf16.msra.mxu0 %v619
      %864 = vmatprep.subr.bf16.mxu0 0
      %865 = vmatpush1.bf16.msra.mxu0 %v622
      %866 = vmatprep.subr.bf16.mxu0 0
      %867 = vmatpush1.bf16.msra.mxu0 %v625
      %868 = vmatprep.subr.bf16.mxu0 0
      %869 = vmatpush1.bf16.msra.mxu0 %v628
      %870 = vmatprep.subr.bf16.mxu0 0
      %871 = vmatpush1.bf16.msra.mxu0 %v631
      %872 = vmatprep.subr.bf16.mxu0 0
      %873 = vmatpush1.bf16.msra.mxu0 %v634
      %874 = vmatprep.subr.bf16.mxu0 0
      %875 = vmatpush1.bf16.msra.mxu0 %v637
      %876 = vmatprep.subr.bf16.mxu0 0
      %877 = vmatpush1.bf16.msra.mxu0 0
      %878 = vmatprep.subr.bf16.mxu0 0
      %879 = vmatpush1.bf16.msra.mxu0 0
      %880 = vmatprep.subr.bf16.mxu0 0
      %881 = vmatpush1.bf16.msra.mxu0 0
      %882 = vmatprep.subr.bf16.mxu0 0
      %883 = vmatpush1.bf16.msra.mxu0 0
      %884 = vmatprep.subr.bf16.mxu0 0
      %885 = vmatpush1.bf16.msra.mxu0 0
      %886 = vmatprep.subr.bf16.mxu0 0
      %887 = vmatpush1.bf16.msra.mxu0 0
      %888 = vmatprep.subr.bf16.mxu0 0
      %889 = vmatpush1.bf16.msra.mxu0 0
      %890 = vmatprep.subr.bf16.mxu0 0
      %891 = vmatpush1.bf16.msra.mxu0 0
      %892 = vmatprep.mubr.bf16.mxu0 0
      %893 = vmatmul.mubr.bf16.gmra.mrb[0].mxu0 %v316
      %v894 = vpop.f32.mrb[0].mxu0
      %v895 = vadd.f32 %v847, %v894
      %v896 = vpop.f32.mrb[0].mxu0
      %v897 = vpop.f32.mrb[0].mxu0
      %v898 = vadd.f32 %v850, %v897
      %v899 = vpop.f32.mrb[0].mxu0
      %900 = vmatprep.mubr.bf16.mxu0 0
      %901 = vmatmul.mubr.bf16.gmra.mrb[0].mxu0 %v319
      %v902 = vpop.f32.mrb[0].mxu0
      %v903 = vadd.f32 %v855, %v902
      %v904 = vpop.f32.mrb[0].mxu0
      %v905 = vpop.f32.mrb[0].mxu0
      %v906 = vpop.f32.mrb[0].mxu0
      %907 = vdwg.mxu0
      %vm908 = vcmp.gt.f32.partialorder %v796, 0.0
      %vm909 = vcmp.gt.f32.partialorder %v798, 0.0
      %vm910 = vcmp.gt.f32.partialorder %v895, 0.0
      %vm911 = vcmp.gt.f32.partialorder %v800, 0.0
      %vm912 = vcmp.gt.f32.partialorder %v802, 0.0
      %vm913 = vcmp.gt.f32.partialorder %v898, 0.0
      %vm914 = vcmp.gt.f32.partialorder %v806, 0.0
      %vm915 = vcmp.gt.f32.partialorder %v808, 0.0
      %vm916 = vcmp.gt.f32.partialorder %v903, 0.0
      %v917 = vmul.f32 %v796, 0.2
      %v918 = vmul.f32 %v798, 0.2
      %v919 = vmul.f32 %v895, 0.2
      %v920 = vmul.f32 %v800, 0.2
      %v921 = vmul.f32 %v802, 0.2
      %v922 = vmul.f32 %v898, 0.2
      %v923 = vmul.f32 %v806, 0.2
      %v924 = vmul.f32 %v808, 0.2
      %v925 = vmul.f32 %v903, 0.2
      %v926 = vsel %vm908, %v796, %v917
      %v927 = vsel %vm909, %v798, %v918
      %v928 = vsel %vm910, %v895, %v919
      %v929 = vsel %vm911, %v800, %v920
      %v930 = vsel %vm912, %v802, %v921
      %v931 = vsel %vm913, %v898, %v922
      %v932 = vsel %vm914, %v806, %v923
      %v933 = vsel %vm915, %v808, %v924
      %v934 = vsel %vm916, %v903, %v925
      %935 = vst [vmem:[%s177] sm:$0xff] %v926
      %936 = vst [vmem:[%s177 + $0x8] sm:$0xff] %v927
      %937 = vst [vmem:[%s177 + $0x10] sm:$0xff] %v928
      %938 = vst [vmem:[%s177 + $0x18] sm:$0xff] %v929
      %939 = vst [vmem:[%s177 + $0x20] sm:$0xff] %v930
      %940 = vst [vmem:[%s177 + $0x28] sm:$0xff] %v931
      %941 = vst [vmem:[%s177 + $0x30] sm:$0xff] %v932
      %942 = vst [vmem:[%s177 + $0x38] sm:$0xff] %v933
      %943 = vst [vmem:[%s177 + $0x40] sm:$0xff] %v934
      %s944 = smul.u32 3, %s14
      %p945 = scmp.lt.s32.totalorder %s944, 5
      %s946 = scalar_select %p945, %s944, 5
      %s947 = smul.addr %s946, 3
      %s948 = smul.addr %s947, 8
      %s949 = scalar_lea.vmem %s3, %s948
      // Predicated region
      $region33: #{sav_concat.7} parent=31 // pred_check
        %p950 = pneg %p100
      $region34: #{sav_concat.7} parent=31 // pred_check_branch
        %952 = sbr.rel (%p950) target = $region36
      $region35: #{sav_concat.7} parent=31 // pred_region
        %s953 = smul.u32 3, %s14
      $region36: #{sav_concat.7} parent=31 // pred_fallthru
        _
    $region32: #{sav_concat.7} parent=5 // pred_fallthru
      _
    %p954 = scmp.le.s32.totalorder 2, %s9
    // Predicated region
    $region37: #{sav_concat.7} parent=5 // pred_check
      %p955 = pneg %p954
    $region38: #{sav_concat.7} parent=5 // pred_check_branch
      %957 = sbr.rel (%p955) target = $region40
    $region39: #{sav_concat.7} parent=5 // pred_region
      %s958 = ssub.s32 %s9, 2
      // Predicated region
      $region41: #{sav_concat.7} parent=39 // pred_check
        %p959 = pneg %p106
      $region42: #{sav_concat.7} parent=39 // pred_check_branch
        %961 = sbr.rel (%p959) target = $region44
      $region43: #{sav_concat.7} parent=39 // pred_region
        %s962 = smul.u32 3, %s15
        %p963 = scmp.lt.s32.totalorder %s962, 5
        %s964 = scalar_select %p963, %s962, 5
        %s965 = smul.addr %s964, 3
        %s966 = smul.addr %s965, 8
        %s967 = scalar_lea.vmem %s3, %s966
      $region44: #{sav_concat.7} parent=39 // pred_fallthru
        _
    $region40: #{sav_concat.7} parent=5 // pred_fallthru
      _
  $region6: #{sav_concat.7} parent=0 // loop_footer
    %s13 = sadd.s32 1, %s9
  $region7: #{sav_concat.7} parent=0 // loop_footer_branch
    %8 = sbr.rel target = $region3
  $region8: #{sav_concat.7} parent=0 // loop_exit
    _

</llo_original>
